<compile_context>
chip_gen: v7x
topology: tpu7x:2x2x1
jax: 0.10.0
libtpu: 0.0.40
codegen_flags: <defaults>
</compile_context>

<pallas_src>
import functools

import jax
import jax.numpy as jnp
import numpy as np
from jax import lax
from jax.experimental import pallas as pl
from jax.experimental.pallas import tpu as pltpu


def _vq_kernel(x_ref, e_ref, edt_ref, e2_ref, scatm_ref, gath_ref, *out_refs,
               write_distances, mask_rows, n_valid):
    if write_distances:
        dist_ref, q_ref, idx_ref, cnt_ref = out_refs
    else:
        q_ref, idx_ref, cnt_ref = out_refs

    x = x_ref[...]                                   # (TN, Dp) f32
    e = e_ref[...]                                   # (Kp, Dp) f32 (gather path)
    e2 = e2_ref[...]                                 # (1, Kp)  f32; padded rows = 1e30
    tn = x.shape[0]
    kp = e.shape[0]
    cnt_w = cnt_ref.shape[-1]

    # Distance matmul on the MXU (bf16 inputs by default, f32 accumulation).
    # Codebook is pre-transposed to (Dp, Kp) in the wrapper -> plain NN matmul.
    xe = jnp.dot(x.astype(edt_ref.dtype), edt_ref[...],
                 preferred_element_type=jnp.float32)          # (TN, Kp)

    if write_distances:
        x2 = jnp.sum(x * x, axis=1, keepdims=True)            # (TN, 1)
        d = x2 + e2 - 2.0 * xe
        dist_ref[...] = d
    else:
        # argmin is invariant to the per-row +||x||^2 term; skip it on the fast path.
        d = e2 - 2.0 * xe

    # argmin over the codebook axis (first occurrence, like torch.argmin).
    col = lax.broadcasted_iota(jnp.int32, (tn, kp), 1)
    dmin = jnp.min(d, axis=1, keepdims=True)
    idx = jnp.min(jnp.where(d <= dmin, col, kp), axis=1, keepdims=True)  # (TN,1) i32

    # One-hot stays in VMEM only (never written to HBM).
    enc = (col == idx).astype(jnp.float32)                    # (TN, Kp)
    if mask_rows:
        row = pl.program_id(0) * tn + lax.broadcasted_iota(jnp.int32, (tn, 1), 0)
        enc = enc * (row < n_valid).astype(jnp.float32)        # zero padded rows

    # quantized = encodings @ embedding (exact f32 row gather on the MXU).
    q = jnp.dot(enc, e, preferred_element_type=jnp.float32)   # (TN, Dp)
    q_ref[...] = q

    # Per-tile code counts with the per-tile SSE folded into the last (padded) lane.
    diff = q - x                                               # padded rows: 0 - 0 = 0
    sse = jnp.sum(jnp.sum(diff * diff, axis=1, keepdims=True),
                  axis=0, keepdims=True)                       # (1, 1)
    cnt_row = jnp.sum(enc, axis=0, keepdims=True)              # (1, Kp)
    if cnt_w > kp:                                             # K was a multiple of 128
        cnt_row = jnp.concatenate(
            [cnt_row, jnp.zeros((1, cnt_w - kp), jnp.float32)], axis=1)
    lane = lax.broadcasted_iota(jnp.int32, (1, cnt_w), 1)
    cnt_ref[0] = jnp.where(lane == cnt_w - 1, sse, cnt_row)    # (1, cnt_w)

    # Lane-dense index store: (TN,1) column -> (TN//128, 128) via a tiny selector
    # matmul.  The selector / gather constants are hoisted (resident inputs).
    scat = scatm_ref[...] * idx.astype(jnp.float32)            # (TN, 128)
    idx2d = jnp.dot(gath_ref[...], scat,
                    preferred_element_type=jnp.float32)        # (TN//128, 128)
    idx_ref[0] = idx2d.astype(jnp.int32)


def _round_up(x, m):
    return (x + m - 1) // m * m


def _vmem_capacity_bytes():
    """Per-core VMEM capacity; conservative 64 MiB (v7x) fallback."""
    try:
        cap = getattr(pltpu.get_tpu_info(), "vmem_capacity_bytes", None)
        if cap:
            return int(cap)
    except Exception:
        pass
    return 64 * 1024 * 1024


def _resident_spec(block_shape, index_map):
    """Single-buffered BlockSpec for grid-invariant (resident) operands."""
    try:
        return pl.BlockSpec(block_shape, index_map, pipeline_mode=pl.Buffered(1))
    except Exception:  # older jax without pipeline_mode/Buffered -> default buffering
        return pl.BlockSpec(block_shape, index_map)


@functools.partial(jax.jit,
                   static_argnames=("beta", "tile_n", "return_distances",
                                    "return_encodings", "use_bf16_distances"))
def vq_ema_forward(x_nchw, embedding, *, beta=0.25, tile_n=None,
                   return_distances=False, return_encodings=True,
                   use_bf16_distances=True):
    """Eval-mode forward of VectorQuantizerEMA. x_nchw: (B,C,H,W), embedding: (K,C)."""
    B, C, H, W = x_nchw.shape
    D = C
    K = embedding.shape[0]

    inputs_nhwc = jnp.transpose(x_nchw, (0, 2, 3, 1)).astype(jnp.float32)  # (B,H,W,D)
    flat = inputs_nhwc.reshape(-1, D)                                      # (N, D)
    N = flat.shape[0]

    # Lane-dense padded shapes.
    D_pad = _round_up(D, 128)
    K_pad = _round_up(K, 128)
    assert K_pad < (1 << 24), "f32 selector-matmul index relayout needs K_pad < 2^24"
    cnt_w = K_pad if K < K_pad else K_pad + 128   # count vector + 1 free lane for SSE
    dist_bytes = 2 if use_bf16_distances else 4

    # --- generation-aware VMEM budget & tile selection --------------------------
    vmem_cap = _vmem_capacity_bytes()                         # 128 MiB v5e/v6e, 64 MiB v7x
    vmem_limit = int(min(max(vmem_cap - 16 * 2**20, 32 * 2**20), 100 * 2**20))
    budget = int(0.6 * vmem_limit)

    def _ws_bytes(tn):
        g = tn // 128
        b = K_pad * D_pad * 4                 # f32 codebook (single-buffered)
        b += K_pad * D_pad * dist_bytes       # distance codebook (single-buffered)
        b += K_pad * 4                        # ||e||^2
        b += tn * 128 * 4 + g * tn * 4        # relayout constants
        b += 2 * tn * D_pad * 4               # x tile (double-buffered)
        b += 2 * tn * D_pad * 4               # quantized tile (double-buffered)
        if return_distances:
            b += 2 * tn * K_pad * 4           # distance output tile
        b += 4 * tn * K_pad * 4               # in-kernel temps (xe, d, col, enc)
        b += 2 * (g * 128 * 4 + cnt_w * 4)    # idx / cnt output tiles
        return b

    if tile_n is None:
        n_cap = max(_round_up(N, 128), 128)
        tile_n = 128
        for cand in (4096, 2048, 1024, 512, 256, 128):
            if cand <= n_cap and _ws_bytes(cand) <= budget:
                tile_n = cand
                break
    assert tile_n % 128 == 0

    grid = -(-N // tile_n)                    # pad N up instead of shrinking the tile
    N_pad = grid * tile_n
    mask_rows = (N_pad != N)
    sub = tile_n // 128                       # lane-dense index rows per tile

    # --- operand preparation -----------------------------------------------------
    x_pad = jnp.pad(flat, ((0, N_pad - N), (0, D_pad - D)))
    e_pad = jnp.pad(embedding.astype(jnp.float32), ((0, K_pad - K), (0, D_pad - D)))
    e_dist_t = jnp.transpose(e_pad).astype(                   # (D_pad, K_pad), cast+T once
        jnp.bfloat16 if use_bf16_distances else jnp.float32)
    # Hoisted ||e||^2; padded codebook rows get a huge norm so they never win argmin.
    e2 = jnp.sum(e_pad * e_pad, axis=1)
    e2 = jnp.where(jnp.arange(K_pad) < K, e2, jnp.float32(1e30))[None, :]  # (1, K_pad)

    # Hoisted index-relayout constants (depend only on tile_n).
    rows = np.arange(tile_n)
    scat_mask = jnp.asarray((rows[:, None] % 128 == np.arange(128)[None, :])
                            .astype(np.float32))              # (tile_n, 128)
    gath = jnp.asarray((rows[None, :] // 128 == np.arange(sub)[:, None])
                       .astype(np.float32))                   # (sub, tile_n)

    # --- pallas_call --------------------------------------------------------------
    out_shape, out_specs = [], []
    if return_distances:
        out_shape.append(jax.ShapeDtypeStruct((N_pad, K_pad), jnp.float32))
        out_specs.append(pl.BlockSpec((tile_n, K_pad), lambda i: (i, 0)))
    out_shape += [
        jax.ShapeDtypeStruct((N_pad, D_pad), jnp.float32),    # quantized (padded)
        jax.ShapeDtypeStruct((grid, sub, 128), jnp.int32),    # indices (lane-dense)
        jax.ShapeDtypeStruct((grid, 1, cnt_w), jnp.float32),  # counts (+ SSE in last lane)
    ]
    out_specs += [
        pl.BlockSpec((tile_n, D_pad), lambda i: (i, 0)),
        pl.BlockSpec((1, sub, 128), lambda i: (i, 0, 0)),
        pl.BlockSpec((1, 1, cnt_w), lambda i: (i, 0, 0)),
    ]

    results = pl.pallas_call(
        functools.partial(_vq_kernel, write_distances=return_distances,
                          mask_rows=mask_rows, n_valid=N),
        out_shape=tuple(out_shape),
        grid_spec=pltpu.PrefetchScalarGridSpec(
            num_scalar_prefetch=0,
            grid=(grid,),
            in_specs=[
                pl.BlockSpec((tile_n, D_pad), lambda i: (i, 0)),      # input tile
                _resident_spec((K_pad, D_pad), lambda i: (0, 0)),     # f32 codebook
                _resident_spec((D_pad, K_pad), lambda i: (0, 0)),     # bf16/f32 codebook^T
                _resident_spec((1, K_pad), lambda i: (0, 0)),         # ||e||^2
                _resident_spec((tile_n, 128), lambda i: (0, 0)),      # scat mask
                _resident_spec((sub, tile_n), lambda i: (0, 0)),      # gath matrix
            ],
            out_specs=tuple(out_specs),
        ),
        compiler_params=pltpu.CompilerParams(
            dimension_semantics=("parallel",),    # no cross-tile state -> megacore OK
            vmem_limit_bytes=vmem_limit,
        ),
    )(x_pad, e_pad, e_dist_t, e2, scat_mask, gath)

    if return_distances:
        dist_pad, q_pad, idx3, cnt3 = results
    else:
        q_pad, idx3, cnt3 = results

    # --- glue (small reductions / reshapes), matching the torch code --------------
    idx_flat = idx3.reshape(N_pad)[:N]
    stats = jnp.sum(cnt3, axis=(0, 1))                 # (cnt_w,)
    counts = stats[:K]                                  # per-code usage counts
    sse = stats[cnt_w - 1]                              # total sum of squared error

    e_latent_loss = sse / (N * D)                       # F.mse_loss (mean reduction)
    loss = beta * e_latent_loss

    # NOTE: the de-pad slice + NHWC->NCHW transpose below are extra HBM passes kept
    # only for module parity; take NHWC / padded-D directly if the consumer allows it.
    q_flat = q_pad[:N, :D]
    quantized_nhwc = q_flat.reshape(B, H, W, D)
    quantized_nhwc = inputs_nhwc + lax.stop_gradient(quantized_nhwc - inputs_nhwc)
    quantized_nchw = jnp.transpose(quantized_nhwc, (0, 3, 1, 2))

    avg_probs = counts / N
    perplexity = jnp.exp(-jnp.sum(avg_probs * jnp.log(avg_probs + 1e-10)))

    out = dict(
        loss=loss,
        quantized=quantized_nchw,
        encoding_indices=idx_flat[:, None],
        perplexity=perplexity,
    )
    if return_encodings:
        # Reconstructed from indices outside the kernel (never materialized in-kernel).
        out["encodings"] = jax.nn.one_hot(idx_flat, K, dtype=jnp.float32)
    if return_distances:
        out["distances"] = dist_pad[:N, :K]   # module-parity slice (opt-in path only)
    return out


def _reference(x_nchw, embedding, beta):
    """Pure-JAX reference mirroring the PyTorch forward (eval mode)."""
    B, C, H, W = x_nchw.shape
    inputs = jnp.transpose(x_nchw, (0, 2, 3, 1)).astype(jnp.float32)
    flat = inputs.reshape(-1, C)
    d = (jnp.sum(flat**2, axis=1, keepdims=True)
         + jnp.sum(embedding**2, axis=1)
         - 2.0 * flat @ embedding.T)
    idx = jnp.argmin(d, axis=1)
    enc = jax.nn.one_hot(idx, embedding.shape[0], dtype=jnp.float32)
    q = (enc @ embedding).reshape(inputs.shape)
    loss = beta * jnp.mean((q - inputs) ** 2)
    avg = jnp.mean(enc, axis=0)
    perp = jnp.exp(-jnp.sum(avg * jnp.log(avg + 1e-10)))
    return dict(loss=loss, quantized=jnp.transpose(q, (0, 3, 1, 2)),
                encodings=enc, encoding_indices=idx[:, None],
                perplexity=perp, distances=d)


if __name__ == "__main__":
    # Module hyperparameters (synthetic, deterministic init).
    num_embeddings = 8      # K
    embedding_dim = 4       # D  (== channels C of the conv feature map)
    beta = 0.25

    key = jax.random.PRNGKey(0)
    k_emb, k_x = jax.random.split(key)

    # nn.Embedding(num_embeddings, embedding_dim).weight.data.normal_()
    embedding = jax.random.normal(k_emb, (num_embeddings, embedding_dim), jnp.float32)
    # Input feature map in NCHW, as produced by the preceding conv encoder.
    x = jax.random.normal(k_x, (2, embedding_dim, 16, 16), jnp.float32)

    ref = _reference(x, embedding, beta)

    # 1) Exact-parity path: f32 distances, all module outputs returned.
    out = vq_ema_forward(x, embedding, beta=beta, use_bf16_distances=False,
                         return_distances=True, return_encodings=True)
    out = jax.tree_util.tree_map(jax.block_until_ready, out)
    np.testing.assert_allclose(out["distances"], ref["distances"], rtol=1e-5, atol=1e-5)
    np.testing.assert_array_equal(np.asarray(out["encoding_indices"]).ravel(),
                                  np.asarray(ref["encoding_indices"]).ravel())
    np.testing.assert_allclose(out["encodings"], ref["encodings"], atol=0)
    np.testing.assert_allclose(out["quantized"], ref["quantized"], rtol=1e-5, atol=1e-5)
    np.testing.assert_allclose(out["loss"], ref["loss"], rtol=1e-5, atol=1e-6)
    np.testing.assert_allclose(out["perplexity"], ref["perplexity"], rtol=1e-5, atol=1e-5)

    # 2) Row-padded multi-tile path (tile_n=384 -> grid=2, 256 dummy rows masked).
    padded = vq_ema_forward(x, embedding, beta=beta, tile_n=384,
                            use_bf16_distances=False,
                            return_distances=False, return_encodings=False)
    padded = jax.tree_util.tree_map(jax.block_until_ready, padded)
    np.testing.assert_array_equal(np.asarray(padded["encoding_indices"]).ravel(),
                                  np.asarray(ref["encoding_indices"]).ravel())
    np.testing.assert_allclose(padded["quantized"], ref["quantized"], rtol=1e-5, atol=1e-5)
    np.testing.assert_allclose(padded["loss"], ref["loss"], rtol=1e-5, atol=1e-6)
    np.testing.assert_allclose(padded["perplexity"], ref["perplexity"], rtol=1e-5, atol=1e-5)

    # 3) Default fast path: bf16 MXU distances, no (N,K) HBM outputs.  bf16 may flip
    #    argmin on near-ties, so use statistical / tolerance checks here.
    fast = vq_ema_forward(x, embedding, beta=beta)
    fast = jax.tree_util.tree_map(jax.block_until_ready, fast)
    match = np.mean(np.asarray(fast["encoding_indices"]).ravel()
                    == np.asarray(ref["encoding_indices"]).ravel())
    assert match >= 0.97, f"bf16 path index agreement too low: {match}"
    np.testing.assert_allclose(fast["loss"], ref["loss"], rtol=5e-2, atol=1e-4)
    np.testing.assert_allclose(fast["perplexity"], ref["perplexity"], rtol=5e-2)

    print("KERNEL_OK")
</pallas_src>

<mosaic_0001>
module attributes {stable_mosaic.version = 11 : i64} {
  func.func @_vq_kernel(%arg0: i32, %arg1: memref<512x128xf32, #tpu.memory_space<vmem>>, %arg2: memref<128x128xf32, #tpu.memory_space<vmem>>, %arg3: memref<128x128xf32, #tpu.memory_space<vmem>>, %arg4: memref<1x128xf32, #tpu.memory_space<vmem>>, %arg5: memref<512x128xf32, #tpu.memory_space<vmem>>, %arg6: memref<4x512xf32, #tpu.memory_space<vmem>>, %arg7: memref<512x128xf32, #tpu.memory_space<vmem>>, %arg8: memref<512x128xf32, #tpu.memory_space<vmem>>, %arg9: memref<1x4x128xi32, #tpu.memory_space<vmem>>, %arg10: memref<1x1x128xf32, #tpu.memory_space<vmem>>) attributes {dimension_semantics = [#tpu.dimension_semantics<parallel>], iteration_bounds = array<i64: 1>, scalar_prefetch = 0 : i64, scratch_operands = 0 : i64, tpu.core_type = #tpu.core_type<tc>, window_params = [{transform_indices = @transform_0, window_bounds = array<i64: 512, 128>}, {pipeline_mode = #tpu.pipeline_mode<synchronous>, transform_indices = @transform_1, window_bounds = array<i64: 128, 128>}, {pipeline_mode = #tpu.pipeline_mode<synchronous>, transform_indices = @transform_2, window_bounds = array<i64: 128, 128>}, {pipeline_mode = #tpu.pipeline_mode<synchronous>, transform_indices = @transform_3, window_bounds = array<i64: 1, 128>}, {pipeline_mode = #tpu.pipeline_mode<synchronous>, transform_indices = @transform_4, window_bounds = array<i64: 512, 128>}, {pipeline_mode = #tpu.pipeline_mode<synchronous>, transform_indices = @transform_5, window_bounds = array<i64: 4, 512>}, {transform_indices = @transform_6, window_bounds = array<i64: 512, 128>}, {transform_indices = @transform_7, window_bounds = array<i64: 512, 128>}, {transform_indices = @transform_8, window_bounds = array<i64: 1, 4, 128>}, {transform_indices = @transform_9, window_bounds = array<i64: 1, 1, 128>}]} {
    %c0 = arith.constant 0 : index
    %c0_0 = arith.constant 0 : index
    %0 = vector.load %arg1[%c0, %c0_0] : memref<512x128xf32, #tpu.memory_space<vmem>>, vector<512x128xf32>
    %c0_1 = arith.constant 0 : index
    %c0_2 = arith.constant 0 : index
    %1 = vector.load %arg2[%c0_1, %c0_2] : memref<128x128xf32, #tpu.memory_space<vmem>>, vector<128x128xf32>
    %c0_3 = arith.constant 0 : index
    %c0_4 = arith.constant 0 : index
    %2 = vector.load %arg4[%c0_3, %c0_4] : memref<1x128xf32, #tpu.memory_space<vmem>>, vector<1x128xf32>
    %c0_5 = arith.constant 0 : index
    %c0_6 = arith.constant 0 : index
    %3 = vector.load %arg3[%c0_5, %c0_6] : memref<128x128xf32, #tpu.memory_space<vmem>>, vector<128x128xf32>
    %cst = arith.constant dense<0.000000e+00> : vector<512x128xf32>
    %4 = tpu.matmul %0, %3, %cst {dimension_numbers = #tpu.dot_dimension_numbers<[1], [0], [0], [1], [0, 0, 1, 1], [], []>} : vector<512x128xf32>, vector<128x128xf32>, vector<512x128xf32> -> vector<512x128xf32>
    %5 = arith.mulf %0, %0 : vector<512x128xf32>
    %cst_7 = arith.constant dense<0.000000e+00> : vector<512xf32>
    %6 = vector.multi_reduction <add>, %5, %cst_7 [1] : vector<512x128xf32> to vector<512xf32>
    %7 = vector.shape_cast %6 : vector<512xf32> to vector<512x1xf32>
    %8 = vector.broadcast %7 : vector<512x1xf32> to vector<512x128xf32>
    %9 = vector.broadcast %2 : vector<1x128xf32> to vector<512x128xf32>
    %10 = arith.addf %8, %9 : vector<512x128xf32>
    %cst_8 = arith.constant 2.000000e+00 : f32
    %11 = vector.broadcast %cst_8 : f32 to vector<512x128xf32>
    %12 = arith.mulf %11, %4 : vector<512x128xf32>
    %13 = arith.subf %10, %12 : vector<512x128xf32>
    %c0_9 = arith.constant 0 : index
    %c0_10 = arith.constant 0 : index
    %14 = vector.load %arg7[%c0_9, %c0_10] : memref<512x128xf32, #tpu.memory_space<vmem>>, vector<512x128xf32>
    tpu.vector_store %arg7[%c0_9, %c0_10], %13 {strides = array<i32>} : memref<512x128xf32, #tpu.memory_space<vmem>>, vector<512x128xf32>,
    %15 = tpu.iota {dimensions = array<i32: 1>} : vector<512x128xi32>
    %cst_11 = arith.constant dense<0x7F800000> : vector<512xf32>
    %16 = vector.multi_reduction <minimumf>, %13, %cst_11 [1] : vector<512x128xf32> to vector<512xf32>
    %17 = vector.shape_cast %16 : vector<512xf32> to vector<512x1xf32>
    %18 = vector.broadcast %17 : vector<512x1xf32> to vector<512x128xf32>
    %19 = arith.cmpf ole, %13, %18 : vector<512x128xf32>
    %c128_i32 = arith.constant 128 : i32
    %20 = vector.broadcast %c128_i32 : i32 to vector<512x128xi32>
    %21 = arith.select %19, %15, %20 : vector<512x128xi1>, vector<512x128xi32>
    %cst_12 = arith.constant dense<2147483647> : vector<512xi32>
    %22 = vector.multi_reduction <minsi>, %21, %cst_12 [1] : vector<512x128xi32> to vector<512xi32>
    %23 = vector.shape_cast %22 : vector<512xi32> to vector<512x1xi32>
    %24 = vector.broadcast %23 : vector<512x1xi32> to vector<512x128xi32>
    %25 = arith.cmpi eq, %15, %24 : vector<512x128xi32>
    %26 = arith.extui %25 : vector<512x128xi1> to vector<512x128xi32>
    %27 = arith.sitofp %26 : vector<512x128xi32> to vector<512x128xf32>
    %cst_13 = arith.constant dense<0.000000e+00> : vector<512x128xf32>
    %28 = tpu.matmul %27, %1, %cst_13 {dimension_numbers = #tpu.dot_dimension_numbers<[1], [0], [0], [1], [0, 0, 1, 1], [], []>} : vector<512x128xf32>, vector<128x128xf32>, vector<512x128xf32> -> vector<512x128xf32>
    %c0_14 = arith.constant 0 : index
    %c0_15 = arith.constant 0 : index
    %29 = vector.load %arg8[%c0_14, %c0_15] : memref<512x128xf32, #tpu.memory_space<vmem>>, vector<512x128xf32>
    tpu.vector_store %arg8[%c0_14, %c0_15], %28 {strides = array<i32>} : memref<512x128xf32, #tpu.memory_space<vmem>>, vector<512x128xf32>,
    %30 = arith.subf %28, %0 : vector<512x128xf32>
    %31 = arith.mulf %30, %30 : vector<512x128xf32>
    %cst_16 = arith.constant dense<0.000000e+00> : vector<512xf32>
    %32 = vector.multi_reduction <add>, %31, %cst_16 [1] : vector<512x128xf32> to vector<512xf32>
    %33 = vector.shape_cast %32 : vector<512xf32> to vector<512x1xf32>
    %cst_17 = arith.constant dense<0.000000e+00> : vector<1xf32>
    %34 = vector.multi_reduction <add>, %33, %cst_17 [0] : vector<512x1xf32> to vector<1xf32>
    %35 = vector.shape_cast %34 : vector<1xf32> to vector<1x1xf32>
    %cst_18 = arith.constant dense<0.000000e+00> : vector<128xf32>
    %36 = vector.multi_reduction <add>, %27, %cst_18 [0] : vector<512x128xf32> to vector<128xf32>
    %37 = vector.shape_cast %36 : vector<128xf32> to vector<1x128xf32>
    %38 = tpu.iota {dimensions = array<i32: 1>} : vector<1x128xi32>
    %c127_i32 = arith.constant 127 : i32
    %39 = vector.broadcast %c127_i32 : i32 to vector<1x128xi32>
    %40 = arith.cmpi eq, %38, %39 : vector<1x128xi32>
    %41 = vector.shape_cast %35 : vector<1x1xf32> to vector<1x1xf32>
    %42 = vector.broadcast %41 : vector<1x1xf32> to vector<1x128xf32>
    %43 = arith.select %40, %42, %37 : vector<1x128xi1>, vector<1x128xf32>
    %c0_19 = arith.constant 0 : index
    %c0_20 = arith.constant 0 : index
    %c0_21 = arith.constant 0 : index
    %44 = vector.load %arg10[%c0_19, %c0_20, %c0_21] : memref<1x1x128xf32, #tpu.memory_space<vmem>>, vector<1x1x128xf32>
    %45 = vector.shape_cast %44 : vector<1x1x128xf32> to vector<1x128xf32>
    %46 = vector.shape_cast %43 : vector<1x128xf32> to vector<1x1x128xf32>
    tpu.vector_store %arg10[%c0_19, %c0_20, %c0_21], %46 {strides = array<i32>} : memref<1x1x128xf32, #tpu.memory_space<vmem>>, vector<1x1x128xf32>,
    %c0_22 = arith.constant 0 : index
    %c0_23 = arith.constant 0 : index
    %47 = vector.load %arg5[%c0_22, %c0_23] : memref<512x128xf32, #tpu.memory_space<vmem>>, vector<512x128xf32>
    %48 = arith.sitofp %23 : vector<512x1xi32> to vector<512x1xf32>
    %49 = vector.broadcast %48 : vector<512x1xf32> to vector<512x128xf32>
    %50 = arith.mulf %47, %49 : vector<512x128xf32>
    %c0_24 = arith.constant 0 : index
    %c0_25 = arith.constant 0 : index
    %51 = vector.load %arg6[%c0_24, %c0_25] : memref<4x512xf32, #tpu.memory_space<vmem>>, vector<4x512xf32>
    %cst_26 = arith.constant dense<0.000000e+00> : vector<4x128xf32>
    %52 = tpu.matmul %51, %50, %cst_26 {dimension_numbers = #tpu.dot_dimension_numbers<[1], [0], [0], [1], [0, 0, 1, 1], [], []>} : vector<4x512xf32>, vector<512x128xf32>, vector<4x128xf32> -> vector<4x128xf32>
    %53 = arith.fptosi %52 : vector<4x128xf32> to vector<4x128xi32>
    %c0_27 = arith.constant 0 : index
    %c0_28 = arith.constant 0 : index
    %c0_29 = arith.constant 0 : index
    %54 = vector.load %arg9[%c0_27, %c0_28, %c0_29] : memref<1x4x128xi32, #tpu.memory_space<vmem>>, vector<1x4x128xi32>
    %55 = vector.shape_cast %54 : vector<1x4x128xi32> to vector<4x128xi32>
    %56 = vector.shape_cast %53 : vector<4x128xi32> to vector<1x4x128xi32>
    tpu.vector_store %arg9[%c0_27, %c0_28, %c0_29], %56 {strides = array<i32>} : memref<1x4x128xi32, #tpu.memory_space<vmem>>, vector<1x4x128xi32>,
    return
  }
  func.func @transform_0(%arg0: i32) -> (i32, i32) {
    %c0_i32 = arith.constant 0 : i32
    %c0_i32_0 = arith.constant 0 : i32
    return %arg0, %c0_i32 : i32, i32
  }
  func.func @transform_1(%arg0: i32) -> (i32, i32) {
    %c0_i32 = arith.constant 0 : i32
    %c0_i32_0 = arith.constant 0 : i32
    %c0_i32_1 = arith.constant 0 : i32
    return %c0_i32, %c0_i32_0 : i32, i32
  }
  func.func @transform_2(%arg0: i32) -> (i32, i32) {
    %c0_i32 = arith.constant 0 : i32
    %c0_i32_0 = arith.constant 0 : i32
    %c0_i32_1 = arith.constant 0 : i32
    return %c0_i32, %c0_i32_0 : i32, i32
  }
  func.func @transform_3(%arg0: i32) -> (i32, i32) {
    %c0_i32 = arith.constant 0 : i32
    %c0_i32_0 = arith.constant 0 : i32
    %c0_i32_1 = arith.constant 0 : i32
    return %c0_i32, %c0_i32_0 : i32, i32
  }
  func.func @transform_4(%arg0: i32) -> (i32, i32) {
    %c0_i32 = arith.constant 0 : i32
    %c0_i32_0 = arith.constant 0 : i32
    %c0_i32_1 = arith.constant 0 : i32
    return %c0_i32, %c0_i32_0 : i32, i32
  }
  func.func @transform_5(%arg0: i32) -> (i32, i32) {
    %c0_i32 = arith.constant 0 : i32
    %c0_i32_0 = arith.constant 0 : i32
    %c0_i32_1 = arith.constant 0 : i32
    return %c0_i32, %c0_i32_0 : i32, i32
  }
  func.func @transform_6(%arg0: i32) -> (i32, i32) {
    %c0_i32 = arith.constant 0 : i32
    %c0_i32_0 = arith.constant 0 : i32
    return %arg0, %c0_i32 : i32, i32
  }
  func.func @transform_7(%arg0: i32) -> (i32, i32) {
    %c0_i32 = arith.constant 0 : i32
    %c0_i32_0 = arith.constant 0 : i32
    return %arg0, %c0_i32 : i32, i32
  }
  func.func @transform_8(%arg0: i32) -> (i32, i32, i32) {
    %c0_i32 = arith.constant 0 : i32
    %c0_i32_0 = arith.constant 0 : i32
    %c0_i32_1 = arith.constant 0 : i32
    return %arg0, %c0_i32, %c0_i32_0 : i32, i32, i32
  }
  func.func @transform_9(%arg0: i32) -> (i32, i32, i32) {
    %c0_i32 = arith.constant 0 : i32
    %c0_i32_0 = arith.constant 0 : i32
    %c0_i32_1 = arith.constant 0 : i32
    return %arg0, %c0_i32, %c0_i32_0 : i32, i32, i32
  }
}

</mosaic_0001>

<llo_original>
// kernel: vq_ema_forward.1
$region0: #{vq_ema_forward.1}
  #allocation0 [shape = 'u32[]', space=smem, size = 0x4, offset = 0x4, fixed_abs, tag = 'smem constant byte address 0x4 - core index']
  #allocation1 [shape = 'u32[144,128]{1,0:T(1,128)}', space=vmem, size = 0x12000, scoped, tag = 'internal scratch']
  %s0 = inlined_call_operand.vmem [shape: f32[512,128], index: 0, kind: input, shape index: {}]
  %s1 = inlined_call_operand.vmem [shape: f32[128,128], index: 1, kind: input, shape index: {}]
  %s2 = inlined_call_operand.vmem [shape: f32[128,128], index: 2, kind: input, shape index: {}]
  %s3 = inlined_call_operand.vmem [shape: f32[1,128], index: 3, kind: input, shape index: {}]
  %s4 = inlined_call_operand.vmem [shape: f32[512,128], index: 4, kind: input, shape index: {}]
  %s5 = inlined_call_operand.vmem [shape: f32[4,512], index: 5, kind: input, shape index: {}]
  %s6 = inlined_call_operand.vmem [shape: f32[512,128], index: 6, kind: output, shape index: {0}]
  %s7 = inlined_call_operand.vmem [shape: f32[512,128], index: 7, kind: output, shape index: {1}]
  %s8 = inlined_call_operand.vmem [shape: s32[1,4,128], index: 8, kind: output, shape index: {2}]
  %s9 = inlined_call_operand.vmem [shape: f32[1,1,128], index: 9, kind: output, shape index: {3}]
  %10 = xla_tuple %s6, %s7, %s8, %s9
  %s11 = sld [smem:[#allocation0]]
  $region58: #{vq_ema_forward.1} parent=0
    _
  %s13 = ssub.s32 1, %s11
  %s14 = scalar_select 0, %s13, %s11
  // Predicated region
  $region2: #{vq_ema_forward.1} parent=0 // pred_check
    _
  $region3: #{vq_ema_forward.1} parent=0 // pred_check_branch
    %16 = sbr.rel (0) target = $region5
  $region4: #{vq_ema_forward.1} parent=0 // pred_region
    _
  $region5: #{vq_ema_forward.1} parent=0 // pred_fallthru
    _
  // Predicated region
  $region6: #{vq_ema_forward.1} parent=0 // pred_check
    _
  $region7: #{vq_ema_forward.1} parent=0 // pred_check_branch
    %18 = sbr.rel (0) target = $region9
  $region8: #{vq_ema_forward.1} parent=0 // pred_region
    _
  $region9: #{vq_ema_forward.1} parent=0 // pred_fallthru
    _
  // Predicated region
  $region10: #{vq_ema_forward.1} parent=0 // pred_check
    _
  $region11: #{vq_ema_forward.1} parent=0 // pred_check_branch
    %20 = sbr.rel (0) target = $region13
  $region12: #{vq_ema_forward.1} parent=0 // pred_region
    _
  $region13: #{vq_ema_forward.1} parent=0 // pred_fallthru
    _
  // Predicated region
  $region14: #{vq_ema_forward.1} parent=0 // pred_check
    _
  $region15: #{vq_ema_forward.1} parent=0 // pred_check_branch
    %22 = sbr.rel (0) target = $region17
  $region16: #{vq_ema_forward.1} parent=0 // pred_region
    _
  $region17: #{vq_ema_forward.1} parent=0 // pred_fallthru
    _
  // Predicated region
  $region18: #{vq_ema_forward.1} parent=0 // pred_check
    _
  $region19: #{vq_ema_forward.1} parent=0 // pred_check_branch
    %24 = sbr.rel (0) target = $region21
  $region20: #{vq_ema_forward.1} parent=0 // pred_region
    _
  $region21: #{vq_ema_forward.1} parent=0 // pred_fallthru
    _
  // Predicated region
  $region22: #{vq_ema_forward.1} parent=0 // pred_check
    _
  $region23: #{vq_ema_forward.1} parent=0 // pred_check_branch
    %26 = sbr.rel (0) target = $region25
  $region24: #{vq_ema_forward.1} parent=0 // pred_region
    _
  $region25: #{vq_ema_forward.1} parent=0 // pred_fallthru
    _
  %v27 = vld [vmem:[%s0] sm:$0xff]
  %v28 = vld [vmem:[%s0 + $0x8] sm:$0xff]
  %v29 = vld [vmem:[%s0 + $0x10] sm:$0xff]
  %v30 = vld [vmem:[%s0 + $0x18] sm:$0xff]
  %v31 = vld [vmem:[%s0 + $0x20] sm:$0xff]
  %v32 = vld [vmem:[%s0 + $0x28] sm:$0xff]
  %v33 = vld [vmem:[%s0 + $0x30] sm:$0xff]
  %v34 = vld [vmem:[%s0 + $0x38] sm:$0xff]
  %v35 = vld [vmem:[%s0 + $0x40] sm:$0xff]
  %v36 = vld [vmem:[%s0 + $0x48] sm:$0xff]
  %v37 = vld [vmem:[%s0 + $0x50] sm:$0xff]
  %v38 = vld [vmem:[%s0 + $0x58] sm:$0xff]
  %v39 = vld [vmem:[%s0 + $0x60] sm:$0xff]
  %v40 = vld [vmem:[%s0 + $0x68] sm:$0xff]
  %v41 = vld [vmem:[%s0 + $0x70] sm:$0xff]
  %v42 = vld [vmem:[%s0 + $0x78] sm:$0xff]
  %v43 = vld [vmem:[%s0 + $0x80] sm:$0xff]
  %v44 = vld [vmem:[%s0 + $0x88] sm:$0xff]
  %v45 = vld [vmem:[%s0 + $0x90] sm:$0xff]
  %v46 = vld [vmem:[%s0 + $0x98] sm:$0xff]
  %v47 = vld [vmem:[%s0 + $0xa0] sm:$0xff]
  %v48 = vld [vmem:[%s0 + $0xa8] sm:$0xff]
  %v49 = vld [vmem:[%s0 + $0xb0] sm:$0xff]
  %v50 = vld [vmem:[%s0 + $0xb8] sm:$0xff]
  %v51 = vld [vmem:[%s0 + $0xc0] sm:$0xff]
  %v52 = vld [vmem:[%s0 + $0xc8] sm:$0xff]
  %v53 = vld [vmem:[%s0 + $0xd0] sm:$0xff]
  %v54 = vld [vmem:[%s0 + $0xd8] sm:$0xff]
  %v55 = vld [vmem:[%s0 + $0xe0] sm:$0xff]
  %v56 = vld [vmem:[%s0 + $0xe8] sm:$0xff]
  %v57 = vld [vmem:[%s0 + $0xf0] sm:$0xff]
  %v58 = vld [vmem:[%s0 + $0xf8] sm:$0xff]
  %v59 = vld [vmem:[%s0 + $0x100] sm:$0xff]
  %v60 = vld [vmem:[%s0 + $0x108] sm:$0xff]
  %v61 = vld [vmem:[%s0 + $0x110] sm:$0xff]
  %v62 = vld [vmem:[%s0 + $0x118] sm:$0xff]
  %v63 = vld [vmem:[%s0 + $0x120] sm:$0xff]
  %v64 = vld [vmem:[%s0 + $0x128] sm:$0xff]
  %v65 = vld [vmem:[%s0 + $0x130] sm:$0xff]
  %v66 = vld [vmem:[%s0 + $0x138] sm:$0xff]
  %v67 = vld [vmem:[%s0 + $0x140] sm:$0xff]
  %v68 = vld [vmem:[%s0 + $0x148] sm:$0xff]
  %v69 = vld [vmem:[%s0 + $0x150] sm:$0xff]
  %v70 = vld [vmem:[%s0 + $0x158] sm:$0xff]
  %v71 = vld [vmem:[%s0 + $0x160] sm:$0xff]
  %v72 = vld [vmem:[%s0 + $0x168] sm:$0xff]
  %v73 = vld [vmem:[%s0 + $0x170] sm:$0xff]
  %v74 = vld [vmem:[%s0 + $0x178] sm:$0xff]
  %v75 = vld [vmem:[%s0 + $0x180] sm:$0xff]
  %v76 = vld [vmem:[%s0 + $0x188] sm:$0xff]
  %v77 = vld [vmem:[%s0 + $0x190] sm:$0xff]
  %v78 = vld [vmem:[%s0 + $0x198] sm:$0xff]
  %v79 = vld [vmem:[%s0 + $0x1a0] sm:$0xff]
  %v80 = vld [vmem:[%s0 + $0x1a8] sm:$0xff]
  %v81 = vld [vmem:[%s0 + $0x1b0] sm:$0xff]
  %v82 = vld [vmem:[%s0 + $0x1b8] sm:$0xff]
  %v83 = vld [vmem:[%s0 + $0x1c0] sm:$0xff]
  %v84 = vld [vmem:[%s0 + $0x1c8] sm:$0xff]
  %v85 = vld [vmem:[%s0 + $0x1d0] sm:$0xff]
  %v86 = vld [vmem:[%s0 + $0x1d8] sm:$0xff]
  %v87 = vld [vmem:[%s0 + $0x1e0] sm:$0xff]
  %v88 = vld [vmem:[%s0 + $0x1e8] sm:$0xff]
  %v89 = vld [vmem:[%s0 + $0x1f0] sm:$0xff]
  %v90 = vld [vmem:[%s0 + $0x1f8] sm:$0xff]
  %v91 = vld [vmem:[%s1] sm:$0xff]
  %v92 = vld [vmem:[%s1 + $0x8] sm:$0xff]
  %v93 = vld [vmem:[%s1 + $0x10] sm:$0xff]
  %v94 = vld [vmem:[%s1 + $0x18] sm:$0xff]
  %v95 = vld [vmem:[%s1 + $0x20] sm:$0xff]
  %v96 = vld [vmem:[%s1 + $0x28] sm:$0xff]
  %v97 = vld [vmem:[%s1 + $0x30] sm:$0xff]
  %v98 = vld [vmem:[%s1 + $0x38] sm:$0xff]
  %v99 = vld [vmem:[%s1 + $0x40] sm:$0xff]
  %v100 = vld [vmem:[%s1 + $0x48] sm:$0xff]
  %v101 = vld [vmem:[%s1 + $0x50] sm:$0xff]
  %v102 = vld [vmem:[%s1 + $0x58] sm:$0xff]
  %v103 = vld [vmem:[%s1 + $0x60] sm:$0xff]
  %v104 = vld [vmem:[%s1 + $0x68] sm:$0xff]
  %v105 = vld [vmem:[%s1 + $0x70] sm:$0xff]
  %v106 = vld [vmem:[%s1 + $0x78] sm:$0xff]
  %v107 = vld [vmem:[%s3] sm:$0x1]
  %v108 = vld [vmem:[%s2] sm:$0xff]
  %v109 = vld [vmem:[%s2 + $0x8] sm:$0xff]
  %v110 = vld [vmem:[%s2 + $0x10] sm:$0xff]
  %v111 = vld [vmem:[%s2 + $0x18] sm:$0xff]
  %v112 = vld [vmem:[%s2 + $0x20] sm:$0xff]
  %v113 = vld [vmem:[%s2 + $0x28] sm:$0xff]
  %v114 = vld [vmem:[%s2 + $0x30] sm:$0xff]
  %v115 = vld [vmem:[%s2 + $0x38] sm:$0xff]
  %v116 = vld [vmem:[%s2 + $0x40] sm:$0xff]
  %v117 = vld [vmem:[%s2 + $0x48] sm:$0xff]
  %v118 = vld [vmem:[%s2 + $0x50] sm:$0xff]
  %v119 = vld [vmem:[%s2 + $0x58] sm:$0xff]
  %v120 = vld [vmem:[%s2 + $0x60] sm:$0xff]
  %v121 = vld [vmem:[%s2 + $0x68] sm:$0xff]
  %v122 = vld [vmem:[%s2 + $0x70] sm:$0xff]
  %v123 = vld [vmem:[%s2 + $0x78] sm:$0xff]
  %124 = vmatprep.subr.mxu0 0.0
  %125 = vmatpush1.msra.mxu0 %v108
  %126 = vmatprep.subr.mxu0 0.0
  %127 = vmatpush1.msra.mxu0 %v109
  %128 = vmatprep.subr.mxu0 0.0
  %129 = vmatpush1.msra.mxu0 %v110
  %130 = vmatprep.subr.mxu0 0.0
  %131 = vmatpush1.msra.mxu0 %v111
  %132 = vmatprep.subr.mxu0 0.0
  %133 = vmatpush1.msra.mxu0 %v112
  %134 = vmatprep.subr.mxu0 0.0
  %135 = vmatpush1.msra.mxu0 %v113
  %136 = vmatprep.subr.mxu0 0.0
  %137 = vmatpush1.msra.mxu0 %v114
  %138 = vmatprep.subr.mxu0 0.0
  %139 = vmatpush1.msra.mxu0 %v115
  %140 = vmatprep.subr.mxu0 0.0
  %141 = vmatpush1.msra.mxu0 %v116
  %142 = vmatprep.subr.mxu0 0.0
  %143 = vmatpush1.msra.mxu0 %v117
  %144 = vmatprep.subr.mxu0 0.0
  %145 = vmatpush1.msra.mxu0 %v118
  %146 = vmatprep.subr.mxu0 0.0
  %147 = vmatpush1.msra.mxu0 %v119
  %148 = vmatprep.subr.mxu0 0.0
  %149 = vmatpush1.msra.mxu0 %v120
  %150 = vmatprep.subr.mxu0 0.0
  %151 = vmatpush1.msra.mxu0 %v121
  %152 = vmatprep.subr.mxu0 0.0
  %153 = vmatpush1.msra.mxu0 %v122
  %154 = vmatprep.subr.mxu0 0.0
  %155 = vmatpush1.msra.mxu0 %v123
  %156 = vmatprep.subr.mxu0 0.0
  %157 = vmatpush1.msra.mxu0 0.0
  %158 = vmatprep.subr.mxu0 0.0
  %159 = vmatpush1.msra.mxu0 0.0
  %160 = vmatprep.subr.mxu0 0.0
  %161 = vmatpush1.msra.mxu0 0.0
  %162 = vmatprep.subr.mxu0 0.0
  %163 = vmatpush1.msra.mxu0 0.0
  %164 = vmatprep.subr.mxu0 0.0
  %165 = vmatpush1.msra.mxu0 0.0
  %166 = vmatprep.subr.mxu0 0.0
  %167 = vmatpush1.msra.mxu0 0.0
  %168 = vmatprep.subr.mxu0 0.0
  %169 = vmatpush1.msra.mxu0 0.0
  %170 = vmatprep.subr.mxu0 0.0
  %171 = vmatpush1.msra.mxu0 0.0
  %172 = vmatprep.subr.mxu0 0.0
  %173 = vmatpush1.msra.mxu0 0.0
  %174 = vmatprep.subr.mxu0 0.0
  %175 = vmatpush1.msra.mxu0 0.0
  %176 = vmatprep.subr.mxu0 0.0
  %177 = vmatpush1.msra.mxu0 0.0
  %178 = vmatprep.subr.mxu0 0.0
  %179 = vmatpush1.msra.mxu0 0.0
  %180 = vmatprep.subr.mxu0 0.0
  %181 = vmatpush1.msra.mxu0 0.0
  %182 = vmatprep.subr.mxu0 0.0
  %183 = vmatpush1.msra.mxu0 0.0
  %184 = vmatprep.subr.mxu0 0.0
  %185 = vmatpush1.msra.mxu0 0.0
  %186 = vmatprep.subr.mxu0 0.0
  %187 = vmatpush1.msra.mxu0 0.0
  %188 = vmatprep.mubr.f32.mxu0 0.0
  %189 = vmatmul.mubr.f32.gmra.mrb[0].mxu0 %v27
  %v190 = vpop.f32.mrb[0].mxu0
  %v191 = vadd.f32 0.0, %v190
  %v192 = vpop.f32.mrb[0].mxu0
  %193 = vmatprep.mubr.f32.mxu0 0.0
  %194 = vmatmul.mubr.f32.gmra.mrb[0].mxu0 %v28
  %v195 = vpop.f32.mrb[0].mxu0
  %v196 = vadd.f32 0.0, %v195
  %v197 = vpop.f32.mrb[0].mxu0
  %198 = vmatprep.mubr.f32.mxu0 0.0
  %199 = vmatmul.mubr.f32.gmra.mrb[0].mxu0 %v29
  %v200 = vpop.f32.mrb[0].mxu0
  %v201 = vadd.f32 0.0, %v200
  %v202 = vpop.f32.mrb[0].mxu0
  %203 = vmatprep.mubr.f32.mxu0 0.0
  %204 = vmatmul.mubr.f32.gmra.mrb[0].mxu0 %v30
  %v205 = vpop.f32.mrb[0].mxu0
  %v206 = vadd.f32 0.0, %v205
  %v207 = vpop.f32.mrb[0].mxu0
  %208 = vmatprep.mubr.f32.mxu0 0.0
  %209 = vmatmul.mubr.f32.gmra.mrb[0].mxu0 %v31
  %v210 = vpop.f32.mrb[0].mxu0
  %v211 = vadd.f32 0.0, %v210
  %v212 = vpop.f32.mrb[0].mxu0
  %213 = vmatprep.mubr.f32.mxu0 0.0
  %214 = vmatmul.mubr.f32.gmra.mrb[0].mxu0 %v32
  %v215 = vpop.f32.mrb[0].mxu0
  %v216 = vadd.f32 0.0, %v215
  %v217 = vpop.f32.mrb[0].mxu0
  %218 = vmatprep.mubr.f32.mxu0 0.0
  %219 = vmatmul.mubr.f32.gmra.mrb[0].mxu0 %v33
  %v220 = vpop.f32.mrb[0].mxu0
  %v221 = vadd.f32 0.0, %v220
  %v222 = vpop.f32.mrb[0].mxu0
  %223 = vmatprep.mubr.f32.mxu0 0.0
  %224 = vmatmul.mubr.f32.gmra.mrb[0].mxu0 %v34
  %v225 = vpop.f32.mrb[0].mxu0
  %v226 = vadd.f32 0.0, %v225
  %v227 = vpop.f32.mrb[0].mxu0
  %228 = vmatprep.mubr.f32.mxu0 0.0
  %229 = vmatmul.mubr.f32.gmra.mrb[0].mxu0 %v35
  %v230 = vpop.f32.mrb[0].mxu0
  %v231 = vadd.f32 0.0, %v230
  %v232 = vpop.f32.mrb[0].mxu0
  %233 = vmatprep.mubr.f32.mxu0 0.0
  %234 = vmatmul.mubr.f32.gmra.mrb[0].mxu0 %v36
  %v235 = vpop.f32.mrb[0].mxu0
  %v236 = vadd.f32 0.0, %v235
  %v237 = vpop.f32.mrb[0].mxu0
  %238 = vmatprep.mubr.f32.mxu0 0.0
  %239 = vmatmul.mubr.f32.gmra.mrb[0].mxu0 %v37
  %v240 = vpop.f32.mrb[0].mxu0
  %v241 = vadd.f32 0.0, %v240
  %v242 = vpop.f32.mrb[0].mxu0
  %243 = vmatprep.mubr.f32.mxu0 0.0
  %244 = vmatmul.mubr.f32.gmra.mrb[0].mxu0 %v38
  %v245 = vpop.f32.mrb[0].mxu0
  %v246 = vadd.f32 0.0, %v245
  %v247 = vpop.f32.mrb[0].mxu0
  %248 = vmatprep.mubr.f32.mxu0 0.0
  %249 = vmatmul.mubr.f32.gmra.mrb[0].mxu0 %v39
  %v250 = vpop.f32.mrb[0].mxu0
  %v251 = vadd.f32 0.0, %v250
  %v252 = vpop.f32.mrb[0].mxu0
  %253 = vmatprep.mubr.f32.mxu0 0.0
  %254 = vmatmul.mubr.f32.gmra.mrb[0].mxu0 %v40
  %v255 = vpop.f32.mrb[0].mxu0
  %v256 = vadd.f32 0.0, %v255
  %v257 = vpop.f32.mrb[0].mxu0
  %258 = vmatprep.mubr.f32.mxu0 0.0
  %259 = vmatmul.mubr.f32.gmra.mrb[0].mxu0 %v41
  %v260 = vpop.f32.mrb[0].mxu0
  %v261 = vadd.f32 0.0, %v260
  %v262 = vpop.f32.mrb[0].mxu0
  %263 = vmatprep.mubr.f32.mxu0 0.0
  %264 = vmatmul.mubr.f32.gmra.mrb[0].mxu0 %v42
  %v265 = vpop.f32.mrb[0].mxu0
  %v266 = vadd.f32 0.0, %v265
  %v267 = vpop.f32.mrb[0].mxu0
  %268 = vmatprep.mubr.f32.mxu0 0.0
  %269 = vmatmul.mubr.f32.gmra.mrb[0].mxu0 %v43
  %v270 = vpop.f32.mrb[0].mxu0
  %v271 = vadd.f32 0.0, %v270
  %v272 = vpop.f32.mrb[0].mxu0
  %273 = vmatprep.mubr.f32.mxu0 0.0
  %274 = vmatmul.mubr.f32.gmra.mrb[0].mxu0 %v44
  %v275 = vpop.f32.mrb[0].mxu0
  %v276 = vadd.f32 0.0, %v275
  %v277 = vpop.f32.mrb[0].mxu0
  %278 = vmatprep.mubr.f32.mxu0 0.0
  %279 = vmatmul.mubr.f32.gmra.mrb[0].mxu0 %v45
  %v280 = vpop.f32.mrb[0].mxu0
  %v281 = vadd.f32 0.0, %v280
  %v282 = vpop.f32.mrb[0].mxu0
  %283 = vmatprep.mubr.f32.mxu0 0.0
  %284 = vmatmul.mubr.f32.gmra.mrb[0].mxu0 %v46
  %v285 = vpop.f32.mrb[0].mxu0
  %v286 = vadd.f32 0.0, %v285
  %v287 = vpop.f32.mrb[0].mxu0
  %288 = vmatprep.mubr.f32.mxu0 0.0
  %289 = vmatmul.mubr.f32.gmra.mrb[0].mxu0 %v47
  %v290 = vpop.f32.mrb[0].mxu0
  %v291 = vadd.f32 0.0, %v290
  %v292 = vpop.f32.mrb[0].mxu0
  %293 = vmatprep.mubr.f32.mxu0 0.0
  %294 = vmatmul.mubr.f32.gmra.mrb[0].mxu0 %v48
  %v295 = vpop.f32.mrb[0].mxu0
  %v296 = vadd.f32 0.0, %v295
  %v297 = vpop.f32.mrb[0].mxu0
  %298 = vmatprep.mubr.f32.mxu0 0.0
  %299 = vmatmul.mubr.f32.gmra.mrb[0].mxu0 %v49
  %v300 = vpop.f32.mrb[0].mxu0
  %v301 = vadd.f32 0.0, %v300
  %v302 = vpop.f32.mrb[0].mxu0
  %303 = vmatprep.mubr.f32.mxu0 0.0
  %304 = vmatmul.mubr.f32.gmra.mrb[0].mxu0 %v50
  %v305 = vpop.f32.mrb[0].mxu0
  %v306 = vadd.f32 0.0, %v305
  %v307 = vpop.f32.mrb[0].mxu0
  %308 = vmatprep.mubr.f32.mxu0 0.0
  %309 = vmatmul.mubr.f32.gmra.mrb[0].mxu0 %v51
  %v310 = vpop.f32.mrb[0].mxu0
  %v311 = vadd.f32 0.0, %v310
  %v312 = vpop.f32.mrb[0].mxu0
  %313 = vmatprep.mubr.f32.mxu0 0.0
  %314 = vmatmul.mubr.f32.gmra.mrb[0].mxu0 %v52
  %v315 = vpop.f32.mrb[0].mxu0
  %v316 = vadd.f32 0.0, %v315
  %v317 = vpop.f32.mrb[0].mxu0
  %318 = vmatprep.mubr.f32.mxu0 0.0
  %319 = vmatmul.mubr.f32.gmra.mrb[0].mxu0 %v53
  %v320 = vpop.f32.mrb[0].mxu0
  %v321 = vadd.f32 0.0, %v320
  %v322 = vpop.f32.mrb[0].mxu0
  %323 = vmatprep.mubr.f32.mxu0 0.0
  %324 = vmatmul.mubr.f32.gmra.mrb[0].mxu0 %v54
  %v325 = vpop.f32.mrb[0].mxu0
  %v326 = vadd.f32 0.0, %v325
  %v327 = vpop.f32.mrb[0].mxu0
  %328 = vmatprep.mubr.f32.mxu0 0.0
  %329 = vmatmul.mubr.f32.gmra.mrb[0].mxu0 %v55
  %v330 = vpop.f32.mrb[0].mxu0
  %v331 = vadd.f32 0.0, %v330
  %v332 = vpop.f32.mrb[0].mxu0
  %333 = vmatprep.mubr.f32.mxu0 0.0
  %334 = vmatmul.mubr.f32.gmra.mrb[0].mxu0 %v56
  %v335 = vpop.f32.mrb[0].mxu0
  %v336 = vadd.f32 0.0, %v335
  %v337 = vpop.f32.mrb[0].mxu0
  %338 = vmatprep.mubr.f32.mxu0 0.0
  %339 = vmatmul.mubr.f32.gmra.mrb[0].mxu0 %v57
  %v340 = vpop.f32.mrb[0].mxu0
  %v341 = vadd.f32 0.0, %v340
  %v342 = vpop.f32.mrb[0].mxu0
  %343 = vmatprep.mubr.f32.mxu0 0.0
  %344 = vmatmul.mubr.f32.gmra.mrb[0].mxu0 %v58
  %v345 = vpop.f32.mrb[0].mxu0
  %v346 = vadd.f32 0.0, %v345
  %v347 = vpop.f32.mrb[0].mxu0
  %348 = vmatprep.mubr.f32.mxu0 0.0
  %349 = vmatmul.mubr.f32.gmra.mrb[0].mxu0 %v59
  %v350 = vpop.f32.mrb[0].mxu0
  %v351 = vadd.f32 0.0, %v350
  %v352 = vpop.f32.mrb[0].mxu0
  %353 = vmatprep.mubr.f32.mxu0 0.0
  %354 = vmatmul.mubr.f32.gmra.mrb[0].mxu0 %v60
  %v355 = vpop.f32.mrb[0].mxu0
  %v356 = vadd.f32 0.0, %v355
  %v357 = vpop.f32.mrb[0].mxu0
  %358 = vmatprep.mubr.f32.mxu0 0.0
  %359 = vmatmul.mubr.f32.gmra.mrb[0].mxu0 %v61
  %v360 = vpop.f32.mrb[0].mxu0
  %v361 = vadd.f32 0.0, %v360
  %v362 = vpop.f32.mrb[0].mxu0
  %363 = vmatprep.mubr.f32.mxu0 0.0
  %364 = vmatmul.mubr.f32.gmra.mrb[0].mxu0 %v62
  %v365 = vpop.f32.mrb[0].mxu0
  %v366 = vadd.f32 0.0, %v365
  %v367 = vpop.f32.mrb[0].mxu0
  %368 = vmatprep.mubr.f32.mxu0 0.0
  %369 = vmatmul.mubr.f32.gmra.mrb[0].mxu0 %v63
  %v370 = vpop.f32.mrb[0].mxu0
  %v371 = vadd.f32 0.0, %v370
  %v372 = vpop.f32.mrb[0].mxu0
  %373 = vmatprep.mubr.f32.mxu0 0.0
  %374 = vmatmul.mubr.f32.gmra.mrb[0].mxu0 %v64
  %v375 = vpop.f32.mrb[0].mxu0
  %v376 = vadd.f32 0.0, %v375
  %v377 = vpop.f32.mrb[0].mxu0
  %378 = vmatprep.mubr.f32.mxu0 0.0
  %379 = vmatmul.mubr.f32.gmra.mrb[0].mxu0 %v65
  %v380 = vpop.f32.mrb[0].mxu0
  %v381 = vadd.f32 0.0, %v380
  %v382 = vpop.f32.mrb[0].mxu0
  %383 = vmatprep.mubr.f32.mxu0 0.0
  %384 = vmatmul.mubr.f32.gmra.mrb[0].mxu0 %v66
  %v385 = vpop.f32.mrb[0].mxu0
  %v386 = vadd.f32 0.0, %v385
  %v387 = vpop.f32.mrb[0].mxu0
  %388 = vmatprep.mubr.f32.mxu0 0.0
  %389 = vmatmul.mubr.f32.gmra.mrb[0].mxu0 %v67
  %v390 = vpop.f32.mrb[0].mxu0
  %v391 = vadd.f32 0.0, %v390
  %v392 = vpop.f32.mrb[0].mxu0
  %393 = vmatprep.mubr.f32.mxu0 0.0
  %394 = vmatmul.mubr.f32.gmra.mrb[0].mxu0 %v68
  %v395 = vpop.f32.mrb[0].mxu0
  %v396 = vadd.f32 0.0, %v395
  %v397 = vpop.f32.mrb[0].mxu0
  %398 = vmatprep.mubr.f32.mxu0 0.0
  %399 = vmatmul.mubr.f32.gmra.mrb[0].mxu0 %v69
  %v400 = vpop.f32.mrb[0].mxu0
  %v401 = vadd.f32 0.0, %v400
  %v402 = vpop.f32.mrb[0].mxu0
  %403 = vmatprep.mubr.f32.mxu0 0.0
  %404 = vmatmul.mubr.f32.gmra.mrb[0].mxu0 %v70
  %v405 = vpop.f32.mrb[0].mxu0
  %v406 = vadd.f32 0.0, %v405
  %v407 = vpop.f32.mrb[0].mxu0
  %408 = vmatprep.mubr.f32.mxu0 0.0
  %409 = vmatmul.mubr.f32.gmra.mrb[0].mxu0 %v71
  %v410 = vpop.f32.mrb[0].mxu0
  %v411 = vadd.f32 0.0, %v410
  %v412 = vpop.f32.mrb[0].mxu0
  %413 = vmatprep.mubr.f32.mxu0 0.0
  %414 = vmatmul.mubr.f32.gmra.mrb[0].mxu0 %v72
  %v415 = vpop.f32.mrb[0].mxu0
  %v416 = vadd.f32 0.0, %v415
  %v417 = vpop.f32.mrb[0].mxu0
  %418 = vmatprep.mubr.f32.mxu0 0.0
  %419 = vmatmul.mubr.f32.gmra.mrb[0].mxu0 %v73
  %v420 = vpop.f32.mrb[0].mxu0
  %v421 = vadd.f32 0.0, %v420
  %v422 = vpop.f32.mrb[0].mxu0
  %423 = vmatprep.mubr.f32.mxu0 0.0
  %424 = vmatmul.mubr.f32.gmra.mrb[0].mxu0 %v74
  %v425 = vpop.f32.mrb[0].mxu0
  %v426 = vadd.f32 0.0, %v425
  %v427 = vpop.f32.mrb[0].mxu0
  %428 = vmatprep.mubr.f32.mxu0 0.0
  %429 = vmatmul.mubr.f32.gmra.mrb[0].mxu0 %v75
  %v430 = vpop.f32.mrb[0].mxu0
  %v431 = vadd.f32 0.0, %v430
  %v432 = vpop.f32.mrb[0].mxu0
  %433 = vmatprep.mubr.f32.mxu0 0.0
  %434 = vmatmul.mubr.f32.gmra.mrb[0].mxu0 %v76
  %v435 = vpop.f32.mrb[0].mxu0
  %v436 = vadd.f32 0.0, %v435
  %v437 = vpop.f32.mrb[0].mxu0
  %438 = vmatprep.mubr.f32.mxu0 0.0
  %439 = vmatmul.mubr.f32.gmra.mrb[0].mxu0 %v77
  %v440 = vpop.f32.mrb[0].mxu0
  %v441 = vadd.f32 0.0, %v440
  %v442 = vpop.f32.mrb[0].mxu0
  %443 = vmatprep.mubr.f32.mxu0 0.0
  %444 = vmatmul.mubr.f32.gmra.mrb[0].mxu0 %v78
  %v445 = vpop.f32.mrb[0].mxu0
  %v446 = vadd.f32 0.0, %v445
  %v447 = vpop.f32.mrb[0].mxu0
  %448 = vmatprep.mubr.f32.mxu0 0.0
  %449 = vmatmul.mubr.f32.gmra.mrb[0].mxu0 %v79
  %v450 = vpop.f32.mrb[0].mxu0
  %v451 = vadd.f32 0.0, %v450
  %v452 = vpop.f32.mrb[0].mxu0
  %453 = vmatprep.mubr.f32.mxu0 0.0
  %454 = vmatmul.mubr.f32.gmra.mrb[0].mxu0 %v80
  %v455 = vpop.f32.mrb[0].mxu0
  %v456 = vadd.f32 0.0, %v455
  %v457 = vpop.f32.mrb[0].mxu0
  %458 = vmatprep.mubr.f32.mxu0 0.0
  %459 = vmatmul.mubr.f32.gmra.mrb[0].mxu0 %v81
  %v460 = vpop.f32.mrb[0].mxu0
  %v461 = vadd.f32 0.0, %v460
  %v462 = vpop.f32.mrb[0].mxu0
  %463 = vmatprep.mubr.f32.mxu0 0.0
  %464 = vmatmul.mubr.f32.gmra.mrb[0].mxu0 %v82
  %v465 = vpop.f32.mrb[0].mxu0
  %v466 = vadd.f32 0.0, %v465
  %v467 = vpop.f32.mrb[0].mxu0
  %468 = vmatprep.mubr.f32.mxu0 0.0
  %469 = vmatmul.mubr.f32.gmra.mrb[0].mxu0 %v83
  %v470 = vpop.f32.mrb[0].mxu0
  %v471 = vadd.f32 0.0, %v470
  %v472 = vpop.f32.mrb[0].mxu0
  %473 = vmatprep.mubr.f32.mxu0 0.0
  %474 = vmatmul.mubr.f32.gmra.mrb[0].mxu0 %v84
  %v475 = vpop.f32.mrb[0].mxu0
  %v476 = vadd.f32 0.0, %v475
  %v477 = vpop.f32.mrb[0].mxu0
  %478 = vmatprep.mubr.f32.mxu0 0.0
  %479 = vmatmul.mubr.f32.gmra.mrb[0].mxu0 %v85
  %v480 = vpop.f32.mrb[0].mxu0
  %v481 = vadd.f32 0.0, %v480
  %v482 = vpop.f32.mrb[0].mxu0
  %483 = vmatprep.mubr.f32.mxu0 0.0
  %484 = vmatmul.mubr.f32.gmra.mrb[0].mxu0 %v86
  %v485 = vpop.f32.mrb[0].mxu0
  %v486 = vadd.f32 0.0, %v485
  %v487 = vpop.f32.mrb[0].mxu0
  %488 = vmatprep.mubr.f32.mxu0 0.0
  %489 = vmatmul.mubr.f32.gmra.mrb[0].mxu0 %v87
  %v490 = vpop.f32.mrb[0].mxu0
  %v491 = vadd.f32 0.0, %v490
  %v492 = vpop.f32.mrb[0].mxu0
  %493 = vmatprep.mubr.f32.mxu0 0.0
  %494 = vmatmul.mubr.f32.gmra.mrb[0].mxu0 %v88
  %v495 = vpop.f32.mrb[0].mxu0
  %v496 = vadd.f32 0.0, %v495
  %v497 = vpop.f32.mrb[0].mxu0
  %498 = vmatprep.mubr.f32.mxu0 0.0
  %499 = vmatmul.mubr.f32.gmra.mrb[0].mxu0 %v89
  %v500 = vpop.f32.mrb[0].mxu0
  %v501 = vadd.f32 0.0, %v500
  %v502 = vpop.f32.mrb[0].mxu0
  %503 = vmatprep.mubr.f32.mxu0 0.0
  %504 = vmatmul.mubr.f32.gmra.mrb[0].mxu0 %v90
  %v505 = vpop.f32.mrb[0].mxu0
  %v506 = vadd.f32 0.0, %v505
  %v507 = vpop.f32.mrb[0].mxu0
  %508 = vdwg.mxu0
  %v509 = vmul.f32 %v27, %v27
  %v510 = vmul.f32 %v28, %v28
  %v511 = vmul.f32 %v29, %v29
  %v512 = vmul.f32 %v30, %v30
  %v513 = vmul.f32 %v31, %v31
  %v514 = vmul.f32 %v32, %v32
  %v515 = vmul.f32 %v33, %v33
  %v516 = vmul.f32 %v34, %v34
  %v517 = vmul.f32 %v35, %v35
  %v518 = vmul.f32 %v36, %v36
  %v519 = vmul.f32 %v37, %v37
  %v520 = vmul.f32 %v38, %v38
  %v521 = vmul.f32 %v39, %v39
  %v522 = vmul.f32 %v40, %v40
  %v523 = vmul.f32 %v41, %v41
  %v524 = vmul.f32 %v42, %v42
  %v525 = vmul.f32 %v43, %v43
  %v526 = vmul.f32 %v44, %v44
  %v527 = vmul.f32 %v45, %v45
  %v528 = vmul.f32 %v46, %v46
  %v529 = vmul.f32 %v47, %v47
  %v530 = vmul.f32 %v48, %v48
  %v531 = vmul.f32 %v49, %v49
  %v532 = vmul.f32 %v50, %v50
  %v533 = vmul.f32 %v51, %v51
  %v534 = vmul.f32 %v52, %v52
  %v535 = vmul.f32 %v53, %v53
  %v536 = vmul.f32 %v54, %v54
  %v537 = vmul.f32 %v55, %v55
  %v538 = vmul.f32 %v56, %v56
  %v539 = vmul.f32 %v57, %v57
  %v540 = vmul.f32 %v58, %v58
  %v541 = vmul.f32 %v59, %v59
  %v542 = vmul.f32 %v60, %v60
  %v543 = vmul.f32 %v61, %v61
  %v544 = vmul.f32 %v62, %v62
  %v545 = vmul.f32 %v63, %v63
  %v546 = vmul.f32 %v64, %v64
  %v547 = vmul.f32 %v65, %v65
  %v548 = vmul.f32 %v66, %v66
  %v549 = vmul.f32 %v67, %v67
  %v550 = vmul.f32 %v68, %v68
  %v551 = vmul.f32 %v69, %v69
  %v552 = vmul.f32 %v70, %v70
  %v553 = vmul.f32 %v71, %v71
  %v554 = vmul.f32 %v72, %v72
  %v555 = vmul.f32 %v73, %v73
  %v556 = vmul.f32 %v74, %v74
  %v557 = vmul.f32 %v75, %v75
  %v558 = vmul.f32 %v76, %v76
  %v559 = vmul.f32 %v77, %v77
  %v560 = vmul.f32 %v78, %v78
  %v561 = vmul.f32 %v79, %v79
  %v562 = vmul.f32 %v80, %v80
  %v563 = vmul.f32 %v81, %v81
  %v564 = vmul.f32 %v82, %v82
  %v565 = vmul.f32 %v83, %v83
  %v566 = vmul.f32 %v84, %v84
  %v567 = vmul.f32 %v85, %v85
  %v568 = vmul.f32 %v86, %v86
  %v569 = vmul.f32 %v87, %v87
  %v570 = vmul.f32 %v88, %v88
  %v571 = vmul.f32 %v89, %v89
  %v572 = vmul.f32 %v90, %v90
  %573 = vadd.xlane.f32.xlu0 %v509
  %v574 = vpop.xlane.xlu0 %573
  %575 = vadd.xlane.f32.xlu0 %v510
  %v576 = vpop.xlane.xlu0 %575
  %577 = vadd.xlane.f32.xlu0 %v511
  %v578 = vpop.xlane.xlu0 %577
  %579 = vadd.xlane.f32.xlu0 %v512
  %v580 = vpop.xlane.xlu0 %579
  %581 = vadd.xlane.f32.xlu0 %v513
  %v582 = vpop.xlane.xlu0 %581
  %583 = vadd.xlane.f32.xlu0 %v514
  %v584 = vpop.xlane.xlu0 %583
  %585 = vadd.xlane.f32.xlu0 %v515
  %v586 = vpop.xlane.xlu0 %585
  %587 = vadd.xlane.f32.xlu0 %v516
  %v588 = vpop.xlane.xlu0 %587
  %589 = vadd.xlane.f32.xlu0 %v517
  %v590 = vpop.xlane.xlu0 %589
  %591 = vadd.xlane.f32.xlu0 %v518
  %v592 = vpop.xlane.xlu0 %591
  %593 = vadd.xlane.f32.xlu0 %v519
  %v594 = vpop.xlane.xlu0 %593
  %595 = vadd.xlane.f32.xlu0 %v520
  %v596 = vpop.xlane.xlu0 %595
  %597 = vadd.xlane.f32.xlu0 %v521
  %v598 = vpop.xlane.xlu0 %597
  %599 = vadd.xlane.f32.xlu0 %v522
  %v600 = vpop.xlane.xlu0 %599
  %601 = vadd.xlane.f32.xlu0 %v523
  %v602 = vpop.xlane.xlu0 %601
  %603 = vadd.xlane.f32.xlu0 %v524
  %v604 = vpop.xlane.xlu0 %603
  %605 = vadd.xlane.f32.xlu0 %v525
  %v606 = vpop.xlane.xlu0 %605
  %607 = vadd.xlane.f32.xlu0 %v526
  %v608 = vpop.xlane.xlu0 %607
  %609 = vadd.xlane.f32.xlu0 %v527
  %v610 = vpop.xlane.xlu0 %609
  %611 = vadd.xlane.f32.xlu0 %v528
  %v612 = vpop.xlane.xlu0 %611
  %613 = vadd.xlane.f32.xlu0 %v529
  %v614 = vpop.xlane.xlu0 %613
  %615 = vadd.xlane.f32.xlu0 %v530
  %v616 = vpop.xlane.xlu0 %615
  %617 = vadd.xlane.f32.xlu0 %v531
  %v618 = vpop.xlane.xlu0 %617
  %619 = vadd.xlane.f32.xlu0 %v532
  %v620 = vpop.xlane.xlu0 %619
  %621 = vadd.xlane.f32.xlu0 %v533
  %v622 = vpop.xlane.xlu0 %621
  %623 = vadd.xlane.f32.xlu0 %v534
  %v624 = vpop.xlane.xlu0 %623
  %625 = vadd.xlane.f32.xlu0 %v535
  %v626 = vpop.xlane.xlu0 %625
  %627 = vadd.xlane.f32.xlu0 %v536
  %v628 = vpop.xlane.xlu0 %627
  %629 = vadd.xlane.f32.xlu0 %v537
  %v630 = vpop.xlane.xlu0 %629
  %631 = vadd.xlane.f32.xlu0 %v538
  %v632 = vpop.xlane.xlu0 %631
  %633 = vadd.xlane.f32.xlu0 %v539
  %v634 = vpop.xlane.xlu0 %633
  %635 = vadd.xlane.f32.xlu0 %v540
  %v636 = vpop.xlane.xlu0 %635
  %637 = vadd.xlane.f32.xlu0 %v541
  %v638 = vpop.xlane.xlu0 %637
  %639 = vadd.xlane.f32.xlu0 %v542
  %v640 = vpop.xlane.xlu0 %639
  %641 = vadd.xlane.f32.xlu0 %v543
  %v642 = vpop.xlane.xlu0 %641
  %643 = vadd.xlane.f32.xlu0 %v544
  %v644 = vpop.xlane.xlu0 %643
  %645 = vadd.xlane.f32.xlu0 %v545
  %v646 = vpop.xlane.xlu0 %645
  %647 = vadd.xlane.f32.xlu0 %v546
  %v648 = vpop.xlane.xlu0 %647
  %649 = vadd.xlane.f32.xlu0 %v547
  %v650 = vpop.xlane.xlu0 %649
  %651 = vadd.xlane.f32.xlu0 %v548
  %v652 = vpop.xlane.xlu0 %651
  %653 = vadd.xlane.f32.xlu0 %v549
  %v654 = vpop.xlane.xlu0 %653
  %655 = vadd.xlane.f32.xlu0 %v550
  %v656 = vpop.xlane.xlu0 %655
  %657 = vadd.xlane.f32.xlu0 %v551
  %v658 = vpop.xlane.xlu0 %657
  %659 = vadd.xlane.f32.xlu0 %v552
  %v660 = vpop.xlane.xlu0 %659
  %661 = vadd.xlane.f32.xlu0 %v553
  %v662 = vpop.xlane.xlu0 %661
  %663 = vadd.xlane.f32.xlu0 %v554
  %v664 = vpop.xlane.xlu0 %663
  %665 = vadd.xlane.f32.xlu0 %v555
  %v666 = vpop.xlane.xlu0 %665
  %667 = vadd.xlane.f32.xlu0 %v556
  %v668 = vpop.xlane.xlu0 %667
  %669 = vadd.xlane.f32.xlu0 %v557
  %v670 = vpop.xlane.xlu0 %669
  %671 = vadd.xlane.f32.xlu0 %v558
  %v672 = vpop.xlane.xlu0 %671
  %673 = vadd.xlane.f32.xlu0 %v559
  %v674 = vpop.xlane.xlu0 %673
  %675 = vadd.xlane.f32.xlu0 %v560
  %v676 = vpop.xlane.xlu0 %675
  %677 = vadd.xlane.f32.xlu0 %v561
  %v678 = vpop.xlane.xlu0 %677
  %679 = vadd.xlane.f32.xlu0 %v562
  %v680 = vpop.xlane.xlu0 %679
  %681 = vadd.xlane.f32.xlu0 %v563
  %v682 = vpop.xlane.xlu0 %681
  %683 = vadd.xlane.f32.xlu0 %v564
  %v684 = vpop.xlane.xlu0 %683
  %685 = vadd.xlane.f32.xlu0 %v565
  %v686 = vpop.xlane.xlu0 %685
  %687 = vadd.xlane.f32.xlu0 %v566
  %v688 = vpop.xlane.xlu0 %687
  %689 = vadd.xlane.f32.xlu0 %v567
  %v690 = vpop.xlane.xlu0 %689
  %691 = vadd.xlane.f32.xlu0 %v568
  %v692 = vpop.xlane.xlu0 %691
  %693 = vadd.xlane.f32.xlu0 %v569
  %v694 = vpop.xlane.xlu0 %693
  %695 = vadd.xlane.f32.xlu0 %v570
  %v696 = vpop.xlane.xlu0 %695
  %697 = vadd.xlane.f32.xlu0 %v571
  %v698 = vpop.xlane.xlu0 %697
  %699 = vadd.xlane.f32.xlu0 %v572
  %v700 = vpop.xlane.xlu0 %699
  %v702 = vlaneseq
  %v703 = vshrl.u32 %v702, 7
  %v704 = vsub.s32 0, %v703
  %v705 = vrot.slane %v107, %v704
  %v707 = vadd.f32 %v574, %v705
  %v708 = vadd.f32 %v576, %v705
  %v709 = vadd.f32 %v578, %v705
  %v710 = vadd.f32 %v580, %v705
  %v711 = vadd.f32 %v582, %v705
  %v712 = vadd.f32 %v584, %v705
  %v713 = vadd.f32 %v586, %v705
  %v714 = vadd.f32 %v588, %v705
  %v715 = vadd.f32 %v590, %v705
  %v716 = vadd.f32 %v592, %v705
  %v717 = vadd.f32 %v594, %v705
  %v718 = vadd.f32 %v596, %v705
  %v719 = vadd.f32 %v598, %v705
  %v720 = vadd.f32 %v600, %v705
  %v721 = vadd.f32 %v602, %v705
  %v722 = vadd.f32 %v604, %v705
  %v723 = vadd.f32 %v606, %v705
  %v724 = vadd.f32 %v608, %v705
  %v725 = vadd.f32 %v610, %v705
  %v726 = vadd.f32 %v612, %v705
  %v727 = vadd.f32 %v614, %v705
  %v728 = vadd.f32 %v616, %v705
  %v729 = vadd.f32 %v618, %v705
  %v730 = vadd.f32 %v620, %v705
  %v731 = vadd.f32 %v622, %v705
  %v732 = vadd.f32 %v624, %v705
  %v733 = vadd.f32 %v626, %v705
  %v734 = vadd.f32 %v628, %v705
  %v735 = vadd.f32 %v630, %v705
  %v736 = vadd.f32 %v632, %v705
  %v737 = vadd.f32 %v634, %v705
  %v738 = vadd.f32 %v636, %v705
  %v739 = vadd.f32 %v638, %v705
  %v740 = vadd.f32 %v640, %v705
  %v741 = vadd.f32 %v642, %v705
  %v742 = vadd.f32 %v644, %v705
  %v743 = vadd.f32 %v646, %v705
  %v744 = vadd.f32 %v648, %v705
  %v745 = vadd.f32 %v650, %v705
  %v746 = vadd.f32 %v652, %v705
  %v747 = vadd.f32 %v654, %v705
  %v748 = vadd.f32 %v656, %v705
  %v749 = vadd.f32 %v658, %v705
  %v750 = vadd.f32 %v660, %v705
  %v751 = vadd.f32 %v662, %v705
  %v752 = vadd.f32 %v664, %v705
  %v753 = vadd.f32 %v666, %v705
  %v754 = vadd.f32 %v668, %v705
  %v755 = vadd.f32 %v670, %v705
  %v756 = vadd.f32 %v672, %v705
  %v757 = vadd.f32 %v674, %v705
  %v758 = vadd.f32 %v676, %v705
  %v759 = vadd.f32 %v678, %v705
  %v760 = vadd.f32 %v680, %v705
  %v761 = vadd.f32 %v682, %v705
  %v762 = vadd.f32 %v684, %v705
  %v763 = vadd.f32 %v686, %v705
  %v764 = vadd.f32 %v688, %v705
  %v765 = vadd.f32 %v690, %v705
  %v766 = vadd.f32 %v692, %v705
  %v767 = vadd.f32 %v694, %v705
  %v768 = vadd.f32 %v696, %v705
  %v769 = vadd.f32 %v698, %v705
  %v770 = vadd.f32 %v700, %v705
  %v771 = vmul.f32 %v191, 2.0
  %v772 = vmul.f32 %v196, 2.0
  %v773 = vmul.f32 %v201, 2.0
  %v774 = vmul.f32 %v206, 2.0
  %v775 = vmul.f32 %v211, 2.0
  %v776 = vmul.f32 %v216, 2.0
  %v777 = vmul.f32 %v221, 2.0
  %v778 = vmul.f32 %v226, 2.0
  %v779 = vmul.f32 %v231, 2.0
  %v780 = vmul.f32 %v236, 2.0
  %v781 = vmul.f32 %v241, 2.0
  %v782 = vmul.f32 %v246, 2.0
  %v783 = vmul.f32 %v251, 2.0
  %v784 = vmul.f32 %v256, 2.0
  %v785 = vmul.f32 %v261, 2.0
  %v786 = vmul.f32 %v266, 2.0
  %v787 = vmul.f32 %v271, 2.0
  %v788 = vmul.f32 %v276, 2.0
  %v789 = vmul.f32 %v281, 2.0
  %v790 = vmul.f32 %v286, 2.0
  %v791 = vmul.f32 %v291, 2.0
  %v792 = vmul.f32 %v296, 2.0
  %v793 = vmul.f32 %v301, 2.0
  %v794 = vmul.f32 %v306, 2.0
  %v795 = vmul.f32 %v311, 2.0
  %v796 = vmul.f32 %v316, 2.0
  %v797 = vmul.f32 %v321, 2.0
  %v798 = vmul.f32 %v326, 2.0
  %v799 = vmul.f32 %v331, 2.0
  %v800 = vmul.f32 %v336, 2.0
  %v801 = vmul.f32 %v341, 2.0
  %v802 = vmul.f32 %v346, 2.0
  %v803 = vmul.f32 %v351, 2.0
  %v804 = vmul.f32 %v356, 2.0
  %v805 = vmul.f32 %v361, 2.0
  %v806 = vmul.f32 %v366, 2.0
  %v807 = vmul.f32 %v371, 2.0
  %v808 = vmul.f32 %v376, 2.0
  %v809 = vmul.f32 %v381, 2.0
  %v810 = vmul.f32 %v386, 2.0
  %v811 = vmul.f32 %v391, 2.0
  %v812 = vmul.f32 %v396, 2.0
  %v813 = vmul.f32 %v401, 2.0
  %v814 = vmul.f32 %v406, 2.0
  %v815 = vmul.f32 %v411, 2.0
  %v816 = vmul.f32 %v416, 2.0
  %v817 = vmul.f32 %v421, 2.0
  %v818 = vmul.f32 %v426, 2.0
  %v819 = vmul.f32 %v431, 2.0
  %v820 = vmul.f32 %v436, 2.0
  %v821 = vmul.f32 %v441, 2.0
  %v822 = vmul.f32 %v446, 2.0
  %v823 = vmul.f32 %v451, 2.0
  %v824 = vmul.f32 %v456, 2.0
  %v825 = vmul.f32 %v461, 2.0
  %v826 = vmul.f32 %v466, 2.0
  %v827 = vmul.f32 %v471, 2.0
  %v828 = vmul.f32 %v476, 2.0
  %v829 = vmul.f32 %v481, 2.0
  %v830 = vmul.f32 %v486, 2.0
  %v831 = vmul.f32 %v491, 2.0
  %v832 = vmul.f32 %v496, 2.0
  %v833 = vmul.f32 %v501, 2.0
  %v834 = vmul.f32 %v506, 2.0
  %v835 = vsub.f32 %v707, %v771
  %v836 = vsub.f32 %v708, %v772
  %v837 = vsub.f32 %v709, %v773
  %v838 = vsub.f32 %v710, %v774
  %v839 = vsub.f32 %v711, %v775
  %v840 = vsub.f32 %v712, %v776
  %v841 = vsub.f32 %v713, %v777
  %v842 = vsub.f32 %v714, %v778
  %v843 = vsub.f32 %v715, %v779
  %v844 = vsub.f32 %v716, %v780
  %v845 = vsub.f32 %v717, %v781
  %v846 = vsub.f32 %v718, %v782
  %v847 = vsub.f32 %v719, %v783
  %v848 = vsub.f32 %v720, %v784
  %v849 = vsub.f32 %v721, %v785
  %v850 = vsub.f32 %v722, %v786
  %v851 = vsub.f32 %v723, %v787
  %v852 = vsub.f32 %v724, %v788
  %v853 = vsub.f32 %v725, %v789
  %v854 = vsub.f32 %v726, %v790
  %v855 = vsub.f32 %v727, %v791
  %v856 = vsub.f32 %v728, %v792
  %v857 = vsub.f32 %v729, %v793
  %v858 = vsub.f32 %v730, %v794
  %v859 = vsub.f32 %v731, %v795
  %v860 = vsub.f32 %v732, %v796
  %v861 = vsub.f32 %v733, %v797
  %v862 = vsub.f32 %v734, %v798
  %v863 = vsub.f32 %v735, %v799
  %v864 = vsub.f32 %v736, %v800
  %v865 = vsub.f32 %v737, %v801
  %v866 = vsub.f32 %v738, %v802
  %v867 = vsub.f32 %v739, %v803
  %v868 = vsub.f32 %v740, %v804
  %v869 = vsub.f32 %v741, %v805
  %v870 = vsub.f32 %v742, %v806
  %v871 = vsub.f32 %v743, %v807
  %v872 = vsub.f32 %v744, %v808
  %v873 = vsub.f32 %v745, %v809
  %v874 = vsub.f32 %v746, %v810
  %v875 = vsub.f32 %v747, %v811
  %v876 = vsub.f32 %v748, %v812
  %v877 = vsub.f32 %v749, %v813
  %v878 = vsub.f32 %v750, %v814
  %v879 = vsub.f32 %v751, %v815
  %v880 = vsub.f32 %v752, %v816
  %v881 = vsub.f32 %v753, %v817
  %v882 = vsub.f32 %v754, %v818
  %v883 = vsub.f32 %v755, %v819
  %v884 = vsub.f32 %v756, %v820
  %v885 = vsub.f32 %v757, %v821
  %v886 = vsub.f32 %v758, %v822
  %v887 = vsub.f32 %v759, %v823
  %v888 = vsub.f32 %v760, %v824
  %v889 = vsub.f32 %v761, %v825
  %v890 = vsub.f32 %v762, %v826
  %v891 = vsub.f32 %v763, %v827
  %v892 = vsub.f32 %v764, %v828
  %v893 = vsub.f32 %v765, %v829
  %v894 = vsub.f32 %v766, %v830
  %v895 = vsub.f32 %v767, %v831
  %v896 = vsub.f32 %v768, %v832
  %v897 = vsub.f32 %v769, %v833
  %v898 = vsub.f32 %v770, %v834
  %899 = vst [vmem:[%s6] sm:$0xff] %v835
  %900 = vst [vmem:[%s6 + $0x8] sm:$0xff] %v836
  %901 = vst [vmem:[%s6 + $0x10] sm:$0xff] %v837
  %902 = vst [vmem:[%s6 + $0x18] sm:$0xff] %v838
  %903 = vst [vmem:[%s6 + $0x20] sm:$0xff] %v839
  %904 = vst [vmem:[%s6 + $0x28] sm:$0xff] %v840
  %905 = vst [vmem:[%s6 + $0x30] sm:$0xff] %v841
  %906 = vst [vmem:[%s6 + $0x38] sm:$0xff] %v842
  %907 = vst [vmem:[%s6 + $0x40] sm:$0xff] %v843
  %908 = vst [vmem:[%s6 + $0x48] sm:$0xff] %v844
  %909 = vst [vmem:[%s6 + $0x50] sm:$0xff] %v845
  %910 = vst [vmem:[%s6 + $0x58] sm:$0xff] %v846
  %911 = vst [vmem:[%s6 + $0x60] sm:$0xff] %v847
  %912 = vst [vmem:[%s6 + $0x68] sm:$0xff] %v848
  %913 = vst [vmem:[%s6 + $0x70] sm:$0xff] %v849
  %914 = vst [vmem:[%s6 + $0x78] sm:$0xff] %v850
  %915 = vst [vmem:[%s6 + $0x80] sm:$0xff] %v851
  %916 = vst [vmem:[%s6 + $0x88] sm:$0xff] %v852
  %917 = vst [vmem:[%s6 + $0x90] sm:$0xff] %v853
  %918 = vst [vmem:[%s6 + $0x98] sm:$0xff] %v854
  %919 = vst [vmem:[%s6 + $0xa0] sm:$0xff] %v855
  %920 = vst [vmem:[%s6 + $0xa8] sm:$0xff] %v856
  %921 = vst [vmem:[%s6 + $0xb0] sm:$0xff] %v857
  %922 = vst [vmem:[%s6 + $0xb8] sm:$0xff] %v858
  %923 = vst [vmem:[%s6 + $0xc0] sm:$0xff] %v859
  %924 = vst [vmem:[%s6 + $0xc8] sm:$0xff] %v860
  %925 = vst [vmem:[%s6 + $0xd0] sm:$0xff] %v861
  %926 = vst [vmem:[%s6 + $0xd8] sm:$0xff] %v862
  %927 = vst [vmem:[%s6 + $0xe0] sm:$0xff] %v863
  %928 = vst [vmem:[%s6 + $0xe8] sm:$0xff] %v864
  %929 = vst [vmem:[%s6 + $0xf0] sm:$0xff] %v865
  %930 = vst [vmem:[%s6 + $0xf8] sm:$0xff] %v866
  %931 = vst [vmem:[%s6 + $0x100] sm:$0xff] %v867
  %932 = vst [vmem:[%s6 + $0x108] sm:$0xff] %v868
  %933 = vst [vmem:[%s6 + $0x110] sm:$0xff] %v869
  %934 = vst [vmem:[%s6 + $0x118] sm:$0xff] %v870
  %935 = vst [vmem:[%s6 + $0x120] sm:$0xff] %v871
  %936 = vst [vmem:[%s6 + $0x128] sm:$0xff] %v872
  %937 = vst [vmem:[%s6 + $0x130] sm:$0xff] %v873
  %938 = vst [vmem:[%s6 + $0x138] sm:$0xff] %v874
  %939 = vst [vmem:[%s6 + $0x140] sm:$0xff] %v875
  %940 = vst [vmem:[%s6 + $0x148] sm:$0xff] %v876
  %941 = vst [vmem:[%s6 + $0x150] sm:$0xff] %v877
  %942 = vst [vmem:[%s6 + $0x158] sm:$0xff] %v878
  %943 = vst [vmem:[%s6 + $0x160] sm:$0xff] %v879
  %944 = vst [vmem:[%s6 + $0x168] sm:$0xff] %v880
  %945 = vst [vmem:[%s6 + $0x170] sm:$0xff] %v881
  %946 = vst [vmem:[%s6 + $0x178] sm:$0xff] %v882
  %947 = vst [vmem:[%s6 + $0x180] sm:$0xff] %v883
  %948 = vst [vmem:[%s6 + $0x188] sm:$0xff] %v884
  %949 = vst [vmem:[%s6 + $0x190] sm:$0xff] %v885
  %950 = vst [vmem:[%s6 + $0x198] sm:$0xff] %v886
  %951 = vst [vmem:[%s6 + $0x1a0] sm:$0xff] %v887
  %952 = vst [vmem:[%s6 + $0x1a8] sm:$0xff] %v888
  %953 = vst [vmem:[%s6 + $0x1b0] sm:$0xff] %v889
  %954 = vst [vmem:[%s6 + $0x1b8] sm:$0xff] %v890
  %955 = vst [vmem:[%s6 + $0x1c0] sm:$0xff] %v891
  %956 = vst [vmem:[%s6 + $0x1c8] sm:$0xff] %v892
  %957 = vst [vmem:[%s6 + $0x1d0] sm:$0xff] %v893
  %958 = vst [vmem:[%s6 + $0x1d8] sm:$0xff] %v894
  %959 = vst [vmem:[%s6 + $0x1e0] sm:$0xff] %v895
  %960 = vst [vmem:[%s6 + $0x1e8] sm:$0xff] %v896
  %961 = vst [vmem:[%s6 + $0x1f0] sm:$0xff] %v897
  %962 = vst [vmem:[%s6 + $0x1f8] sm:$0xff] %v898
  %v963 = vlaneseq
  %v964 = vand.u32 %v963, 127
  %965 = vmin.xlane.f32.xlu0 %v835
  %v966 = vpop.xlane.xlu0 %965
  %967 = vmin.xlane.f32.xlu0 %v836
  %v968 = vpop.xlane.xlu0 %967
  %969 = vmin.xlane.f32.xlu0 %v837
  %v970 = vpop.xlane.xlu0 %969
  %971 = vmin.xlane.f32.xlu0 %v838
  %v972 = vpop.xlane.xlu0 %971
  %973 = vmin.xlane.f32.xlu0 %v839
  %v974 = vpop.xlane.xlu0 %973
  %975 = vmin.xlane.f32.xlu0 %v840
  %v976 = vpop.xlane.xlu0 %975
  %977 = vmin.xlane.f32.xlu0 %v841
  %v978 = vpop.xlane.xlu0 %977
  %979 = vmin.xlane.f32.xlu0 %v842
  %v980 = vpop.xlane.xlu0 %979
  %981 = vmin.xlane.f32.xlu0 %v843
  %v982 = vpop.xlane.xlu0 %981
  %983 = vmin.xlane.f32.xlu0 %v844
  %v984 = vpop.xlane.xlu0 %983
  %985 = vmin.xlane.f32.xlu0 %v845
  %v986 = vpop.xlane.xlu0 %985
  %987 = vmin.xlane.f32.xlu0 %v846
  %v988 = vpop.xlane.xlu0 %987
  %989 = vmin.xlane.f32.xlu0 %v847
  %v990 = vpop.xlane.xlu0 %989
  %991 = vmin.xlane.f32.xlu0 %v848
  %v992 = vpop.xlane.xlu0 %991
  %993 = vmin.xlane.f32.xlu0 %v849
  %v994 = vpop.xlane.xlu0 %993
  %995 = vmin.xlane.f32.xlu0 %v850
  %v996 = vpop.xlane.xlu0 %995
  %997 = vmin.xlane.f32.xlu0 %v851
  %v998 = vpop.xlane.xlu0 %997
  %999 = vmin.xlane.f32.xlu0 %v852
  %v1000 = vpop.xlane.xlu0 %999
  %1001 = vmin.xlane.f32.xlu0 %v853
  %v1002 = vpop.xlane.xlu0 %1001
  %1003 = vmin.xlane.f32.xlu0 %v854
  %v1004 = vpop.xlane.xlu0 %1003
  %1005 = vmin.xlane.f32.xlu0 %v855
  %v1006 = vpop.xlane.xlu0 %1005
  %1007 = vmin.xlane.f32.xlu0 %v856
  %v1008 = vpop.xlane.xlu0 %1007
  %1009 = vmin.xlane.f32.xlu0 %v857
  %v1010 = vpop.xlane.xlu0 %1009
  %1011 = vmin.xlane.f32.xlu0 %v858
  %v1012 = vpop.xlane.xlu0 %1011
  %1013 = vmin.xlane.f32.xlu0 %v859
  %v1014 = vpop.xlane.xlu0 %1013
  %1015 = vmin.xlane.f32.xlu0 %v860
  %v1016 = vpop.xlane.xlu0 %1015
  %1017 = vmin.xlane.f32.xlu0 %v861
  %v1018 = vpop.xlane.xlu0 %1017
  %1019 = vmin.xlane.f32.xlu0 %v862
  %v1020 = vpop.xlane.xlu0 %1019
  %1021 = vmin.xlane.f32.xlu0 %v863
  %v1022 = vpop.xlane.xlu0 %1021
  %1023 = vmin.xlane.f32.xlu0 %v864
  %v1024 = vpop.xlane.xlu0 %1023
  %1025 = vmin.xlane.f32.xlu0 %v865
  %v1026 = vpop.xlane.xlu0 %1025
  %1027 = vmin.xlane.f32.xlu0 %v866
  %v1028 = vpop.xlane.xlu0 %1027
  %1029 = vmin.xlane.f32.xlu0 %v867
  %v1030 = vpop.xlane.xlu0 %1029
  %1031 = vmin.xlane.f32.xlu0 %v868
  %v1032 = vpop.xlane.xlu0 %1031
  %1033 = vmin.xlane.f32.xlu0 %v869
  %v1034 = vpop.xlane.xlu0 %1033
  %1035 = vmin.xlane.f32.xlu0 %v870
  %v1036 = vpop.xlane.xlu0 %1035
  %1037 = vmin.xlane.f32.xlu0 %v871
  %v1038 = vpop.xlane.xlu0 %1037
  %1039 = vmin.xlane.f32.xlu0 %v872
  %v1040 = vpop.xlane.xlu0 %1039
  %1041 = vmin.xlane.f32.xlu0 %v873
  %v1042 = vpop.xlane.xlu0 %1041
  %1043 = vmin.xlane.f32.xlu0 %v874
  %v1044 = vpop.xlane.xlu0 %1043
  %1045 = vmin.xlane.f32.xlu0 %v875
  %v1046 = vpop.xlane.xlu0 %1045
  %1047 = vmin.xlane.f32.xlu0 %v876
  %v1048 = vpop.xlane.xlu0 %1047
  %1049 = vmin.xlane.f32.xlu0 %v877
  %v1050 = vpop.xlane.xlu0 %1049
  %1051 = vmin.xlane.f32.xlu0 %v878
  %v1052 = vpop.xlane.xlu0 %1051
  %1053 = vmin.xlane.f32.xlu0 %v879
  %v1054 = vpop.xlane.xlu0 %1053
  %1055 = vmin.xlane.f32.xlu0 %v880
  %v1056 = vpop.xlane.xlu0 %1055
  %1057 = vmin.xlane.f32.xlu0 %v881
  %v1058 = vpop.xlane.xlu0 %1057
  %1059 = vmin.xlane.f32.xlu0 %v882
  %v1060 = vpop.xlane.xlu0 %1059
  %1061 = vmin.xlane.f32.xlu0 %v883
  %v1062 = vpop.xlane.xlu0 %1061
  %1063 = vmin.xlane.f32.xlu0 %v884
  %v1064 = vpop.xlane.xlu0 %1063
  %1065 = vmin.xlane.f32.xlu0 %v885
  %v1066 = vpop.xlane.xlu0 %1065
  %1067 = vmin.xlane.f32.xlu0 %v886
  %v1068 = vpop.xlane.xlu0 %1067
  %1069 = vmin.xlane.f32.xlu0 %v887
  %v1070 = vpop.xlane.xlu0 %1069
  %1071 = vmin.xlane.f32.xlu0 %v888
  %v1072 = vpop.xlane.xlu0 %1071
  %1073 = vmin.xlane.f32.xlu0 %v889
  %v1074 = vpop.xlane.xlu0 %1073
  %1075 = vmin.xlane.f32.xlu0 %v890
  %v1076 = vpop.xlane.xlu0 %1075
  %1077 = vmin.xlane.f32.xlu0 %v891
  %v1078 = vpop.xlane.xlu0 %1077
  %1079 = vmin.xlane.f32.xlu0 %v892
  %v1080 = vpop.xlane.xlu0 %1079
  %1081 = vmin.xlane.f32.xlu0 %v893
  %v1082 = vpop.xlane.xlu0 %1081
  %1083 = vmin.xlane.f32.xlu0 %v894
  %v1084 = vpop.xlane.xlu0 %1083
  %1085 = vmin.xlane.f32.xlu0 %v895
  %v1086 = vpop.xlane.xlu0 %1085
  %1087 = vmin.xlane.f32.xlu0 %v896
  %v1088 = vpop.xlane.xlu0 %1087
  %1089 = vmin.xlane.f32.xlu0 %v897
  %v1090 = vpop.xlane.xlu0 %1089
  %1091 = vmin.xlane.f32.xlu0 %v898
  %v1092 = vpop.xlane.xlu0 %1091
  %vm1093 = vcmp.le.f32.partialorder %v835, %v966
  %vm1094 = vcmp.le.f32.partialorder %v836, %v968
  %vm1095 = vcmp.le.f32.partialorder %v837, %v970
  %vm1096 = vcmp.le.f32.partialorder %v838, %v972
  %vm1097 = vcmp.le.f32.partialorder %v839, %v974
  %vm1098 = vcmp.le.f32.partialorder %v840, %v976
  %vm1099 = vcmp.le.f32.partialorder %v841, %v978
  %vm1100 = vcmp.le.f32.partialorder %v842, %v980
  %vm1101 = vcmp.le.f32.partialorder %v843, %v982
  %vm1102 = vcmp.le.f32.partialorder %v844, %v984
  %vm1103 = vcmp.le.f32.partialorder %v845, %v986
  %vm1104 = vcmp.le.f32.partialorder %v846, %v988
  %vm1105 = vcmp.le.f32.partialorder %v847, %v990
  %vm1106 = vcmp.le.f32.partialorder %v848, %v992
  %vm1107 = vcmp.le.f32.partialorder %v849, %v994
  %vm1108 = vcmp.le.f32.partialorder %v850, %v996
  %vm1109 = vcmp.le.f32.partialorder %v851, %v998
  %vm1110 = vcmp.le.f32.partialorder %v852, %v1000
  %vm1111 = vcmp.le.f32.partialorder %v853, %v1002
  %vm1112 = vcmp.le.f32.partialorder %v854, %v1004
  %vm1113 = vcmp.le.f32.partialorder %v855, %v1006
  %vm1114 = vcmp.le.f32.partialorder %v856, %v1008
  %vm1115 = vcmp.le.f32.partialorder %v857, %v1010
  %vm1116 = vcmp.le.f32.partialorder %v858, %v1012
  %vm1117 = vcmp.le.f32.partialorder %v859, %v1014
  %vm1118 = vcmp.le.f32.partialorder %v860, %v1016
  %vm1119 = vcmp.le.f32.partialorder %v861, %v1018
  %vm1120 = vcmp.le.f32.partialorder %v862, %v1020
  %vm1121 = vcmp.le.f32.partialorder %v863, %v1022
  %vm1122 = vcmp.le.f32.partialorder %v864, %v1024
  %vm1123 = vcmp.le.f32.partialorder %v865, %v1026
  %vm1124 = vcmp.le.f32.partialorder %v866, %v1028
  %vm1125 = vcmp.le.f32.partialorder %v867, %v1030
  %vm1126 = vcmp.le.f32.partialorder %v868, %v1032
  %vm1127 = vcmp.le.f32.partialorder %v869, %v1034
  %vm1128 = vcmp.le.f32.partialorder %v870, %v1036
  %vm1129 = vcmp.le.f32.partialorder %v871, %v1038
  %vm1130 = vcmp.le.f32.partialorder %v872, %v1040
  %vm1131 = vcmp.le.f32.partialorder %v873, %v1042
  %vm1132 = vcmp.le.f32.partialorder %v874, %v1044
  %vm1133 = vcmp.le.f32.partialorder %v875, %v1046
  %vm1134 = vcmp.le.f32.partialorder %v876, %v1048
  %vm1135 = vcmp.le.f32.partialorder %v877, %v1050
  %vm1136 = vcmp.le.f32.partialorder %v878, %v1052
  %vm1137 = vcmp.le.f32.partialorder %v879, %v1054
  %vm1138 = vcmp.le.f32.partialorder %v880, %v1056
  %vm1139 = vcmp.le.f32.partialorder %v881, %v1058
  %vm1140 = vcmp.le.f32.partialorder %v882, %v1060
  %vm1141 = vcmp.le.f32.partialorder %v883, %v1062
  %vm1142 = vcmp.le.f32.partialorder %v884, %v1064
  %vm1143 = vcmp.le.f32.partialorder %v885, %v1066
  %vm1144 = vcmp.le.f32.partialorder %v886, %v1068
  %vm1145 = vcmp.le.f32.partialorder %v887, %v1070
  %vm1146 = vcmp.le.f32.partialorder %v888, %v1072
  %vm1147 = vcmp.le.f32.partialorder %v889, %v1074
  %vm1148 = vcmp.le.f32.partialorder %v890, %v1076
  %vm1149 = vcmp.le.f32.partialorder %v891, %v1078
  %vm1150 = vcmp.le.f32.partialorder %v892, %v1080
  %vm1151 = vcmp.le.f32.partialorder %v893, %v1082
  %vm1152 = vcmp.le.f32.partialorder %v894, %v1084
  %vm1153 = vcmp.le.f32.partialorder %v895, %v1086
  %vm1154 = vcmp.le.f32.partialorder %v896, %v1088
  %vm1155 = vcmp.le.f32.partialorder %v897, %v1090
  %vm1156 = vcmp.le.f32.partialorder %v898, %v1092
  %v1157 = vsel %vm1093, %v964, 128
  %v1158 = vsel %vm1094, %v964, 128
  %v1159 = vsel %vm1095, %v964, 128
  %v1160 = vsel %vm1096, %v964, 128
  %v1161 = vsel %vm1097, %v964, 128
  %v1162 = vsel %vm1098, %v964, 128
  %v1163 = vsel %vm1099, %v964, 128
  %v1164 = vsel %vm1100, %v964, 128
  %v1165 = vsel %vm1101, %v964, 128
  %v1166 = vsel %vm1102, %v964, 128
  %v1167 = vsel %vm1103, %v964, 128
  %v1168 = vsel %vm1104, %v964, 128
  %v1169 = vsel %vm1105, %v964, 128
  %v1170 = vsel %vm1106, %v964, 128
  %v1171 = vsel %vm1107, %v964, 128
  %v1172 = vsel %vm1108, %v964, 128
  %v1173 = vsel %vm1109, %v964, 128
  %v1174 = vsel %vm1110, %v964, 128
  %v1175 = vsel %vm1111, %v964, 128
  %v1176 = vsel %vm1112, %v964, 128
  %v1177 = vsel %vm1113, %v964, 128
  %v1178 = vsel %vm1114, %v964, 128
  %v1179 = vsel %vm1115, %v964, 128
  %v1180 = vsel %vm1116, %v964, 128
  %v1181 = vsel %vm1117, %v964, 128
  %v1182 = vsel %vm1118, %v964, 128
  %v1183 = vsel %vm1119, %v964, 128
  %v1184 = vsel %vm1120, %v964, 128
  %v1185 = vsel %vm1121, %v964, 128
  %v1186 = vsel %vm1122, %v964, 128
  %v1187 = vsel %vm1123, %v964, 128
  %v1188 = vsel %vm1124, %v964, 128
  %v1189 = vsel %vm1125, %v964, 128
  %v1190 = vsel %vm1126, %v964, 128
  %v1191 = vsel %vm1127, %v964, 128
  %v1192 = vsel %vm1128, %v964, 128
  %v1193 = vsel %vm1129, %v964, 128
  %v1194 = vsel %vm1130, %v964, 128
  %v1195 = vsel %vm1131, %v964, 128
  %v1196 = vsel %vm1132, %v964, 128
  %v1197 = vsel %vm1133, %v964, 128
  %v1198 = vsel %vm1134, %v964, 128
  %v1199 = vsel %vm1135, %v964, 128
  %v1200 = vsel %vm1136, %v964, 128
  %v1201 = vsel %vm1137, %v964, 128
  %v1202 = vsel %vm1138, %v964, 128
  %v1203 = vsel %vm1139, %v964, 128
  %v1204 = vsel %vm1140, %v964, 128
  %v1205 = vsel %vm1141, %v964, 128
  %v1206 = vsel %vm1142, %v964, 128
  %v1207 = vsel %vm1143, %v964, 128
  %v1208 = vsel %vm1144, %v964, 128
  %v1209 = vsel %vm1145, %v964, 128
  %v1210 = vsel %vm1146, %v964, 128
  %v1211 = vsel %vm1147, %v964, 128
  %v1212 = vsel %vm1148, %v964, 128
  %v1213 = vsel %vm1149, %v964, 128
  %v1214 = vsel %vm1150, %v964, 128
  %v1215 = vsel %vm1151, %v964, 128
  %v1216 = vsel %vm1152, %v964, 128
  %v1217 = vsel %vm1153, %v964, 128
  %v1218 = vsel %vm1154, %v964, 128
  %v1219 = vsel %vm1155, %v964, 128
  %v1220 = vsel %vm1156, %v964, 128
  %v1221 = vand.u32 %v1157, 65535
  %v1222 = vshra.s32 %v1157, 16
  %v1223 = vcvt.s32.f32 %v1221
  %v1224 = vcvt.s32.f32 %v1222
  %1225 = vmin.xlane.f32.xlu0 %v1224
  %v1226 = vpop.xlane.xlu0 %1225
  %vm1227 = vcmp.eq.f32.partialorder %v1224, %v1226
  %v1228 = vsel %vm1227, %v1223, inf
  %1229 = vmin.xlane.f32.xlu0 %v1228
  %v1230 = vpop.xlane.xlu0 %1229
  %v1231 = vcvt.f32.s32 %v1230
  %v1232 = vcvt.f32.s32 %v1226
  %v1233 = vshll.u32 %v1232, 16
  %v1234 = vadd.s32 %v1233, %v1231
  %v1235 = vand.u32 %v1158, 65535
  %v1236 = vshra.s32 %v1158, 16
  %v1237 = vcvt.s32.f32 %v1235
  %v1238 = vcvt.s32.f32 %v1236
  %1239 = vmin.xlane.f32.xlu0 %v1238
  %v1240 = vpop.xlane.xlu0 %1239
  %vm1241 = vcmp.eq.f32.partialorder %v1238, %v1240
  %v1242 = vsel %vm1241, %v1237, inf
  %1243 = vmin.xlane.f32.xlu0 %v1242
  %v1244 = vpop.xlane.xlu0 %1243
  %v1245 = vcvt.f32.s32 %v1244
  %v1246 = vcvt.f32.s32 %v1240
  %v1247 = vshll.u32 %v1246, 16
  %v1248 = vadd.s32 %v1247, %v1245
  %v1249 = vand.u32 %v1159, 65535
  %v1250 = vshra.s32 %v1159, 16
  %v1251 = vcvt.s32.f32 %v1249
  %v1252 = vcvt.s32.f32 %v1250
  %1253 = vmin.xlane.f32.xlu0 %v1252
  %v1254 = vpop.xlane.xlu0 %1253
  %vm1255 = vcmp.eq.f32.partialorder %v1252, %v1254
  %v1256 = vsel %vm1255, %v1251, inf
  %1257 = vmin.xlane.f32.xlu0 %v1256
  %v1258 = vpop.xlane.xlu0 %1257
  %v1259 = vcvt.f32.s32 %v1258
  %v1260 = vcvt.f32.s32 %v1254
  %v1261 = vshll.u32 %v1260, 16
  %v1262 = vadd.s32 %v1261, %v1259
  %v1263 = vand.u32 %v1160, 65535
  %v1264 = vshra.s32 %v1160, 16
  %v1265 = vcvt.s32.f32 %v1263
  %v1266 = vcvt.s32.f32 %v1264
  %1267 = vmin.xlane.f32.xlu0 %v1266
  %v1268 = vpop.xlane.xlu0 %1267
  %vm1269 = vcmp.eq.f32.partialorder %v1266, %v1268
  %v1270 = vsel %vm1269, %v1265, inf
  %1271 = vmin.xlane.f32.xlu0 %v1270
  %v1272 = vpop.xlane.xlu0 %1271
  %v1273 = vcvt.f32.s32 %v1272
  %v1274 = vcvt.f32.s32 %v1268
  %v1275 = vshll.u32 %v1274, 16
  %v1276 = vadd.s32 %v1275, %v1273
  %v1277 = vand.u32 %v1161, 65535
  %v1278 = vshra.s32 %v1161, 16
  %v1279 = vcvt.s32.f32 %v1277
  %v1280 = vcvt.s32.f32 %v1278
  %1281 = vmin.xlane.f32.xlu0 %v1280
  %v1282 = vpop.xlane.xlu0 %1281
  %vm1283 = vcmp.eq.f32.partialorder %v1280, %v1282
  %v1284 = vsel %vm1283, %v1279, inf
  %1285 = vmin.xlane.f32.xlu0 %v1284
  %v1286 = vpop.xlane.xlu0 %1285
  %v1287 = vcvt.f32.s32 %v1286
  %v1288 = vcvt.f32.s32 %v1282
  %v1289 = vshll.u32 %v1288, 16
  %v1290 = vadd.s32 %v1289, %v1287
  %v1291 = vand.u32 %v1162, 65535
  %v1292 = vshra.s32 %v1162, 16
  %v1293 = vcvt.s32.f32 %v1291
  %v1294 = vcvt.s32.f32 %v1292
  %1295 = vmin.xlane.f32.xlu0 %v1294
  %v1296 = vpop.xlane.xlu0 %1295
  %vm1297 = vcmp.eq.f32.partialorder %v1294, %v1296
  %v1298 = vsel %vm1297, %v1293, inf
  %1299 = vmin.xlane.f32.xlu0 %v1298
  %v1300 = vpop.xlane.xlu0 %1299
  %v1301 = vcvt.f32.s32 %v1300
  %v1302 = vcvt.f32.s32 %v1296
  %v1303 = vshll.u32 %v1302, 16
  %v1304 = vadd.s32 %v1303, %v1301
  %v1305 = vand.u32 %v1163, 65535
  %v1306 = vshra.s32 %v1163, 16
  %v1307 = vcvt.s32.f32 %v1305
  %v1308 = vcvt.s32.f32 %v1306
  %1309 = vmin.xlane.f32.xlu0 %v1308
  %v1310 = vpop.xlane.xlu0 %1309
  %vm1311 = vcmp.eq.f32.partialorder %v1308, %v1310
  %v1312 = vsel %vm1311, %v1307, inf
  %1313 = vmin.xlane.f32.xlu0 %v1312
  %v1314 = vpop.xlane.xlu0 %1313
  %v1315 = vcvt.f32.s32 %v1314
  %v1316 = vcvt.f32.s32 %v1310
  %v1317 = vshll.u32 %v1316, 16
  %v1318 = vadd.s32 %v1317, %v1315
  %v1319 = vand.u32 %v1164, 65535
  %v1320 = vshra.s32 %v1164, 16
  %v1321 = vcvt.s32.f32 %v1319
  %v1322 = vcvt.s32.f32 %v1320
  %1323 = vmin.xlane.f32.xlu0 %v1322
  %v1324 = vpop.xlane.xlu0 %1323
  %vm1325 = vcmp.eq.f32.partialorder %v1322, %v1324
  %v1326 = vsel %vm1325, %v1321, inf
  %1327 = vmin.xlane.f32.xlu0 %v1326
  %v1328 = vpop.xlane.xlu0 %1327
  %v1329 = vcvt.f32.s32 %v1328
  %v1330 = vcvt.f32.s32 %v1324
  %v1331 = vshll.u32 %v1330, 16
  %v1332 = vadd.s32 %v1331, %v1329
  %v1333 = vand.u32 %v1165, 65535
  %v1334 = vshra.s32 %v1165, 16
  %v1335 = vcvt.s32.f32 %v1333
  %v1336 = vcvt.s32.f32 %v1334
  %1337 = vmin.xlane.f32.xlu0 %v1336
  %v1338 = vpop.xlane.xlu0 %1337
  %vm1339 = vcmp.eq.f32.partialorder %v1336, %v1338
  %v1340 = vsel %vm1339, %v1335, inf
  %1341 = vmin.xlane.f32.xlu0 %v1340
  %v1342 = vpop.xlane.xlu0 %1341
  %v1343 = vcvt.f32.s32 %v1342
  %v1344 = vcvt.f32.s32 %v1338
  %v1345 = vshll.u32 %v1344, 16
  %v1346 = vadd.s32 %v1345, %v1343
  %v1347 = vand.u32 %v1166, 65535
  %v1348 = vshra.s32 %v1166, 16
  %v1349 = vcvt.s32.f32 %v1347
  %v1350 = vcvt.s32.f32 %v1348
  %1351 = vmin.xlane.f32.xlu0 %v1350
  %v1352 = vpop.xlane.xlu0 %1351
  %vm1353 = vcmp.eq.f32.partialorder %v1350, %v1352
  %v1354 = vsel %vm1353, %v1349, inf
  %1355 = vmin.xlane.f32.xlu0 %v1354
  %v1356 = vpop.xlane.xlu0 %1355
  %v1357 = vcvt.f32.s32 %v1356
  %v1358 = vcvt.f32.s32 %v1352
  %v1359 = vshll.u32 %v1358, 16
  %v1360 = vadd.s32 %v1359, %v1357
  %v1361 = vand.u32 %v1167, 65535
  %v1362 = vshra.s32 %v1167, 16
  %v1363 = vcvt.s32.f32 %v1361
  %v1364 = vcvt.s32.f32 %v1362
  %1365 = vmin.xlane.f32.xlu0 %v1364
  %v1366 = vpop.xlane.xlu0 %1365
  %vm1367 = vcmp.eq.f32.partialorder %v1364, %v1366
  %v1368 = vsel %vm1367, %v1363, inf
  %1369 = vmin.xlane.f32.xlu0 %v1368
  %v1370 = vpop.xlane.xlu0 %1369
  %v1371 = vcvt.f32.s32 %v1370
  %v1372 = vcvt.f32.s32 %v1366
  %v1373 = vshll.u32 %v1372, 16
  %v1374 = vadd.s32 %v1373, %v1371
  %v1375 = vand.u32 %v1168, 65535
  %v1376 = vshra.s32 %v1168, 16
  %v1377 = vcvt.s32.f32 %v1375
  %v1378 = vcvt.s32.f32 %v1376
  %1379 = vmin.xlane.f32.xlu0 %v1378
  %v1380 = vpop.xlane.xlu0 %1379
  %vm1381 = vcmp.eq.f32.partialorder %v1378, %v1380
  %v1382 = vsel %vm1381, %v1377, inf
  %1383 = vmin.xlane.f32.xlu0 %v1382
  %v1384 = vpop.xlane.xlu0 %1383
  %v1385 = vcvt.f32.s32 %v1384
  %v1386 = vcvt.f32.s32 %v1380
  %v1387 = vshll.u32 %v1386, 16
  %v1388 = vadd.s32 %v1387, %v1385
  %v1389 = vand.u32 %v1169, 65535
  %v1390 = vshra.s32 %v1169, 16
  %v1391 = vcvt.s32.f32 %v1389
  %v1392 = vcvt.s32.f32 %v1390
  %1393 = vmin.xlane.f32.xlu0 %v1392
  %v1394 = vpop.xlane.xlu0 %1393
  %vm1395 = vcmp.eq.f32.partialorder %v1392, %v1394
  %v1396 = vsel %vm1395, %v1391, inf
  %1397 = vmin.xlane.f32.xlu0 %v1396
  %v1398 = vpop.xlane.xlu0 %1397
  %v1399 = vcvt.f32.s32 %v1398
  %v1400 = vcvt.f32.s32 %v1394
  %v1401 = vshll.u32 %v1400, 16
  %v1402 = vadd.s32 %v1401, %v1399
  %v1403 = vand.u32 %v1170, 65535
  %v1404 = vshra.s32 %v1170, 16
  %v1405 = vcvt.s32.f32 %v1403
  %v1406 = vcvt.s32.f32 %v1404
  %1407 = vmin.xlane.f32.xlu0 %v1406
  %v1408 = vpop.xlane.xlu0 %1407
  %vm1409 = vcmp.eq.f32.partialorder %v1406, %v1408
  %v1410 = vsel %vm1409, %v1405, inf
  %1411 = vmin.xlane.f32.xlu0 %v1410
  %v1412 = vpop.xlane.xlu0 %1411
  %v1413 = vcvt.f32.s32 %v1412
  %v1414 = vcvt.f32.s32 %v1408
  %v1415 = vshll.u32 %v1414, 16
  %v1416 = vadd.s32 %v1415, %v1413
  %v1417 = vand.u32 %v1171, 65535
  %v1418 = vshra.s32 %v1171, 16
  %v1419 = vcvt.s32.f32 %v1417
  %v1420 = vcvt.s32.f32 %v1418
  %1421 = vmin.xlane.f32.xlu0 %v1420
  %v1422 = vpop.xlane.xlu0 %1421
  %vm1423 = vcmp.eq.f32.partialorder %v1420, %v1422
  %v1424 = vsel %vm1423, %v1419, inf
  %1425 = vmin.xlane.f32.xlu0 %v1424
  %v1426 = vpop.xlane.xlu0 %1425
  %v1427 = vcvt.f32.s32 %v1426
  %v1428 = vcvt.f32.s32 %v1422
  %v1429 = vshll.u32 %v1428, 16
  %v1430 = vadd.s32 %v1429, %v1427
  %v1431 = vand.u32 %v1172, 65535
  %v1432 = vshra.s32 %v1172, 16
  %v1433 = vcvt.s32.f32 %v1431
  %v1434 = vcvt.s32.f32 %v1432
  %1435 = vmin.xlane.f32.xlu0 %v1434
  %v1436 = vpop.xlane.xlu0 %1435
  %vm1437 = vcmp.eq.f32.partialorder %v1434, %v1436
  %v1438 = vsel %vm1437, %v1433, inf
  %1439 = vmin.xlane.f32.xlu0 %v1438
  %v1440 = vpop.xlane.xlu0 %1439
  %v1441 = vcvt.f32.s32 %v1440
  %v1442 = vcvt.f32.s32 %v1436
  %v1443 = vshll.u32 %v1442, 16
  %v1444 = vadd.s32 %v1443, %v1441
  %v1445 = vand.u32 %v1173, 65535
  %v1446 = vshra.s32 %v1173, 16
  %v1447 = vcvt.s32.f32 %v1445
  %v1448 = vcvt.s32.f32 %v1446
  %1449 = vmin.xlane.f32.xlu0 %v1448
  %v1450 = vpop.xlane.xlu0 %1449
  %vm1451 = vcmp.eq.f32.partialorder %v1448, %v1450
  %v1452 = vsel %vm1451, %v1447, inf
  %1453 = vmin.xlane.f32.xlu0 %v1452
  %v1454 = vpop.xlane.xlu0 %1453
  %v1455 = vcvt.f32.s32 %v1454
  %v1456 = vcvt.f32.s32 %v1450
  %v1457 = vshll.u32 %v1456, 16
  %v1458 = vadd.s32 %v1457, %v1455
  %v1459 = vand.u32 %v1174, 65535
  %v1460 = vshra.s32 %v1174, 16
  %v1461 = vcvt.s32.f32 %v1459
  %v1462 = vcvt.s32.f32 %v1460
  %1463 = vmin.xlane.f32.xlu0 %v1462
  %v1464 = vpop.xlane.xlu0 %1463
  %vm1465 = vcmp.eq.f32.partialorder %v1462, %v1464
  %v1466 = vsel %vm1465, %v1461, inf
  %1467 = vmin.xlane.f32.xlu0 %v1466
  %v1468 = vpop.xlane.xlu0 %1467
  %v1469 = vcvt.f32.s32 %v1468
  %v1470 = vcvt.f32.s32 %v1464
  %v1471 = vshll.u32 %v1470, 16
  %v1472 = vadd.s32 %v1471, %v1469
  %v1473 = vand.u32 %v1175, 65535
  %v1474 = vshra.s32 %v1175, 16
  %v1475 = vcvt.s32.f32 %v1473
  %v1476 = vcvt.s32.f32 %v1474
  %1477 = vmin.xlane.f32.xlu0 %v1476
  %v1478 = vpop.xlane.xlu0 %1477
  %vm1479 = vcmp.eq.f32.partialorder %v1476, %v1478
  %v1480 = vsel %vm1479, %v1475, inf
  %1481 = vmin.xlane.f32.xlu0 %v1480
  %v1482 = vpop.xlane.xlu0 %1481
  %v1483 = vcvt.f32.s32 %v1482
  %v1484 = vcvt.f32.s32 %v1478
  %v1485 = vshll.u32 %v1484, 16
  %v1486 = vadd.s32 %v1485, %v1483
  %v1487 = vand.u32 %v1176, 65535
  %v1488 = vshra.s32 %v1176, 16
  %v1489 = vcvt.s32.f32 %v1487
  %v1490 = vcvt.s32.f32 %v1488
  %1491 = vmin.xlane.f32.xlu0 %v1490
  %v1492 = vpop.xlane.xlu0 %1491
  %vm1493 = vcmp.eq.f32.partialorder %v1490, %v1492
  %v1494 = vsel %vm1493, %v1489, inf
  %1495 = vmin.xlane.f32.xlu0 %v1494
  %v1496 = vpop.xlane.xlu0 %1495
  %v1497 = vcvt.f32.s32 %v1496
  %v1498 = vcvt.f32.s32 %v1492
  %v1499 = vshll.u32 %v1498, 16
  %v1500 = vadd.s32 %v1499, %v1497
  %v1501 = vand.u32 %v1177, 65535
  %v1502 = vshra.s32 %v1177, 16
  %v1503 = vcvt.s32.f32 %v1501
  %v1504 = vcvt.s32.f32 %v1502
  %1505 = vmin.xlane.f32.xlu0 %v1504
  %v1506 = vpop.xlane.xlu0 %1505
  %vm1507 = vcmp.eq.f32.partialorder %v1504, %v1506
  %v1508 = vsel %vm1507, %v1503, inf
  %1509 = vmin.xlane.f32.xlu0 %v1508
  %v1510 = vpop.xlane.xlu0 %1509
  %v1511 = vcvt.f32.s32 %v1510
  %v1512 = vcvt.f32.s32 %v1506
  %v1513 = vshll.u32 %v1512, 16
  %v1514 = vadd.s32 %v1513, %v1511
  %v1515 = vand.u32 %v1178, 65535
  %v1516 = vshra.s32 %v1178, 16
  %v1517 = vcvt.s32.f32 %v1515
  %v1518 = vcvt.s32.f32 %v1516
  %1519 = vmin.xlane.f32.xlu0 %v1518
  %v1520 = vpop.xlane.xlu0 %1519
  %vm1521 = vcmp.eq.f32.partialorder %v1518, %v1520
  %v1522 = vsel %vm1521, %v1517, inf
  %1523 = vmin.xlane.f32.xlu0 %v1522
  %v1524 = vpop.xlane.xlu0 %1523
  %v1525 = vcvt.f32.s32 %v1524
  %v1526 = vcvt.f32.s32 %v1520
  %v1527 = vshll.u32 %v1526, 16
  %v1528 = vadd.s32 %v1527, %v1525
  %v1529 = vand.u32 %v1179, 65535
  %v1530 = vshra.s32 %v1179, 16
  %v1531 = vcvt.s32.f32 %v1529
  %v1532 = vcvt.s32.f32 %v1530
  %1533 = vmin.xlane.f32.xlu0 %v1532
  %v1534 = vpop.xlane.xlu0 %1533
  %vm1535 = vcmp.eq.f32.partialorder %v1532, %v1534
  %v1536 = vsel %vm1535, %v1531, inf
  %1537 = vmin.xlane.f32.xlu0 %v1536
  %v1538 = vpop.xlane.xlu0 %1537
  %v1539 = vcvt.f32.s32 %v1538
  %v1540 = vcvt.f32.s32 %v1534
  %v1541 = vshll.u32 %v1540, 16
  %v1542 = vadd.s32 %v1541, %v1539
  %v1543 = vand.u32 %v1180, 65535
  %v1544 = vshra.s32 %v1180, 16
  %v1545 = vcvt.s32.f32 %v1543
  %v1546 = vcvt.s32.f32 %v1544
  %1547 = vmin.xlane.f32.xlu0 %v1546
  %v1548 = vpop.xlane.xlu0 %1547
  %vm1549 = vcmp.eq.f32.partialorder %v1546, %v1548
  %v1550 = vsel %vm1549, %v1545, inf
  %1551 = vmin.xlane.f32.xlu0 %v1550
  %v1552 = vpop.xlane.xlu0 %1551
  %v1553 = vcvt.f32.s32 %v1552
  %v1554 = vcvt.f32.s32 %v1548
  %v1555 = vshll.u32 %v1554, 16
  %v1556 = vadd.s32 %v1555, %v1553
  %v1557 = vand.u32 %v1181, 65535
  %v1558 = vshra.s32 %v1181, 16
  %v1559 = vcvt.s32.f32 %v1557
  %v1560 = vcvt.s32.f32 %v1558
  %1561 = vmin.xlane.f32.xlu0 %v1560
  %v1562 = vpop.xlane.xlu0 %1561
  %vm1563 = vcmp.eq.f32.partialorder %v1560, %v1562
  %v1564 = vsel %vm1563, %v1559, inf
  %1565 = vmin.xlane.f32.xlu0 %v1564
  %v1566 = vpop.xlane.xlu0 %1565
  %v1567 = vcvt.f32.s32 %v1566
  %v1568 = vcvt.f32.s32 %v1562
  %v1569 = vshll.u32 %v1568, 16
  %v1570 = vadd.s32 %v1569, %v1567
  %v1571 = vand.u32 %v1182, 65535
  %v1572 = vshra.s32 %v1182, 16
  %v1573 = vcvt.s32.f32 %v1571
  %v1574 = vcvt.s32.f32 %v1572
  %1575 = vmin.xlane.f32.xlu0 %v1574
  %v1576 = vpop.xlane.xlu0 %1575
  %vm1577 = vcmp.eq.f32.partialorder %v1574, %v1576
  %v1578 = vsel %vm1577, %v1573, inf
  %1579 = vmin.xlane.f32.xlu0 %v1578
  %v1580 = vpop.xlane.xlu0 %1579
  %v1581 = vcvt.f32.s32 %v1580
  %v1582 = vcvt.f32.s32 %v1576
  %v1583 = vshll.u32 %v1582, 16
  %v1584 = vadd.s32 %v1583, %v1581
  %v1585 = vand.u32 %v1183, 65535
  %v1586 = vshra.s32 %v1183, 16
  %v1587 = vcvt.s32.f32 %v1585
  %v1588 = vcvt.s32.f32 %v1586
  %1589 = vmin.xlane.f32.xlu0 %v1588
  %v1590 = vpop.xlane.xlu0 %1589
  %vm1591 = vcmp.eq.f32.partialorder %v1588, %v1590
  %v1592 = vsel %vm1591, %v1587, inf
  %1593 = vmin.xlane.f32.xlu0 %v1592
  %v1594 = vpop.xlane.xlu0 %1593
  %v1595 = vcvt.f32.s32 %v1594
  %v1596 = vcvt.f32.s32 %v1590
  %v1597 = vshll.u32 %v1596, 16
  %v1598 = vadd.s32 %v1597, %v1595
  %v1599 = vand.u32 %v1184, 65535
  %v1600 = vshra.s32 %v1184, 16
  %v1601 = vcvt.s32.f32 %v1599
  %v1602 = vcvt.s32.f32 %v1600
  %1603 = vmin.xlane.f32.xlu0 %v1602
  %v1604 = vpop.xlane.xlu0 %1603
  %vm1605 = vcmp.eq.f32.partialorder %v1602, %v1604
  %v1606 = vsel %vm1605, %v1601, inf
  %1607 = vmin.xlane.f32.xlu0 %v1606
  %v1608 = vpop.xlane.xlu0 %1607
  %v1609 = vcvt.f32.s32 %v1608
  %v1610 = vcvt.f32.s32 %v1604
  %v1611 = vshll.u32 %v1610, 16
  %v1612 = vadd.s32 %v1611, %v1609
  %v1613 = vand.u32 %v1185, 65535
  %v1614 = vshra.s32 %v1185, 16
  %v1615 = vcvt.s32.f32 %v1613
  %v1616 = vcvt.s32.f32 %v1614
  %1617 = vmin.xlane.f32.xlu0 %v1616
  %v1618 = vpop.xlane.xlu0 %1617
  %vm1619 = vcmp.eq.f32.partialorder %v1616, %v1618
  %v1620 = vsel %vm1619, %v1615, inf
  %1621 = vmin.xlane.f32.xlu0 %v1620
  %v1622 = vpop.xlane.xlu0 %1621
  %v1623 = vcvt.f32.s32 %v1622
  %v1624 = vcvt.f32.s32 %v1618
  %v1625 = vshll.u32 %v1624, 16
  %v1626 = vadd.s32 %v1625, %v1623
  %v1627 = vand.u32 %v1186, 65535
  %v1628 = vshra.s32 %v1186, 16
  %v1629 = vcvt.s32.f32 %v1627
  %v1630 = vcvt.s32.f32 %v1628
  %1631 = vmin.xlane.f32.xlu0 %v1630
  %v1632 = vpop.xlane.xlu0 %1631
  %vm1633 = vcmp.eq.f32.partialorder %v1630, %v1632
  %v1634 = vsel %vm1633, %v1629, inf
  %1635 = vmin.xlane.f32.xlu0 %v1634
  %v1636 = vpop.xlane.xlu0 %1635
  %v1637 = vcvt.f32.s32 %v1636
  %v1638 = vcvt.f32.s32 %v1632
  %v1639 = vshll.u32 %v1638, 16
  %v1640 = vadd.s32 %v1639, %v1637
  %v1641 = vand.u32 %v1187, 65535
  %v1642 = vshra.s32 %v1187, 16
  %v1643 = vcvt.s32.f32 %v1641
  %v1644 = vcvt.s32.f32 %v1642
  %1645 = vmin.xlane.f32.xlu0 %v1644
  %v1646 = vpop.xlane.xlu0 %1645
  %vm1647 = vcmp.eq.f32.partialorder %v1644, %v1646
  %v1648 = vsel %vm1647, %v1643, inf
  %1649 = vmin.xlane.f32.xlu0 %v1648
  %v1650 = vpop.xlane.xlu0 %1649
  %v1651 = vcvt.f32.s32 %v1650
  %v1652 = vcvt.f32.s32 %v1646
  %v1653 = vshll.u32 %v1652, 16
  %v1654 = vadd.s32 %v1653, %v1651
  %v1655 = vand.u32 %v1188, 65535
  %v1656 = vshra.s32 %v1188, 16
  %v1657 = vcvt.s32.f32 %v1655
  %v1658 = vcvt.s32.f32 %v1656
  %1659 = vmin.xlane.f32.xlu0 %v1658
  %v1660 = vpop.xlane.xlu0 %1659
  %vm1661 = vcmp.eq.f32.partialorder %v1658, %v1660
  %v1662 = vsel %vm1661, %v1657, inf
  %1663 = vmin.xlane.f32.xlu0 %v1662
  %v1664 = vpop.xlane.xlu0 %1663
  %v1665 = vcvt.f32.s32 %v1664
  %v1666 = vcvt.f32.s32 %v1660
  %v1667 = vshll.u32 %v1666, 16
  %v1668 = vadd.s32 %v1667, %v1665
  %v1669 = vand.u32 %v1189, 65535
  %v1670 = vshra.s32 %v1189, 16
  %v1671 = vcvt.s32.f32 %v1669
  %v1672 = vcvt.s32.f32 %v1670
  %1673 = vmin.xlane.f32.xlu0 %v1672
  %v1674 = vpop.xlane.xlu0 %1673
  %vm1675 = vcmp.eq.f32.partialorder %v1672, %v1674
  %v1676 = vsel %vm1675, %v1671, inf
  %1677 = vmin.xlane.f32.xlu0 %v1676
  %v1678 = vpop.xlane.xlu0 %1677
  %v1679 = vcvt.f32.s32 %v1678
  %v1680 = vcvt.f32.s32 %v1674
  %v1681 = vshll.u32 %v1680, 16
  %v1682 = vadd.s32 %v1681, %v1679
  %v1683 = vand.u32 %v1190, 65535
  %v1684 = vshra.s32 %v1190, 16
  %v1685 = vcvt.s32.f32 %v1683
  %v1686 = vcvt.s32.f32 %v1684
  %1687 = vmin.xlane.f32.xlu0 %v1686
  %v1688 = vpop.xlane.xlu0 %1687
  %vm1689 = vcmp.eq.f32.partialorder %v1686, %v1688
  %v1690 = vsel %vm1689, %v1685, inf
  %1691 = vmin.xlane.f32.xlu0 %v1690
  %v1692 = vpop.xlane.xlu0 %1691
  %v1693 = vcvt.f32.s32 %v1692
  %v1694 = vcvt.f32.s32 %v1688
  %v1695 = vshll.u32 %v1694, 16
  %v1696 = vadd.s32 %v1695, %v1693
  %v1697 = vand.u32 %v1191, 65535
  %v1698 = vshra.s32 %v1191, 16
  %v1699 = vcvt.s32.f32 %v1697
  %v1700 = vcvt.s32.f32 %v1698
  %1701 = vmin.xlane.f32.xlu0 %v1700
  %v1702 = vpop.xlane.xlu0 %1701
  %vm1703 = vcmp.eq.f32.partialorder %v1700, %v1702
  %v1704 = vsel %vm1703, %v1699, inf
  %1705 = vmin.xlane.f32.xlu0 %v1704
  %v1706 = vpop.xlane.xlu0 %1705
  %v1707 = vcvt.f32.s32 %v1706
  %v1708 = vcvt.f32.s32 %v1702
  %v1709 = vshll.u32 %v1708, 16
  %v1710 = vadd.s32 %v1709, %v1707
  %v1711 = vand.u32 %v1192, 65535
  %v1712 = vshra.s32 %v1192, 16
  %v1713 = vcvt.s32.f32 %v1711
  %v1714 = vcvt.s32.f32 %v1712
  %1715 = vmin.xlane.f32.xlu0 %v1714
  %v1716 = vpop.xlane.xlu0 %1715
  %vm1717 = vcmp.eq.f32.partialorder %v1714, %v1716
  %v1718 = vsel %vm1717, %v1713, inf
  %1719 = vmin.xlane.f32.xlu0 %v1718
  %v1720 = vpop.xlane.xlu0 %1719
  %v1721 = vcvt.f32.s32 %v1720
  %v1722 = vcvt.f32.s32 %v1716
  %v1723 = vshll.u32 %v1722, 16
  %v1724 = vadd.s32 %v1723, %v1721
  %v1725 = vand.u32 %v1193, 65535
  %v1726 = vshra.s32 %v1193, 16
  %v1727 = vcvt.s32.f32 %v1725
  %v1728 = vcvt.s32.f32 %v1726
  %1729 = vmin.xlane.f32.xlu0 %v1728
  %v1730 = vpop.xlane.xlu0 %1729
  %vm1731 = vcmp.eq.f32.partialorder %v1728, %v1730
  %v1732 = vsel %vm1731, %v1727, inf
  %1733 = vmin.xlane.f32.xlu0 %v1732
  %v1734 = vpop.xlane.xlu0 %1733
  %v1735 = vcvt.f32.s32 %v1734
  %v1736 = vcvt.f32.s32 %v1730
  %v1737 = vshll.u32 %v1736, 16
  %v1738 = vadd.s32 %v1737, %v1735
  %v1739 = vand.u32 %v1194, 65535
  %v1740 = vshra.s32 %v1194, 16
  %v1741 = vcvt.s32.f32 %v1739
  %v1742 = vcvt.s32.f32 %v1740
  %1743 = vmin.xlane.f32.xlu0 %v1742
  %v1744 = vpop.xlane.xlu0 %1743
  %vm1745 = vcmp.eq.f32.partialorder %v1742, %v1744
  %v1746 = vsel %vm1745, %v1741, inf
  %1747 = vmin.xlane.f32.xlu0 %v1746
  %v1748 = vpop.xlane.xlu0 %1747
  %v1749 = vcvt.f32.s32 %v1748
  %v1750 = vcvt.f32.s32 %v1744
  %v1751 = vshll.u32 %v1750, 16
  %v1752 = vadd.s32 %v1751, %v1749
  %v1753 = vand.u32 %v1195, 65535
  %v1754 = vshra.s32 %v1195, 16
  %v1755 = vcvt.s32.f32 %v1753
  %v1756 = vcvt.s32.f32 %v1754
  %1757 = vmin.xlane.f32.xlu0 %v1756
  %v1758 = vpop.xlane.xlu0 %1757
  %vm1759 = vcmp.eq.f32.partialorder %v1756, %v1758
  %v1760 = vsel %vm1759, %v1755, inf
  %1761 = vmin.xlane.f32.xlu0 %v1760
  %v1762 = vpop.xlane.xlu0 %1761
  %v1763 = vcvt.f32.s32 %v1762
  %v1764 = vcvt.f32.s32 %v1758
  %v1765 = vshll.u32 %v1764, 16
  %v1766 = vadd.s32 %v1765, %v1763
  %v1767 = vand.u32 %v1196, 65535
  %v1768 = vshra.s32 %v1196, 16
  %v1769 = vcvt.s32.f32 %v1767
  %v1770 = vcvt.s32.f32 %v1768
  %1771 = vmin.xlane.f32.xlu0 %v1770
  %v1772 = vpop.xlane.xlu0 %1771
  %vm1773 = vcmp.eq.f32.partialorder %v1770, %v1772
  %v1774 = vsel %vm1773, %v1769, inf
  %1775 = vmin.xlane.f32.xlu0 %v1774
  %v1776 = vpop.xlane.xlu0 %1775
  %v1777 = vcvt.f32.s32 %v1776
  %v1778 = vcvt.f32.s32 %v1772
  %v1779 = vshll.u32 %v1778, 16
  %v1780 = vadd.s32 %v1779, %v1777
  %v1781 = vand.u32 %v1197, 65535
  %v1782 = vshra.s32 %v1197, 16
  %v1783 = vcvt.s32.f32 %v1781
  %v1784 = vcvt.s32.f32 %v1782
  %1785 = vmin.xlane.f32.xlu0 %v1784
  %v1786 = vpop.xlane.xlu0 %1785
  %vm1787 = vcmp.eq.f32.partialorder %v1784, %v1786
  %v1788 = vsel %vm1787, %v1783, inf
  %1789 = vmin.xlane.f32.xlu0 %v1788
  %v1790 = vpop.xlane.xlu0 %1789
  %v1791 = vcvt.f32.s32 %v1790
  %v1792 = vcvt.f32.s32 %v1786
  %v1793 = vshll.u32 %v1792, 16
  %v1794 = vadd.s32 %v1793, %v1791
  %v1795 = vand.u32 %v1198, 65535
  %v1796 = vshra.s32 %v1198, 16
  %v1797 = vcvt.s32.f32 %v1795
  %v1798 = vcvt.s32.f32 %v1796
  %1799 = vmin.xlane.f32.xlu0 %v1798
  %v1800 = vpop.xlane.xlu0 %1799
  %vm1801 = vcmp.eq.f32.partialorder %v1798, %v1800
  %v1802 = vsel %vm1801, %v1797, inf
  %1803 = vmin.xlane.f32.xlu0 %v1802
  %v1804 = vpop.xlane.xlu0 %1803
  %v1805 = vcvt.f32.s32 %v1804
  %v1806 = vcvt.f32.s32 %v1800
  %v1807 = vshll.u32 %v1806, 16
  %v1808 = vadd.s32 %v1807, %v1805
  %v1809 = vand.u32 %v1199, 65535
  %v1810 = vshra.s32 %v1199, 16
  %v1811 = vcvt.s32.f32 %v1809
  %v1812 = vcvt.s32.f32 %v1810
  %1813 = vmin.xlane.f32.xlu0 %v1812
  %v1814 = vpop.xlane.xlu0 %1813
  %vm1815 = vcmp.eq.f32.partialorder %v1812, %v1814
  %v1816 = vsel %vm1815, %v1811, inf
  %1817 = vmin.xlane.f32.xlu0 %v1816
  %v1818 = vpop.xlane.xlu0 %1817
  %v1819 = vcvt.f32.s32 %v1818
  %v1820 = vcvt.f32.s32 %v1814
  %v1821 = vshll.u32 %v1820, 16
  %v1822 = vadd.s32 %v1821, %v1819
  %v1823 = vand.u32 %v1200, 65535
  %v1824 = vshra.s32 %v1200, 16
  %v1825 = vcvt.s32.f32 %v1823
  %v1826 = vcvt.s32.f32 %v1824
  %1827 = vmin.xlane.f32.xlu0 %v1826
  %v1828 = vpop.xlane.xlu0 %1827
  %vm1829 = vcmp.eq.f32.partialorder %v1826, %v1828
  %v1830 = vsel %vm1829, %v1825, inf
  %1831 = vmin.xlane.f32.xlu0 %v1830
  %v1832 = vpop.xlane.xlu0 %1831
  %v1833 = vcvt.f32.s32 %v1832
  %v1834 = vcvt.f32.s32 %v1828
  %v1835 = vshll.u32 %v1834, 16
  %v1836 = vadd.s32 %v1835, %v1833
  %v1837 = vand.u32 %v1201, 65535
  %v1838 = vshra.s32 %v1201, 16
  %v1839 = vcvt.s32.f32 %v1837
  %v1840 = vcvt.s32.f32 %v1838
  %1841 = vmin.xlane.f32.xlu0 %v1840
  %v1842 = vpop.xlane.xlu0 %1841
  %vm1843 = vcmp.eq.f32.partialorder %v1840, %v1842
  %v1844 = vsel %vm1843, %v1839, inf
  %1845 = vmin.xlane.f32.xlu0 %v1844
  %v1846 = vpop.xlane.xlu0 %1845
  %v1847 = vcvt.f32.s32 %v1846
  %v1848 = vcvt.f32.s32 %v1842
  %v1849 = vshll.u32 %v1848, 16
  %v1850 = vadd.s32 %v1849, %v1847
  %v1851 = vand.u32 %v1202, 65535
  %v1852 = vshra.s32 %v1202, 16
  %v1853 = vcvt.s32.f32 %v1851
  %v1854 = vcvt.s32.f32 %v1852
  %1855 = vmin.xlane.f32.xlu0 %v1854
  %v1856 = vpop.xlane.xlu0 %1855
  %vm1857 = vcmp.eq.f32.partialorder %v1854, %v1856
  %v1858 = vsel %vm1857, %v1853, inf
  %1859 = vmin.xlane.f32.xlu0 %v1858
  %v1860 = vpop.xlane.xlu0 %1859
  %v1861 = vcvt.f32.s32 %v1860
  %v1862 = vcvt.f32.s32 %v1856
  %v1863 = vshll.u32 %v1862, 16
  %v1864 = vadd.s32 %v1863, %v1861
  %v1865 = vand.u32 %v1203, 65535
  %v1866 = vshra.s32 %v1203, 16
  %v1867 = vcvt.s32.f32 %v1865
  %v1868 = vcvt.s32.f32 %v1866
  %1869 = vmin.xlane.f32.xlu0 %v1868
  %v1870 = vpop.xlane.xlu0 %1869
  %vm1871 = vcmp.eq.f32.partialorder %v1868, %v1870
  %v1872 = vsel %vm1871, %v1867, inf
  %1873 = vmin.xlane.f32.xlu0 %v1872
  %v1874 = vpop.xlane.xlu0 %1873
  %v1875 = vcvt.f32.s32 %v1874
  %v1876 = vcvt.f32.s32 %v1870
  %v1877 = vshll.u32 %v1876, 16
  %v1878 = vadd.s32 %v1877, %v1875
  %v1879 = vand.u32 %v1204, 65535
  %v1880 = vshra.s32 %v1204, 16
  %v1881 = vcvt.s32.f32 %v1879
  %v1882 = vcvt.s32.f32 %v1880
  %1883 = vmin.xlane.f32.xlu0 %v1882
  %v1884 = vpop.xlane.xlu0 %1883
  %vm1885 = vcmp.eq.f32.partialorder %v1882, %v1884
  %v1886 = vsel %vm1885, %v1881, inf
  %1887 = vmin.xlane.f32.xlu0 %v1886
  %v1888 = vpop.xlane.xlu0 %1887
  %v1889 = vcvt.f32.s32 %v1888
  %v1890 = vcvt.f32.s32 %v1884
  %v1891 = vshll.u32 %v1890, 16
  %v1892 = vadd.s32 %v1891, %v1889
  %v1893 = vand.u32 %v1205, 65535
  %v1894 = vshra.s32 %v1205, 16
  %v1895 = vcvt.s32.f32 %v1893
  %v1896 = vcvt.s32.f32 %v1894
  %1897 = vmin.xlane.f32.xlu0 %v1896
  %v1898 = vpop.xlane.xlu0 %1897
  %vm1899 = vcmp.eq.f32.partialorder %v1896, %v1898
  %v1900 = vsel %vm1899, %v1895, inf
  %1901 = vmin.xlane.f32.xlu0 %v1900
  %v1902 = vpop.xlane.xlu0 %1901
  %v1903 = vcvt.f32.s32 %v1902
  %v1904 = vcvt.f32.s32 %v1898
  %v1905 = vshll.u32 %v1904, 16
  %v1906 = vadd.s32 %v1905, %v1903
  %v1907 = vand.u32 %v1206, 65535
  %v1908 = vshra.s32 %v1206, 16
  %v1909 = vcvt.s32.f32 %v1907
  %v1910 = vcvt.s32.f32 %v1908
  %1911 = vmin.xlane.f32.xlu0 %v1910
  %v1912 = vpop.xlane.xlu0 %1911
  %vm1913 = vcmp.eq.f32.partialorder %v1910, %v1912
  %v1914 = vsel %vm1913, %v1909, inf
  %1915 = vmin.xlane.f32.xlu0 %v1914
  %v1916 = vpop.xlane.xlu0 %1915
  %v1917 = vcvt.f32.s32 %v1916
  %v1918 = vcvt.f32.s32 %v1912
  %v1919 = vshll.u32 %v1918, 16
  %v1920 = vadd.s32 %v1919, %v1917
  %v1921 = vand.u32 %v1207, 65535
  %v1922 = vshra.s32 %v1207, 16
  %v1923 = vcvt.s32.f32 %v1921
  %v1924 = vcvt.s32.f32 %v1922
  %1925 = vmin.xlane.f32.xlu0 %v1924
  %v1926 = vpop.xlane.xlu0 %1925
  %vm1927 = vcmp.eq.f32.partialorder %v1924, %v1926
  %v1928 = vsel %vm1927, %v1923, inf
  %1929 = vmin.xlane.f32.xlu0 %v1928
  %v1930 = vpop.xlane.xlu0 %1929
  %v1931 = vcvt.f32.s32 %v1930
  %v1932 = vcvt.f32.s32 %v1926
  %v1933 = vshll.u32 %v1932, 16
  %v1934 = vadd.s32 %v1933, %v1931
  %v1935 = vand.u32 %v1208, 65535
  %v1936 = vshra.s32 %v1208, 16
  %v1937 = vcvt.s32.f32 %v1935
  %v1938 = vcvt.s32.f32 %v1936
  %1939 = vmin.xlane.f32.xlu0 %v1938
  %v1940 = vpop.xlane.xlu0 %1939
  %vm1941 = vcmp.eq.f32.partialorder %v1938, %v1940
  %v1942 = vsel %vm1941, %v1937, inf
  %1943 = vmin.xlane.f32.xlu0 %v1942
  %v1944 = vpop.xlane.xlu0 %1943
  %v1945 = vcvt.f32.s32 %v1944
  %v1946 = vcvt.f32.s32 %v1940
  %v1947 = vshll.u32 %v1946, 16
  %v1948 = vadd.s32 %v1947, %v1945
  %v1949 = vand.u32 %v1209, 65535
  %v1950 = vshra.s32 %v1209, 16
  %v1951 = vcvt.s32.f32 %v1949
  %v1952 = vcvt.s32.f32 %v1950
  %1953 = vmin.xlane.f32.xlu0 %v1952
  %v1954 = vpop.xlane.xlu0 %1953
  %vm1955 = vcmp.eq.f32.partialorder %v1952, %v1954
  %v1956 = vsel %vm1955, %v1951, inf
  %1957 = vmin.xlane.f32.xlu0 %v1956
  %v1958 = vpop.xlane.xlu0 %1957
  %v1959 = vcvt.f32.s32 %v1958
  %v1960 = vcvt.f32.s32 %v1954
  %v1961 = vshll.u32 %v1960, 16
  %v1962 = vadd.s32 %v1961, %v1959
  %v1963 = vand.u32 %v1210, 65535
  %v1964 = vshra.s32 %v1210, 16
  %v1965 = vcvt.s32.f32 %v1963
  %v1966 = vcvt.s32.f32 %v1964
  %1967 = vmin.xlane.f32.xlu0 %v1966
  %v1968 = vpop.xlane.xlu0 %1967
  %vm1969 = vcmp.eq.f32.partialorder %v1966, %v1968
  %v1970 = vsel %vm1969, %v1965, inf
  %1971 = vmin.xlane.f32.xlu0 %v1970
  %v1972 = vpop.xlane.xlu0 %1971
  %v1973 = vcvt.f32.s32 %v1972
  %v1974 = vcvt.f32.s32 %v1968
  %v1975 = vshll.u32 %v1974, 16
  %v1976 = vadd.s32 %v1975, %v1973
  %v1977 = vand.u32 %v1211, 65535
  %v1978 = vshra.s32 %v1211, 16
  %v1979 = vcvt.s32.f32 %v1977
  %v1980 = vcvt.s32.f32 %v1978
  %1981 = vmin.xlane.f32.xlu0 %v1980
  %v1982 = vpop.xlane.xlu0 %1981
  %vm1983 = vcmp.eq.f32.partialorder %v1980, %v1982
  %v1984 = vsel %vm1983, %v1979, inf
  %1985 = vmin.xlane.f32.xlu0 %v1984
  %v1986 = vpop.xlane.xlu0 %1985
  %v1987 = vcvt.f32.s32 %v1986
  %v1988 = vcvt.f32.s32 %v1982
  %v1989 = vshll.u32 %v1988, 16
  %v1990 = vadd.s32 %v1989, %v1987
  %v1991 = vand.u32 %v1212, 65535
  %v1992 = vshra.s32 %v1212, 16
  %v1993 = vcvt.s32.f32 %v1991
  %v1994 = vcvt.s32.f32 %v1992
  %1995 = vmin.xlane.f32.xlu0 %v1994
  %v1996 = vpop.xlane.xlu0 %1995
  %vm1997 = vcmp.eq.f32.partialorder %v1994, %v1996
  %v1998 = vsel %vm1997, %v1993, inf
  %1999 = vmin.xlane.f32.xlu0 %v1998
  %v2000 = vpop.xlane.xlu0 %1999
  %v2001 = vcvt.f32.s32 %v2000
  %v2002 = vcvt.f32.s32 %v1996
  %v2003 = vshll.u32 %v2002, 16
  %v2004 = vadd.s32 %v2003, %v2001
  %v2005 = vand.u32 %v1213, 65535
  %v2006 = vshra.s32 %v1213, 16
  %v2007 = vcvt.s32.f32 %v2005
  %v2008 = vcvt.s32.f32 %v2006
  %2009 = vmin.xlane.f32.xlu0 %v2008
  %v2010 = vpop.xlane.xlu0 %2009
  %vm2011 = vcmp.eq.f32.partialorder %v2008, %v2010
  %v2012 = vsel %vm2011, %v2007, inf
  %2013 = vmin.xlane.f32.xlu0 %v2012
  %v2014 = vpop.xlane.xlu0 %2013
  %v2015 = vcvt.f32.s32 %v2014
  %v2016 = vcvt.f32.s32 %v2010
  %v2017 = vshll.u32 %v2016, 16
  %v2018 = vadd.s32 %v2017, %v2015
  %v2019 = vand.u32 %v1214, 65535
  %v2020 = vshra.s32 %v1214, 16
  %v2021 = vcvt.s32.f32 %v2019
  %v2022 = vcvt.s32.f32 %v2020
  %2023 = vmin.xlane.f32.xlu0 %v2022
  %v2024 = vpop.xlane.xlu0 %2023
  %vm2025 = vcmp.eq.f32.partialorder %v2022, %v2024
  %v2026 = vsel %vm2025, %v2021, inf
  %2027 = vmin.xlane.f32.xlu0 %v2026
  %v2028 = vpop.xlane.xlu0 %2027
  %v2029 = vcvt.f32.s32 %v2028
  %v2030 = vcvt.f32.s32 %v2024
  %v2031 = vshll.u32 %v2030, 16
  %v2032 = vadd.s32 %v2031, %v2029
  %v2033 = vand.u32 %v1215, 65535
  %v2034 = vshra.s32 %v1215, 16
  %v2035 = vcvt.s32.f32 %v2033
  %v2036 = vcvt.s32.f32 %v2034
  %2037 = vmin.xlane.f32.xlu0 %v2036
  %v2038 = vpop.xlane.xlu0 %2037
  %vm2039 = vcmp.eq.f32.partialorder %v2036, %v2038
  %v2040 = vsel %vm2039, %v2035, inf
  %2041 = vmin.xlane.f32.xlu0 %v2040
  %v2042 = vpop.xlane.xlu0 %2041
  %v2043 = vcvt.f32.s32 %v2042
  %v2044 = vcvt.f32.s32 %v2038
  %v2045 = vshll.u32 %v2044, 16
  %v2046 = vadd.s32 %v2045, %v2043
  %v2047 = vand.u32 %v1216, 65535
  %v2048 = vshra.s32 %v1216, 16
  %v2049 = vcvt.s32.f32 %v2047
  %v2050 = vcvt.s32.f32 %v2048
  %2051 = vmin.xlane.f32.xlu0 %v2050
  %v2052 = vpop.xlane.xlu0 %2051
  %vm2053 = vcmp.eq.f32.partialorder %v2050, %v2052
  %v2054 = vsel %vm2053, %v2049, inf
  %2055 = vmin.xlane.f32.xlu0 %v2054
  %v2056 = vpop.xlane.xlu0 %2055
  %v2057 = vcvt.f32.s32 %v2056
  %v2058 = vcvt.f32.s32 %v2052
  %v2059 = vshll.u32 %v2058, 16
  %v2060 = vadd.s32 %v2059, %v2057
  %v2061 = vand.u32 %v1217, 65535
  %v2062 = vshra.s32 %v1217, 16
  %v2063 = vcvt.s32.f32 %v2061
  %v2064 = vcvt.s32.f32 %v2062
  %2065 = vmin.xlane.f32.xlu0 %v2064
  %v2066 = vpop.xlane.xlu0 %2065
  %vm2067 = vcmp.eq.f32.partialorder %v2064, %v2066
  %v2068 = vsel %vm2067, %v2063, inf
  %2069 = vmin.xlane.f32.xlu0 %v2068
  %v2070 = vpop.xlane.xlu0 %2069
  %v2071 = vcvt.f32.s32 %v2070
  %v2072 = vcvt.f32.s32 %v2066
  %v2073 = vshll.u32 %v2072, 16
  %v2074 = vadd.s32 %v2073, %v2071
  %v2075 = vand.u32 %v1218, 65535
  %v2076 = vshra.s32 %v1218, 16
  %v2077 = vcvt.s32.f32 %v2075
  %v2078 = vcvt.s32.f32 %v2076
  %2079 = vmin.xlane.f32.xlu0 %v2078
  %v2080 = vpop.xlane.xlu0 %2079
  %vm2081 = vcmp.eq.f32.partialorder %v2078, %v2080
  %v2082 = vsel %vm2081, %v2077, inf
  %2083 = vmin.xlane.f32.xlu0 %v2082
  %v2084 = vpop.xlane.xlu0 %2083
  %v2085 = vcvt.f32.s32 %v2084
  %v2086 = vcvt.f32.s32 %v2080
  %v2087 = vshll.u32 %v2086, 16
  %v2088 = vadd.s32 %v2087, %v2085
  %v2089 = vand.u32 %v1219, 65535
  %v2090 = vshra.s32 %v1219, 16
  %v2091 = vcvt.s32.f32 %v2089
  %v2092 = vcvt.s32.f32 %v2090
  %2093 = vmin.xlane.f32.xlu0 %v2092
  %v2094 = vpop.xlane.xlu0 %2093
  %vm2095 = vcmp.eq.f32.partialorder %v2092, %v2094
  %v2096 = vsel %vm2095, %v2091, inf
  %2097 = vmin.xlane.f32.xlu0 %v2096
  %v2098 = vpop.xlane.xlu0 %2097
  %v2099 = vcvt.f32.s32 %v2098
  %v2100 = vcvt.f32.s32 %v2094
  %v2101 = vshll.u32 %v2100, 16
  %v2102 = vadd.s32 %v2101, %v2099
  %v2103 = vand.u32 %v1220, 65535
  %v2104 = vshra.s32 %v1220, 16
  %v2105 = vcvt.s32.f32 %v2103
  %v2106 = vcvt.s32.f32 %v2104
  %2107 = vmin.xlane.f32.xlu0 %v2106
  %v2108 = vpop.xlane.xlu0 %2107
  %vm2109 = vcmp.eq.f32.partialorder %v2106, %v2108
  %v2110 = vsel %vm2109, %v2105, inf
  %2111 = vmin.xlane.f32.xlu0 %v2110
  %v2112 = vpop.xlane.xlu0 %2111
  %v2113 = vcvt.f32.s32 %v2112
  %v2114 = vcvt.f32.s32 %v2108
  %v2115 = vshll.u32 %v2114, 16
  %v2116 = vadd.s32 %v2115, %v2113
  %vm2117 = vcmp.eq.s32.totalorder %v964, %v1234
  %vm2118 = vcmp.eq.s32.totalorder %v964, %v1248
  %vm2119 = vcmp.eq.s32.totalorder %v964, %v1262
  %vm2120 = vcmp.eq.s32.totalorder %v964, %v1276
  %vm2121 = vcmp.eq.s32.totalorder %v964, %v1290
  %vm2122 = vcmp.eq.s32.totalorder %v964, %v1304
  %vm2123 = vcmp.eq.s32.totalorder %v964, %v1318
  %vm2124 = vcmp.eq.s32.totalorder %v964, %v1332
  %vm2125 = vcmp.eq.s32.totalorder %v964, %v1346
  %vm2126 = vcmp.eq.s32.totalorder %v964, %v1360
  %vm2127 = vcmp.eq.s32.totalorder %v964, %v1374
  %vm2128 = vcmp.eq.s32.totalorder %v964, %v1388
  %vm2129 = vcmp.eq.s32.totalorder %v964, %v1402
  %vm2130 = vcmp.eq.s32.totalorder %v964, %v1416
  %vm2131 = vcmp.eq.s32.totalorder %v964, %v1430
  %vm2132 = vcmp.eq.s32.totalorder %v964, %v1444
  %vm2133 = vcmp.eq.s32.totalorder %v964, %v1458
  %vm2134 = vcmp.eq.s32.totalorder %v964, %v1472
  %vm2135 = vcmp.eq.s32.totalorder %v964, %v1486
  %vm2136 = vcmp.eq.s32.totalorder %v964, %v1500
  %vm2137 = vcmp.eq.s32.totalorder %v964, %v1514
  %vm2138 = vcmp.eq.s32.totalorder %v964, %v1528
  %vm2139 = vcmp.eq.s32.totalorder %v964, %v1542
  %vm2140 = vcmp.eq.s32.totalorder %v964, %v1556
  %vm2141 = vcmp.eq.s32.totalorder %v964, %v1570
  %vm2142 = vcmp.eq.s32.totalorder %v964, %v1584
  %vm2143 = vcmp.eq.s32.totalorder %v964, %v1598
  %vm2144 = vcmp.eq.s32.totalorder %v964, %v1612
  %vm2145 = vcmp.eq.s32.totalorder %v964, %v1626
  %vm2146 = vcmp.eq.s32.totalorder %v964, %v1640
  %vm2147 = vcmp.eq.s32.totalorder %v964, %v1654
  %vm2148 = vcmp.eq.s32.totalorder %v964, %v1668
  %vm2149 = vcmp.eq.s32.totalorder %v964, %v1682
  %vm2150 = vcmp.eq.s32.totalorder %v964, %v1696
  %vm2151 = vcmp.eq.s32.totalorder %v964, %v1710
  %vm2152 = vcmp.eq.s32.totalorder %v964, %v1724
  %vm2153 = vcmp.eq.s32.totalorder %v964, %v1738
  %vm2154 = vcmp.eq.s32.totalorder %v964, %v1752
  %vm2155 = vcmp.eq.s32.totalorder %v964, %v1766
  %vm2156 = vcmp.eq.s32.totalorder %v964, %v1780
  %vm2157 = vcmp.eq.s32.totalorder %v964, %v1794
  %vm2158 = vcmp.eq.s32.totalorder %v964, %v1808
  %vm2159 = vcmp.eq.s32.totalorder %v964, %v1822
  %vm2160 = vcmp.eq.s32.totalorder %v964, %v1836
  %vm2161 = vcmp.eq.s32.totalorder %v964, %v1850
  %vm2162 = vcmp.eq.s32.totalorder %v964, %v1864
  %vm2163 = vcmp.eq.s32.totalorder %v964, %v1878
  %vm2164 = vcmp.eq.s32.totalorder %v964, %v1892
  %vm2165 = vcmp.eq.s32.totalorder %v964, %v1906
  %vm2166 = vcmp.eq.s32.totalorder %v964, %v1920
  %vm2167 = vcmp.eq.s32.totalorder %v964, %v1934
  %vm2168 = vcmp.eq.s32.totalorder %v964, %v1948
  %vm2169 = vcmp.eq.s32.totalorder %v964, %v1962
  %vm2170 = vcmp.eq.s32.totalorder %v964, %v1976
  %vm2171 = vcmp.eq.s32.totalorder %v964, %v1990
  %vm2172 = vcmp.eq.s32.totalorder %v964, %v2004
  %vm2173 = vcmp.eq.s32.totalorder %v964, %v2018
  %vm2174 = vcmp.eq.s32.totalorder %v964, %v2032
  %vm2175 = vcmp.eq.s32.totalorder %v964, %v2046
  %vm2176 = vcmp.eq.s32.totalorder %v964, %v2060
  %vm2177 = vcmp.eq.s32.totalorder %v964, %v2074
  %vm2178 = vcmp.eq.s32.totalorder %v964, %v2088
  %vm2179 = vcmp.eq.s32.totalorder %v964, %v2102
  %vm2180 = vcmp.eq.s32.totalorder %v964, %v2116
  %v2181 = vsel %vm2117, 1, 0
  %v2182 = vsel %vm2118, 1, 0
  %v2183 = vsel %vm2119, 1, 0
  %v2184 = vsel %vm2120, 1, 0
  %v2185 = vsel %vm2121, 1, 0
  %v2186 = vsel %vm2122, 1, 0
  %v2187 = vsel %vm2123, 1, 0
  %v2188 = vsel %vm2124, 1, 0
  %v2189 = vsel %vm2125, 1, 0
  %v2190 = vsel %vm2126, 1, 0
  %v2191 = vsel %vm2127, 1, 0
  %v2192 = vsel %vm2128, 1, 0
  %v2193 = vsel %vm2129, 1, 0
  %v2194 = vsel %vm2130, 1, 0
  %v2195 = vsel %vm2131, 1, 0
  %v2196 = vsel %vm2132, 1, 0
  %v2197 = vsel %vm2133, 1, 0
  %v2198 = vsel %vm2134, 1, 0
  %v2199 = vsel %vm2135, 1, 0
  %v2200 = vsel %vm2136, 1, 0
  %v2201 = vsel %vm2137, 1, 0
  %v2202 = vsel %vm2138, 1, 0
  %v2203 = vsel %vm2139, 1, 0
  %v2204 = vsel %vm2140, 1, 0
  %v2205 = vsel %vm2141, 1, 0
  %v2206 = vsel %vm2142, 1, 0
  %v2207 = vsel %vm2143, 1, 0
  %v2208 = vsel %vm2144, 1, 0
  %v2209 = vsel %vm2145, 1, 0
  %v2210 = vsel %vm2146, 1, 0
  %v2211 = vsel %vm2147, 1, 0
  %v2212 = vsel %vm2148, 1, 0
  %v2213 = vsel %vm2149, 1, 0
  %v2214 = vsel %vm2150, 1, 0
  %v2215 = vsel %vm2151, 1, 0
  %v2216 = vsel %vm2152, 1, 0
  %v2217 = vsel %vm2153, 1, 0
  %v2218 = vsel %vm2154, 1, 0
  %v2219 = vsel %vm2155, 1, 0
  %v2220 = vsel %vm2156, 1, 0
  %v2221 = vsel %vm2157, 1, 0
  %v2222 = vsel %vm2158, 1, 0
  %v2223 = vsel %vm2159, 1, 0
  %v2224 = vsel %vm2160, 1, 0
  %v2225 = vsel %vm2161, 1, 0
  %v2226 = vsel %vm2162, 1, 0
  %v2227 = vsel %vm2163, 1, 0
  %v2228 = vsel %vm2164, 1, 0
  %v2229 = vsel %vm2165, 1, 0
  %v2230 = vsel %vm2166, 1, 0
  %v2231 = vsel %vm2167, 1, 0
  %v2232 = vsel %vm2168, 1, 0
  %v2233 = vsel %vm2169, 1, 0
  %v2234 = vsel %vm2170, 1, 0
  %v2235 = vsel %vm2171, 1, 0
  %v2236 = vsel %vm2172, 1, 0
  %v2237 = vsel %vm2173, 1, 0
  %v2238 = vsel %vm2174, 1, 0
  %v2239 = vsel %vm2175, 1, 0
  %v2240 = vsel %vm2176, 1, 0
  %v2241 = vsel %vm2177, 1, 0
  %v2242 = vsel %vm2178, 1, 0
  %v2243 = vsel %vm2179, 1, 0
  %v2244 = vsel %vm2180, 1, 0
  %v2245 = vcvt.s32.f32 %v2181
  %v2246 = vcvt.s32.f32 %v2182
  %v2247 = vcvt.s32.f32 %v2183
  %v2248 = vcvt.s32.f32 %v2184
  %v2249 = vcvt.s32.f32 %v2185
  %v2250 = vcvt.s32.f32 %v2186
  %v2251 = vcvt.s32.f32 %v2187
  %v2252 = vcvt.s32.f32 %v2188
  %v2253 = vcvt.s32.f32 %v2189
  %v2254 = vcvt.s32.f32 %v2190
  %v2255 = vcvt.s32.f32 %v2191
  %v2256 = vcvt.s32.f32 %v2192
  %v2257 = vcvt.s32.f32 %v2193
  %v2258 = vcvt.s32.f32 %v2194
  %v2259 = vcvt.s32.f32 %v2195
  %v2260 = vcvt.s32.f32 %v2196
  %v2261 = vcvt.s32.f32 %v2197
  %v2262 = vcvt.s32.f32 %v2198
  %v2263 = vcvt.s32.f32 %v2199
  %v2264 = vcvt.s32.f32 %v2200
  %v2265 = vcvt.s32.f32 %v2201
  %v2266 = vcvt.s32.f32 %v2202
  %v2267 = vcvt.s32.f32 %v2203
  %v2268 = vcvt.s32.f32 %v2204
  %v2269 = vcvt.s32.f32 %v2205
  %v2270 = vcvt.s32.f32 %v2206
  %v2271 = vcvt.s32.f32 %v2207
  %v2272 = vcvt.s32.f32 %v2208
  %v2273 = vcvt.s32.f32 %v2209
  %v2274 = vcvt.s32.f32 %v2210
  %v2275 = vcvt.s32.f32 %v2211
  %v2276 = vcvt.s32.f32 %v2212
  %v2277 = vcvt.s32.f32 %v2213
  %v2278 = vcvt.s32.f32 %v2214
  %v2279 = vcvt.s32.f32 %v2215
  %v2280 = vcvt.s32.f32 %v2216
  %v2281 = vcvt.s32.f32 %v2217
  %v2282 = vcvt.s32.f32 %v2218
  %v2283 = vcvt.s32.f32 %v2219
  %v2284 = vcvt.s32.f32 %v2220
  %v2285 = vcvt.s32.f32 %v2221
  %v2286 = vcvt.s32.f32 %v2222
  %v2287 = vcvt.s32.f32 %v2223
  %v2288 = vcvt.s32.f32 %v2224
  %v2289 = vcvt.s32.f32 %v2225
  %v2290 = vcvt.s32.f32 %v2226
  %v2291 = vcvt.s32.f32 %v2227
  %v2292 = vcvt.s32.f32 %v2228
  %v2293 = vcvt.s32.f32 %v2229
  %v2294 = vcvt.s32.f32 %v2230
  %v2295 = vcvt.s32.f32 %v2231
  %v2296 = vcvt.s32.f32 %v2232
  %v2297 = vcvt.s32.f32 %v2233
  %v2298 = vcvt.s32.f32 %v2234
  %v2299 = vcvt.s32.f32 %v2235
  %v2300 = vcvt.s32.f32 %v2236
  %v2301 = vcvt.s32.f32 %v2237
  %v2302 = vcvt.s32.f32 %v2238
  %v2303 = vcvt.s32.f32 %v2239
  %v2304 = vcvt.s32.f32 %v2240
  %v2305 = vcvt.s32.f32 %v2241
  %v2306 = vcvt.s32.f32 %v2242
  %v2307 = vcvt.s32.f32 %v2243
  %v2308 = vcvt.s32.f32 %v2244
  %2309 = vmatprep.subr.mxu0 0.0
  %2310 = vmatpush1.msra.mxu0 %v91
  %2311 = vmatprep.subr.mxu0 0.0
  %2312 = vmatpush1.msra.mxu0 %v92
  %2313 = vmatprep.subr.mxu0 0.0
  %2314 = vmatpush1.msra.mxu0 %v93
  %2315 = vmatprep.subr.mxu0 0.0
  %2316 = vmatpush1.msra.mxu0 %v94
  %2317 = vmatprep.subr.mxu0 0.0
  %2318 = vmatpush1.msra.mxu0 %v95
  %2319 = vmatprep.subr.mxu0 0.0
  %2320 = vmatpush1.msra.mxu0 %v96
  %2321 = vmatprep.subr.mxu0 0.0
  %2322 = vmatpush1.msra.mxu0 %v97
  %2323 = vmatprep.subr.mxu0 0.0
  %2324 = vmatpush1.msra.mxu0 %v98
  %2325 = vmatprep.subr.mxu0 0.0
  %2326 = vmatpush1.msra.mxu0 %v99
  %2327 = vmatprep.subr.mxu0 0.0
  %2328 = vmatpush1.msra.mxu0 %v100
  %2329 = vmatprep.subr.mxu0 0.0
  %2330 = vmatpush1.msra.mxu0 %v101
  %2331 = vmatprep.subr.mxu0 0.0
  %2332 = vmatpush1.msra.mxu0 %v102
  %2333 = vmatprep.subr.mxu0 0.0
  %2334 = vmatpush1.msra.mxu0 %v103
  %2335 = vmatprep.subr.mxu0 0.0
  %2336 = vmatpush1.msra.mxu0 %v104
  %2337 = vmatprep.subr.mxu0 0.0
  %2338 = vmatpush1.msra.mxu0 %v105
  %2339 = vmatprep.subr.mxu0 0.0
  %2340 = vmatpush1.msra.mxu0 %v106
  %2341 = vmatprep.subr.mxu0 0.0
  %2342 = vmatpush1.msra.mxu0 0.0
  %2343 = vmatprep.subr.mxu0 0.0
  %2344 = vmatpush1.msra.mxu0 0.0
  %2345 = vmatprep.subr.mxu0 0.0
  %2346 = vmatpush1.msra.mxu0 0.0
  %2347 = vmatprep.subr.mxu0 0.0
  %2348 = vmatpush1.msra.mxu0 0.0
  %2349 = vmatprep.subr.mxu0 0.0
  %2350 = vmatpush1.msra.mxu0 0.0
  %2351 = vmatprep.subr.mxu0 0.0
  %2352 = vmatpush1.msra.mxu0 0.0
  %2353 = vmatprep.subr.mxu0 0.0
  %2354 = vmatpush1.msra.mxu0 0.0
  %2355 = vmatprep.subr.mxu0 0.0
  %2356 = vmatpush1.msra.mxu0 0.0
  %2357 = vmatprep.subr.mxu0 0.0
  %2358 = vmatpush1.msra.mxu0 0.0
  %2359 = vmatprep.subr.mxu0 0.0
  %2360 = vmatpush1.msra.mxu0 0.0
  %2361 = vmatprep.subr.mxu0 0.0
  %2362 = vmatpush1.msra.mxu0 0.0
  %2363 = vmatprep.subr.mxu0 0.0
  %2364 = vmatpush1.msra.mxu0 0.0
  %2365 = vmatprep.subr.mxu0 0.0
  %2366 = vmatpush1.msra.mxu0 0.0
  %2367 = vmatprep.subr.mxu0 0.0
  %2368 = vmatpush1.msra.mxu0 0.0
  %2369 = vmatprep.subr.mxu0 0.0
  %2370 = vmatpush1.msra.mxu0 0.0
  %2371 = vmatprep.subr.mxu0 0.0
  %2372 = vmatpush1.msra.mxu0 0.0
  %2373 = vmatprep.mubr.f32.mxu0 0.0
  %2374 = vmatmul.mubr.f32.gmra.mrb[0].mxu0 %v2245
  %v2375 = vpop.f32.mrb[0].mxu0
  %v2376 = vadd.f32 0.0, %v2375
  %v2377 = vpop.f32.mrb[0].mxu0
  %2378 = vmatprep.mubr.f32.mxu0 0.0
  %2379 = vmatmul.mubr.f32.gmra.mrb[0].mxu0 %v2246
  %v2380 = vpop.f32.mrb[0].mxu0
  %v2381 = vadd.f32 0.0, %v2380
  %v2382 = vpop.f32.mrb[0].mxu0
  %2383 = vmatprep.mubr.f32.mxu0 0.0
  %2384 = vmatmul.mubr.f32.gmra.mrb[0].mxu0 %v2247
  %v2385 = vpop.f32.mrb[0].mxu0
  %v2386 = vadd.f32 0.0, %v2385
  %v2387 = vpop.f32.mrb[0].mxu0
  %2388 = vmatprep.mubr.f32.mxu0 0.0
  %2389 = vmatmul.mubr.f32.gmra.mrb[0].mxu0 %v2248
  %v2390 = vpop.f32.mrb[0].mxu0
  %v2391 = vadd.f32 0.0, %v2390
  %v2392 = vpop.f32.mrb[0].mxu0
  %2393 = vmatprep.mubr.f32.mxu0 0.0
  %2394 = vmatmul.mubr.f32.gmra.mrb[0].mxu0 %v2249
  %v2395 = vpop.f32.mrb[0].mxu0
  %v2396 = vadd.f32 0.0, %v2395
  %v2397 = vpop.f32.mrb[0].mxu0
  %2398 = vmatprep.mubr.f32.mxu0 0.0
  %2399 = vmatmul.mubr.f32.gmra.mrb[0].mxu0 %v2250
  %v2400 = vpop.f32.mrb[0].mxu0
  %v2401 = vadd.f32 0.0, %v2400
  %v2402 = vpop.f32.mrb[0].mxu0
  %2403 = vmatprep.mubr.f32.mxu0 0.0
  %2404 = vmatmul.mubr.f32.gmra.mrb[0].mxu0 %v2251
  %v2405 = vpop.f32.mrb[0].mxu0
  %v2406 = vadd.f32 0.0, %v2405
  %v2407 = vpop.f32.mrb[0].mxu0
  %2408 = vmatprep.mubr.f32.mxu0 0.0
  %2409 = vmatmul.mubr.f32.gmra.mrb[0].mxu0 %v2252
  %v2410 = vpop.f32.mrb[0].mxu0
  %v2411 = vadd.f32 0.0, %v2410
  %v2412 = vpop.f32.mrb[0].mxu0
  %2413 = vmatprep.mubr.f32.mxu0 0.0
  %2414 = vmatmul.mubr.f32.gmra.mrb[0].mxu0 %v2253
  %v2415 = vpop.f32.mrb[0].mxu0
  %v2416 = vadd.f32 0.0, %v2415
  %v2417 = vpop.f32.mrb[0].mxu0
  %2418 = vmatprep.mubr.f32.mxu0 0.0
  %2419 = vmatmul.mubr.f32.gmra.mrb[0].mxu0 %v2254
  %v2420 = vpop.f32.mrb[0].mxu0
  %v2421 = vadd.f32 0.0, %v2420
  %v2422 = vpop.f32.mrb[0].mxu0
  %2423 = vmatprep.mubr.f32.mxu0 0.0
  %2424 = vmatmul.mubr.f32.gmra.mrb[0].mxu0 %v2255
  %v2425 = vpop.f32.mrb[0].mxu0
  %v2426 = vadd.f32 0.0, %v2425
  %v2427 = vpop.f32.mrb[0].mxu0
  %2428 = vmatprep.mubr.f32.mxu0 0.0
  %2429 = vmatmul.mubr.f32.gmra.mrb[0].mxu0 %v2256
  %v2430 = vpop.f32.mrb[0].mxu0
  %v2431 = vadd.f32 0.0, %v2430
  %v2432 = vpop.f32.mrb[0].mxu0
  %2433 = vmatprep.mubr.f32.mxu0 0.0
  %2434 = vmatmul.mubr.f32.gmra.mrb[0].mxu0 %v2257
  %v2435 = vpop.f32.mrb[0].mxu0
  %v2436 = vadd.f32 0.0, %v2435
  %v2437 = vpop.f32.mrb[0].mxu0
  %2438 = vmatprep.mubr.f32.mxu0 0.0
  %2439 = vmatmul.mubr.f32.gmra.mrb[0].mxu0 %v2258
  %v2440 = vpop.f32.mrb[0].mxu0
  %v2441 = vadd.f32 0.0, %v2440
  %v2442 = vpop.f32.mrb[0].mxu0
  %2443 = vmatprep.mubr.f32.mxu0 0.0
  %2444 = vmatmul.mubr.f32.gmra.mrb[0].mxu0 %v2259
  %v2445 = vpop.f32.mrb[0].mxu0
  %v2446 = vadd.f32 0.0, %v2445
  %v2447 = vpop.f32.mrb[0].mxu0
  %2448 = vmatprep.mubr.f32.mxu0 0.0
  %2449 = vmatmul.mubr.f32.gmra.mrb[0].mxu0 %v2260
  %v2450 = vpop.f32.mrb[0].mxu0
  %v2451 = vadd.f32 0.0, %v2450
  %v2452 = vpop.f32.mrb[0].mxu0
  %2453 = vmatprep.mubr.f32.mxu0 0.0
  %2454 = vmatmul.mubr.f32.gmra.mrb[0].mxu0 %v2261
  %v2455 = vpop.f32.mrb[0].mxu0
  %v2456 = vadd.f32 0.0, %v2455
  %v2457 = vpop.f32.mrb[0].mxu0
  %2458 = vmatprep.mubr.f32.mxu0 0.0
  %2459 = vmatmul.mubr.f32.gmra.mrb[0].mxu0 %v2262
  %v2460 = vpop.f32.mrb[0].mxu0
  %v2461 = vadd.f32 0.0, %v2460
  %v2462 = vpop.f32.mrb[0].mxu0
  %2463 = vmatprep.mubr.f32.mxu0 0.0
  %2464 = vmatmul.mubr.f32.gmra.mrb[0].mxu0 %v2263
  %v2465 = vpop.f32.mrb[0].mxu0
  %v2466 = vadd.f32 0.0, %v2465
  %v2467 = vpop.f32.mrb[0].mxu0
  %2468 = vmatprep.mubr.f32.mxu0 0.0
  %2469 = vmatmul.mubr.f32.gmra.mrb[0].mxu0 %v2264
  %v2470 = vpop.f32.mrb[0].mxu0
  %v2471 = vadd.f32 0.0, %v2470
  %v2472 = vpop.f32.mrb[0].mxu0
  %2473 = vmatprep.mubr.f32.mxu0 0.0
  %2474 = vmatmul.mubr.f32.gmra.mrb[0].mxu0 %v2265
  %v2475 = vpop.f32.mrb[0].mxu0
  %v2476 = vadd.f32 0.0, %v2475
  %v2477 = vpop.f32.mrb[0].mxu0
  %2478 = vmatprep.mubr.f32.mxu0 0.0
  %2479 = vmatmul.mubr.f32.gmra.mrb[0].mxu0 %v2266
  %v2480 = vpop.f32.mrb[0].mxu0
  %v2481 = vadd.f32 0.0, %v2480
  %v2482 = vpop.f32.mrb[0].mxu0
  %2483 = vmatprep.mubr.f32.mxu0 0.0
  %2484 = vmatmul.mubr.f32.gmra.mrb[0].mxu0 %v2267
  %v2485 = vpop.f32.mrb[0].mxu0
  %v2486 = vadd.f32 0.0, %v2485
  %v2487 = vpop.f32.mrb[0].mxu0
  %2488 = vmatprep.mubr.f32.mxu0 0.0
  %2489 = vmatmul.mubr.f32.gmra.mrb[0].mxu0 %v2268
  %v2490 = vpop.f32.mrb[0].mxu0
  %v2491 = vadd.f32 0.0, %v2490
  %v2492 = vpop.f32.mrb[0].mxu0
  %2493 = vmatprep.mubr.f32.mxu0 0.0
  %2494 = vmatmul.mubr.f32.gmra.mrb[0].mxu0 %v2269
  %v2495 = vpop.f32.mrb[0].mxu0
  %v2496 = vadd.f32 0.0, %v2495
  %v2497 = vpop.f32.mrb[0].mxu0
  %2498 = vmatprep.mubr.f32.mxu0 0.0
  %2499 = vmatmul.mubr.f32.gmra.mrb[0].mxu0 %v2270
  %v2500 = vpop.f32.mrb[0].mxu0
  %v2501 = vadd.f32 0.0, %v2500
  %v2502 = vpop.f32.mrb[0].mxu0
  %2503 = vmatprep.mubr.f32.mxu0 0.0
  %2504 = vmatmul.mubr.f32.gmra.mrb[0].mxu0 %v2271
  %v2505 = vpop.f32.mrb[0].mxu0
  %v2506 = vadd.f32 0.0, %v2505
  %v2507 = vpop.f32.mrb[0].mxu0
  %2508 = vmatprep.mubr.f32.mxu0 0.0
  %2509 = vmatmul.mubr.f32.gmra.mrb[0].mxu0 %v2272
  %v2510 = vpop.f32.mrb[0].mxu0
  %v2511 = vadd.f32 0.0, %v2510
  %v2512 = vpop.f32.mrb[0].mxu0
  %2513 = vmatprep.mubr.f32.mxu0 0.0
  %2514 = vmatmul.mubr.f32.gmra.mrb[0].mxu0 %v2273
  %v2515 = vpop.f32.mrb[0].mxu0
  %v2516 = vadd.f32 0.0, %v2515
  %v2517 = vpop.f32.mrb[0].mxu0
  %2518 = vmatprep.mubr.f32.mxu0 0.0
  %2519 = vmatmul.mubr.f32.gmra.mrb[0].mxu0 %v2274
  %v2520 = vpop.f32.mrb[0].mxu0
  %v2521 = vadd.f32 0.0, %v2520
  %v2522 = vpop.f32.mrb[0].mxu0
  %2523 = vmatprep.mubr.f32.mxu0 0.0
  %2524 = vmatmul.mubr.f32.gmra.mrb[0].mxu0 %v2275
  %v2525 = vpop.f32.mrb[0].mxu0
  %v2526 = vadd.f32 0.0, %v2525
  %v2527 = vpop.f32.mrb[0].mxu0
  %2528 = vmatprep.mubr.f32.mxu0 0.0
  %2529 = vmatmul.mubr.f32.gmra.mrb[0].mxu0 %v2276
  %v2530 = vpop.f32.mrb[0].mxu0
  %v2531 = vadd.f32 0.0, %v2530
  %v2532 = vpop.f32.mrb[0].mxu0
  %2533 = vmatprep.mubr.f32.mxu0 0.0
  %2534 = vmatmul.mubr.f32.gmra.mrb[0].mxu0 %v2277
  %v2535 = vpop.f32.mrb[0].mxu0
  %v2536 = vadd.f32 0.0, %v2535
  %v2537 = vpop.f32.mrb[0].mxu0
  %2538 = vmatprep.mubr.f32.mxu0 0.0
  %2539 = vmatmul.mubr.f32.gmra.mrb[0].mxu0 %v2278
  %v2540 = vpop.f32.mrb[0].mxu0
  %v2541 = vadd.f32 0.0, %v2540
  %v2542 = vpop.f32.mrb[0].mxu0
  %2543 = vmatprep.mubr.f32.mxu0 0.0
  %2544 = vmatmul.mubr.f32.gmra.mrb[0].mxu0 %v2279
  %v2545 = vpop.f32.mrb[0].mxu0
  %v2546 = vadd.f32 0.0, %v2545
  %v2547 = vpop.f32.mrb[0].mxu0
  %2548 = vmatprep.mubr.f32.mxu0 0.0
  %2549 = vmatmul.mubr.f32.gmra.mrb[0].mxu0 %v2280
  %v2550 = vpop.f32.mrb[0].mxu0
  %v2551 = vadd.f32 0.0, %v2550
  %v2552 = vpop.f32.mrb[0].mxu0
  %2553 = vmatprep.mubr.f32.mxu0 0.0
  %2554 = vmatmul.mubr.f32.gmra.mrb[0].mxu0 %v2281
  %v2555 = vpop.f32.mrb[0].mxu0
  %v2556 = vadd.f32 0.0, %v2555
  %v2557 = vpop.f32.mrb[0].mxu0
  %2558 = vmatprep.mubr.f32.mxu0 0.0
  %2559 = vmatmul.mubr.f32.gmra.mrb[0].mxu0 %v2282
  %v2560 = vpop.f32.mrb[0].mxu0
  %v2561 = vadd.f32 0.0, %v2560
  %v2562 = vpop.f32.mrb[0].mxu0
  %2563 = vmatprep.mubr.f32.mxu0 0.0
  %2564 = vmatmul.mubr.f32.gmra.mrb[0].mxu0 %v2283
  %v2565 = vpop.f32.mrb[0].mxu0
  %v2566 = vadd.f32 0.0, %v2565
  %v2567 = vpop.f32.mrb[0].mxu0
  %2568 = vmatprep.mubr.f32.mxu0 0.0
  %2569 = vmatmul.mubr.f32.gmra.mrb[0].mxu0 %v2284
  %v2570 = vpop.f32.mrb[0].mxu0
  %v2571 = vadd.f32 0.0, %v2570
  %v2572 = vpop.f32.mrb[0].mxu0
  %2573 = vmatprep.mubr.f32.mxu0 0.0
  %2574 = vmatmul.mubr.f32.gmra.mrb[0].mxu0 %v2285
  %v2575 = vpop.f32.mrb[0].mxu0
  %v2576 = vadd.f32 0.0, %v2575
  %v2577 = vpop.f32.mrb[0].mxu0
  %2578 = vmatprep.mubr.f32.mxu0 0.0
  %2579 = vmatmul.mubr.f32.gmra.mrb[0].mxu0 %v2286
  %v2580 = vpop.f32.mrb[0].mxu0
  %v2581 = vadd.f32 0.0, %v2580
  %v2582 = vpop.f32.mrb[0].mxu0
  %2583 = vmatprep.mubr.f32.mxu0 0.0
  %2584 = vmatmul.mubr.f32.gmra.mrb[0].mxu0 %v2287
  %v2585 = vpop.f32.mrb[0].mxu0
  %v2586 = vadd.f32 0.0, %v2585
  %v2587 = vpop.f32.mrb[0].mxu0
  %2588 = vmatprep.mubr.f32.mxu0 0.0
  %2589 = vmatmul.mubr.f32.gmra.mrb[0].mxu0 %v2288
  %v2590 = vpop.f32.mrb[0].mxu0
  %v2591 = vadd.f32 0.0, %v2590
  %v2592 = vpop.f32.mrb[0].mxu0
  %2593 = vmatprep.mubr.f32.mxu0 0.0
  %2594 = vmatmul.mubr.f32.gmra.mrb[0].mxu0 %v2289
  %v2595 = vpop.f32.mrb[0].mxu0
  %v2596 = vadd.f32 0.0, %v2595
  %v2597 = vpop.f32.mrb[0].mxu0
  %2598 = vmatprep.mubr.f32.mxu0 0.0
  %2599 = vmatmul.mubr.f32.gmra.mrb[0].mxu0 %v2290
  %v2600 = vpop.f32.mrb[0].mxu0
  %v2601 = vadd.f32 0.0, %v2600
  %v2602 = vpop.f32.mrb[0].mxu0
  %2603 = vmatprep.mubr.f32.mxu0 0.0
  %2604 = vmatmul.mubr.f32.gmra.mrb[0].mxu0 %v2291
  %v2605 = vpop.f32.mrb[0].mxu0
  %v2606 = vadd.f32 0.0, %v2605
  %v2607 = vpop.f32.mrb[0].mxu0
  %2608 = vmatprep.mubr.f32.mxu0 0.0
  %2609 = vmatmul.mubr.f32.gmra.mrb[0].mxu0 %v2292
  %v2610 = vpop.f32.mrb[0].mxu0
  %v2611 = vadd.f32 0.0, %v2610
  %v2612 = vpop.f32.mrb[0].mxu0
  %2613 = vmatprep.mubr.f32.mxu0 0.0
  %2614 = vmatmul.mubr.f32.gmra.mrb[0].mxu0 %v2293
  %v2615 = vpop.f32.mrb[0].mxu0
  %v2616 = vadd.f32 0.0, %v2615
  %v2617 = vpop.f32.mrb[0].mxu0
  %2618 = vmatprep.mubr.f32.mxu0 0.0
  %2619 = vmatmul.mubr.f32.gmra.mrb[0].mxu0 %v2294
  %v2620 = vpop.f32.mrb[0].mxu0
  %v2621 = vadd.f32 0.0, %v2620
  %v2622 = vpop.f32.mrb[0].mxu0
  %2623 = vmatprep.mubr.f32.mxu0 0.0
  %2624 = vmatmul.mubr.f32.gmra.mrb[0].mxu0 %v2295
  %v2625 = vpop.f32.mrb[0].mxu0
  %v2626 = vadd.f32 0.0, %v2625
  %v2627 = vpop.f32.mrb[0].mxu0
  %2628 = vmatprep.mubr.f32.mxu0 0.0
  %2629 = vmatmul.mubr.f32.gmra.mrb[0].mxu0 %v2296
  %v2630 = vpop.f32.mrb[0].mxu0
  %v2631 = vadd.f32 0.0, %v2630
  %v2632 = vpop.f32.mrb[0].mxu0
  %2633 = vmatprep.mubr.f32.mxu0 0.0
  %2634 = vmatmul.mubr.f32.gmra.mrb[0].mxu0 %v2297
  %v2635 = vpop.f32.mrb[0].mxu0
  %v2636 = vadd.f32 0.0, %v2635
  %v2637 = vpop.f32.mrb[0].mxu0
  %2638 = vmatprep.mubr.f32.mxu0 0.0
  %2639 = vmatmul.mubr.f32.gmra.mrb[0].mxu0 %v2298
  %v2640 = vpop.f32.mrb[0].mxu0
  %v2641 = vadd.f32 0.0, %v2640
  %v2642 = vpop.f32.mrb[0].mxu0
  %2643 = vmatprep.mubr.f32.mxu0 0.0
  %2644 = vmatmul.mubr.f32.gmra.mrb[0].mxu0 %v2299
  %v2645 = vpop.f32.mrb[0].mxu0
  %v2646 = vadd.f32 0.0, %v2645
  %v2647 = vpop.f32.mrb[0].mxu0
  %2648 = vmatprep.mubr.f32.mxu0 0.0
  %2649 = vmatmul.mubr.f32.gmra.mrb[0].mxu0 %v2300
  %v2650 = vpop.f32.mrb[0].mxu0
  %v2651 = vadd.f32 0.0, %v2650
  %v2652 = vpop.f32.mrb[0].mxu0
  %2653 = vmatprep.mubr.f32.mxu0 0.0
  %2654 = vmatmul.mubr.f32.gmra.mrb[0].mxu0 %v2301
  %v2655 = vpop.f32.mrb[0].mxu0
  %v2656 = vadd.f32 0.0, %v2655
  %v2657 = vpop.f32.mrb[0].mxu0
  %2658 = vmatprep.mubr.f32.mxu0 0.0
  %2659 = vmatmul.mubr.f32.gmra.mrb[0].mxu0 %v2302
  %v2660 = vpop.f32.mrb[0].mxu0
  %v2661 = vadd.f32 0.0, %v2660
  %v2662 = vpop.f32.mrb[0].mxu0
  %2663 = vmatprep.mubr.f32.mxu0 0.0
  %2664 = vmatmul.mubr.f32.gmra.mrb[0].mxu0 %v2303
  %v2665 = vpop.f32.mrb[0].mxu0
  %v2666 = vadd.f32 0.0, %v2665
  %v2667 = vpop.f32.mrb[0].mxu0
  %2668 = vmatprep.mubr.f32.mxu0 0.0
  %2669 = vmatmul.mubr.f32.gmra.mrb[0].mxu0 %v2304
  %v2670 = vpop.f32.mrb[0].mxu0
  %v2671 = vadd.f32 0.0, %v2670
  %v2672 = vpop.f32.mrb[0].mxu0
  %2673 = vmatprep.mubr.f32.mxu0 0.0
  %2674 = vmatmul.mubr.f32.gmra.mrb[0].mxu0 %v2305
  %v2675 = vpop.f32.mrb[0].mxu0
  %v2676 = vadd.f32 0.0, %v2675
  %v2677 = vpop.f32.mrb[0].mxu0
  %2678 = vmatprep.mubr.f32.mxu0 0.0
  %2679 = vmatmul.mubr.f32.gmra.mrb[0].mxu0 %v2306
  %v2680 = vpop.f32.mrb[0].mxu0
  %v2681 = vadd.f32 0.0, %v2680
  %v2682 = vpop.f32.mrb[0].mxu0
  %2683 = vmatprep.mubr.f32.mxu0 0.0
  %2684 = vmatmul.mubr.f32.gmra.mrb[0].mxu0 %v2307
  %v2685 = vpop.f32.mrb[0].mxu0
  %v2686 = vadd.f32 0.0, %v2685
  %v2687 = vpop.f32.mrb[0].mxu0
  %2688 = vmatprep.mubr.f32.mxu0 0.0
  %2689 = vmatmul.mubr.f32.gmra.mrb[0].mxu0 %v2308
  %v2690 = vpop.f32.mrb[0].mxu0
  %v2691 = vadd.f32 0.0, %v2690
  %v2692 = vpop.f32.mrb[0].mxu0
  %2693 = vdwg.mxu0
  %2694 = vst [vmem:[%s7] sm:$0xff] %v2376
  %2695 = vst [vmem:[%s7 + $0x8] sm:$0xff] %v2381
  %2696 = vst [vmem:[%s7 + $0x10] sm:$0xff] %v2386
  %2697 = vst [vmem:[%s7 + $0x18] sm:$0xff] %v2391
  %2698 = vst [vmem:[%s7 + $0x20] sm:$0xff] %v2396
  %2699 = vst [vmem:[%s7 + $0x28] sm:$0xff] %v2401
  %2700 = vst [vmem:[%s7 + $0x30] sm:$0xff] %v2406
  %2701 = vst [vmem:[%s7 + $0x38] sm:$0xff] %v2411
  %2702 = vst [vmem:[%s7 + $0x40] sm:$0xff] %v2416
  %2703 = vst [vmem:[%s7 + $0x48] sm:$0xff] %v2421
  %2704 = vst [vmem:[%s7 + $0x50] sm:$0xff] %v2426
  %2705 = vst [vmem:[%s7 + $0x58] sm:$0xff] %v2431
  %2706 = vst [vmem:[%s7 + $0x60] sm:$0xff] %v2436
  %2707 = vst [vmem:[%s7 + $0x68] sm:$0xff] %v2441
  %2708 = vst [vmem:[%s7 + $0x70] sm:$0xff] %v2446
  %2709 = vst [vmem:[%s7 + $0x78] sm:$0xff] %v2451
  %2710 = vst [vmem:[%s7 + $0x80] sm:$0xff] %v2456
  %2711 = vst [vmem:[%s7 + $0x88] sm:$0xff] %v2461
  %2712 = vst [vmem:[%s7 + $0x90] sm:$0xff] %v2466
  %2713 = vst [vmem:[%s7 + $0x98] sm:$0xff] %v2471
  %2714 = vst [vmem:[%s7 + $0xa0] sm:$0xff] %v2476
  %2715 = vst [vmem:[%s7 + $0xa8] sm:$0xff] %v2481
  %2716 = vst [vmem:[%s7 + $0xb0] sm:$0xff] %v2486
  %2717 = vst [vmem:[%s7 + $0xb8] sm:$0xff] %v2491
  %2718 = vst [vmem:[%s7 + $0xc0] sm:$0xff] %v2496
  %2719 = vst [vmem:[%s7 + $0xc8] sm:$0xff] %v2501
  %2720 = vst [vmem:[%s7 + $0xd0] sm:$0xff] %v2506
  %2721 = vst [vmem:[%s7 + $0xd8] sm:$0xff] %v2511
  %2722 = vst [vmem:[%s7 + $0xe0] sm:$0xff] %v2516
  %2723 = vst [vmem:[%s7 + $0xe8] sm:$0xff] %v2521
  %2724 = vst [vmem:[%s7 + $0xf0] sm:$0xff] %v2526
  %2725 = vst [vmem:[%s7 + $0xf8] sm:$0xff] %v2531
  %2726 = vst [vmem:[%s7 + $0x100] sm:$0xff] %v2536
  %2727 = vst [vmem:[%s7 + $0x108] sm:$0xff] %v2541
  %2728 = vst [vmem:[%s7 + $0x110] sm:$0xff] %v2546
  %2729 = vst [vmem:[%s7 + $0x118] sm:$0xff] %v2551
  %2730 = vst [vmem:[%s7 + $0x120] sm:$0xff] %v2556
  %2731 = vst [vmem:[%s7 + $0x128] sm:$0xff] %v2561
  %2732 = vst [vmem:[%s7 + $0x130] sm:$0xff] %v2566
  %2733 = vst [vmem:[%s7 + $0x138] sm:$0xff] %v2571
  %2734 = vst [vmem:[%s7 + $0x140] sm:$0xff] %v2576
  %2735 = vst [vmem:[%s7 + $0x148] sm:$0xff] %v2581
  %2736 = vst [vmem:[%s7 + $0x150] sm:$0xff] %v2586
  %2737 = vst [vmem:[%s7 + $0x158] sm:$0xff] %v2591
  %2738 = vst [vmem:[%s7 + $0x160] sm:$0xff] %v2596
  %2739 = vst [vmem:[%s7 + $0x168] sm:$0xff] %v2601
  %2740 = vst [vmem:[%s7 + $0x170] sm:$0xff] %v2606
  %2741 = vst [vmem:[%s7 + $0x178] sm:$0xff] %v2611
  %2742 = vst [vmem:[%s7 + $0x180] sm:$0xff] %v2616
  %2743 = vst [vmem:[%s7 + $0x188] sm:$0xff] %v2621
  %2744 = vst [vmem:[%s7 + $0x190] sm:$0xff] %v2626
  %2745 = vst [vmem:[%s7 + $0x198] sm:$0xff] %v2631
  %2746 = vst [vmem:[%s7 + $0x1a0] sm:$0xff] %v2636
  %2747 = vst [vmem:[%s7 + $0x1a8] sm:$0xff] %v2641
  %2748 = vst [vmem:[%s7 + $0x1b0] sm:$0xff] %v2646
  %2749 = vst [vmem:[%s7 + $0x1b8] sm:$0xff] %v2651
  %2750 = vst [vmem:[%s7 + $0x1c0] sm:$0xff] %v2656
  %2751 = vst [vmem:[%s7 + $0x1c8] sm:$0xff] %v2661
  %2752 = vst [vmem:[%s7 + $0x1d0] sm:$0xff] %v2666
  %2753 = vst [vmem:[%s7 + $0x1d8] sm:$0xff] %v2671
  %2754 = vst [vmem:[%s7 + $0x1e0] sm:$0xff] %v2676
  %2755 = vst [vmem:[%s7 + $0x1e8] sm:$0xff] %v2681
  %2756 = vst [vmem:[%s7 + $0x1f0] sm:$0xff] %v2686
  %2757 = vst [vmem:[%s7 + $0x1f8] sm:$0xff] %v2691
  %v2758 = vsub.f32 %v2376, %v27
  %v2759 = vsub.f32 %v2381, %v28
  %v2760 = vsub.f32 %v2386, %v29
  %v2761 = vsub.f32 %v2391, %v30
  %v2762 = vsub.f32 %v2396, %v31
  %v2763 = vsub.f32 %v2401, %v32
  %v2764 = vsub.f32 %v2406, %v33
  %v2765 = vsub.f32 %v2411, %v34
  %v2766 = vsub.f32 %v2416, %v35
  %v2767 = vsub.f32 %v2421, %v36
  %v2768 = vsub.f32 %v2426, %v37
  %v2769 = vsub.f32 %v2431, %v38
  %v2770 = vsub.f32 %v2436, %v39
  %v2771 = vsub.f32 %v2441, %v40
  %v2772 = vsub.f32 %v2446, %v41
  %v2773 = vsub.f32 %v2451, %v42
  %v2774 = vsub.f32 %v2456, %v43
  %v2775 = vsub.f32 %v2461, %v44
  %v2776 = vsub.f32 %v2466, %v45
  %v2777 = vsub.f32 %v2471, %v46
  %v2778 = vsub.f32 %v2476, %v47
  %v2779 = vsub.f32 %v2481, %v48
  %v2780 = vsub.f32 %v2486, %v49
  %v2781 = vsub.f32 %v2491, %v50
  %v2782 = vsub.f32 %v2496, %v51
  %v2783 = vsub.f32 %v2501, %v52
  %v2784 = vsub.f32 %v2506, %v53
  %v2785 = vsub.f32 %v2511, %v54
  %v2786 = vsub.f32 %v2516, %v55
  %v2787 = vsub.f32 %v2521, %v56
  %v2788 = vsub.f32 %v2526, %v57
  %v2789 = vsub.f32 %v2531, %v58
  %v2790 = vsub.f32 %v2536, %v59
  %v2791 = vsub.f32 %v2541, %v60
  %v2792 = vsub.f32 %v2546, %v61
  %v2793 = vsub.f32 %v2551, %v62
  %v2794 = vsub.f32 %v2556, %v63
  %v2795 = vsub.f32 %v2561, %v64
  %v2796 = vsub.f32 %v2566, %v65
  %v2797 = vsub.f32 %v2571, %v66
  %v2798 = vsub.f32 %v2576, %v67
  %v2799 = vsub.f32 %v2581, %v68
  %v2800 = vsub.f32 %v2586, %v69
  %v2801 = vsub.f32 %v2591, %v70
  %v2802 = vsub.f32 %v2596, %v71
  %v2803 = vsub.f32 %v2601, %v72
  %v2804 = vsub.f32 %v2606, %v73
  %v2805 = vsub.f32 %v2611, %v74
  %v2806 = vsub.f32 %v2616, %v75
  %v2807 = vsub.f32 %v2621, %v76
  %v2808 = vsub.f32 %v2626, %v77
  %v2809 = vsub.f32 %v2631, %v78
  %v2810 = vsub.f32 %v2636, %v79
  %v2811 = vsub.f32 %v2641, %v80
  %v2812 = vsub.f32 %v2646, %v81
  %v2813 = vsub.f32 %v2651, %v82
  %v2814 = vsub.f32 %v2656, %v83
  %v2815 = vsub.f32 %v2661, %v84
  %v2816 = vsub.f32 %v2666, %v85
  %v2817 = vsub.f32 %v2671, %v86
  %v2818 = vsub.f32 %v2676, %v87
  %v2819 = vsub.f32 %v2681, %v88
  %v2820 = vsub.f32 %v2686, %v89
  %v2821 = vsub.f32 %v2691, %v90
  %v2822 = vmul.f32 %v2758, %v2758
  %v2823 = vmul.f32 %v2759, %v2759
  %v2824 = vmul.f32 %v2760, %v2760
  %v2825 = vmul.f32 %v2761, %v2761
  %v2826 = vmul.f32 %v2762, %v2762
  %v2827 = vmul.f32 %v2763, %v2763
  %v2828 = vmul.f32 %v2764, %v2764
  %v2829 = vmul.f32 %v2765, %v2765
  %v2830 = vmul.f32 %v2766, %v2766
  %v2831 = vmul.f32 %v2767, %v2767
  %v2832 = vmul.f32 %v2768, %v2768
  %v2833 = vmul.f32 %v2769, %v2769
  %v2834 = vmul.f32 %v2770, %v2770
  %v2835 = vmul.f32 %v2771, %v2771
  %v2836 = vmul.f32 %v2772, %v2772
  %v2837 = vmul.f32 %v2773, %v2773
  %v2838 = vmul.f32 %v2774, %v2774
  %v2839 = vmul.f32 %v2775, %v2775
  %v2840 = vmul.f32 %v2776, %v2776
  %v2841 = vmul.f32 %v2777, %v2777
  %v2842 = vmul.f32 %v2778, %v2778
  %v2843 = vmul.f32 %v2779, %v2779
  %v2844 = vmul.f32 %v2780, %v2780
  %v2845 = vmul.f32 %v2781, %v2781
  %v2846 = vmul.f32 %v2782, %v2782
  %v2847 = vmul.f32 %v2783, %v2783
  %v2848 = vmul.f32 %v2784, %v2784
  %v2849 = vmul.f32 %v2785, %v2785
  %v2850 = vmul.f32 %v2786, %v2786
  %v2851 = vmul.f32 %v2787, %v2787
  %v2852 = vmul.f32 %v2788, %v2788
  %v2853 = vmul.f32 %v2789, %v2789
  %v2854 = vmul.f32 %v2790, %v2790
  %v2855 = vmul.f32 %v2791, %v2791
  %v2856 = vmul.f32 %v2792, %v2792
  %v2857 = vmul.f32 %v2793, %v2793
  %v2858 = vmul.f32 %v2794, %v2794
  %v2859 = vmul.f32 %v2795, %v2795
  %v2860 = vmul.f32 %v2796, %v2796
  %v2861 = vmul.f32 %v2797, %v2797
  %v2862 = vmul.f32 %v2798, %v2798
  %v2863 = vmul.f32 %v2799, %v2799
  %v2864 = vmul.f32 %v2800, %v2800
  %v2865 = vmul.f32 %v2801, %v2801
  %v2866 = vmul.f32 %v2802, %v2802
  %v2867 = vmul.f32 %v2803, %v2803
  %v2868 = vmul.f32 %v2804, %v2804
  %v2869 = vmul.f32 %v2805, %v2805
  %v2870 = vmul.f32 %v2806, %v2806
  %v2871 = vmul.f32 %v2807, %v2807
  %v2872 = vmul.f32 %v2808, %v2808
  %v2873 = vmul.f32 %v2809, %v2809
  %v2874 = vmul.f32 %v2810, %v2810
  %v2875 = vmul.f32 %v2811, %v2811
  %v2876 = vmul.f32 %v2812, %v2812
  %v2877 = vmul.f32 %v2813, %v2813
  %v2878 = vmul.f32 %v2814, %v2814
  %v2879 = vmul.f32 %v2815, %v2815
  %v2880 = vmul.f32 %v2816, %v2816
  %v2881 = vmul.f32 %v2817, %v2817
  %v2882 = vmul.f32 %v2818, %v2818
  %v2883 = vmul.f32 %v2819, %v2819
  %v2884 = vmul.f32 %v2820, %v2820
  %v2885 = vmul.f32 %v2821, %v2821
  %2886 = vadd.xlane.f32.xlu0 %v2822
  %v2887 = vpop.xlane.xlu0 %2886
  %2888 = vadd.xlane.f32.xlu0 %v2823
  %v2889 = vpop.xlane.xlu0 %2888
  %2890 = vadd.xlane.f32.xlu0 %v2824
  %v2891 = vpop.xlane.xlu0 %2890
  %2892 = vadd.xlane.f32.xlu0 %v2825
  %v2893 = vpop.xlane.xlu0 %2892
  %2894 = vadd.xlane.f32.xlu0 %v2826
  %v2895 = vpop.xlane.xlu0 %2894
  %2896 = vadd.xlane.f32.xlu0 %v2827
  %v2897 = vpop.xlane.xlu0 %2896
  %2898 = vadd.xlane.f32.xlu0 %v2828
  %v2899 = vpop.xlane.xlu0 %2898
  %2900 = vadd.xlane.f32.xlu0 %v2829
  %v2901 = vpop.xlane.xlu0 %2900
  %2902 = vadd.xlane.f32.xlu0 %v2830
  %v2903 = vpop.xlane.xlu0 %2902
  %2904 = vadd.xlane.f32.xlu0 %v2831
  %v2905 = vpop.xlane.xlu0 %2904
  %2906 = vadd.xlane.f32.xlu0 %v2832
  %v2907 = vpop.xlane.xlu0 %2906
  %2908 = vadd.xlane.f32.xlu0 %v2833
  %v2909 = vpop.xlane.xlu0 %2908
  %2910 = vadd.xlane.f32.xlu0 %v2834
  %v2911 = vpop.xlane.xlu0 %2910
  %2912 = vadd.xlane.f32.xlu0 %v2835
  %v2913 = vpop.xlane.xlu0 %2912
  %2914 = vadd.xlane.f32.xlu0 %v2836
  %v2915 = vpop.xlane.xlu0 %2914
  %2916 = vadd.xlane.f32.xlu0 %v2837
  %v2917 = vpop.xlane.xlu0 %2916
  %2918 = vadd.xlane.f32.xlu0 %v2838
  %v2919 = vpop.xlane.xlu0 %2918
  %2920 = vadd.xlane.f32.xlu0 %v2839
  %v2921 = vpop.xlane.xlu0 %2920
  %2922 = vadd.xlane.f32.xlu0 %v2840
  %v2923 = vpop.xlane.xlu0 %2922
  %2924 = vadd.xlane.f32.xlu0 %v2841
  %v2925 = vpop.xlane.xlu0 %2924
  %2926 = vadd.xlane.f32.xlu0 %v2842
  %v2927 = vpop.xlane.xlu0 %2926
  %2928 = vadd.xlane.f32.xlu0 %v2843
  %v2929 = vpop.xlane.xlu0 %2928
  %2930 = vadd.xlane.f32.xlu0 %v2844
  %v2931 = vpop.xlane.xlu0 %2930
  %2932 = vadd.xlane.f32.xlu0 %v2845
  %v2933 = vpop.xlane.xlu0 %2932
  %2934 = vadd.xlane.f32.xlu0 %v2846
  %v2935 = vpop.xlane.xlu0 %2934
  %2936 = vadd.xlane.f32.xlu0 %v2847
  %v2937 = vpop.xlane.xlu0 %2936
  %2938 = vadd.xlane.f32.xlu0 %v2848
  %v2939 = vpop.xlane.xlu0 %2938
  %2940 = vadd.xlane.f32.xlu0 %v2849
  %v2941 = vpop.xlane.xlu0 %2940
  %2942 = vadd.xlane.f32.xlu0 %v2850
  %v2943 = vpop.xlane.xlu0 %2942
  %2944 = vadd.xlane.f32.xlu0 %v2851
  %v2945 = vpop.xlane.xlu0 %2944
  %2946 = vadd.xlane.f32.xlu0 %v2852
  %v2947 = vpop.xlane.xlu0 %2946
  %2948 = vadd.xlane.f32.xlu0 %v2853
  %v2949 = vpop.xlane.xlu0 %2948
  %2950 = vadd.xlane.f32.xlu0 %v2854
  %v2951 = vpop.xlane.xlu0 %2950
  %2952 = vadd.xlane.f32.xlu0 %v2855
  %v2953 = vpop.xlane.xlu0 %2952
  %2954 = vadd.xlane.f32.xlu0 %v2856
  %v2955 = vpop.xlane.xlu0 %2954
  %2956 = vadd.xlane.f32.xlu0 %v2857
  %v2957 = vpop.xlane.xlu0 %2956
  %2958 = vadd.xlane.f32.xlu0 %v2858
  %v2959 = vpop.xlane.xlu0 %2958
  %2960 = vadd.xlane.f32.xlu0 %v2859
  %v2961 = vpop.xlane.xlu0 %2960
  %2962 = vadd.xlane.f32.xlu0 %v2860
  %v2963 = vpop.xlane.xlu0 %2962
  %2964 = vadd.xlane.f32.xlu0 %v2861
  %v2965 = vpop.xlane.xlu0 %2964
  %2966 = vadd.xlane.f32.xlu0 %v2862
  %v2967 = vpop.xlane.xlu0 %2966
  %2968 = vadd.xlane.f32.xlu0 %v2863
  %v2969 = vpop.xlane.xlu0 %2968
  %2970 = vadd.xlane.f32.xlu0 %v2864
  %v2971 = vpop.xlane.xlu0 %2970
  %2972 = vadd.xlane.f32.xlu0 %v2865
  %v2973 = vpop.xlane.xlu0 %2972
  %2974 = vadd.xlane.f32.xlu0 %v2866
  %v2975 = vpop.xlane.xlu0 %2974
  %2976 = vadd.xlane.f32.xlu0 %v2867
  %v2977 = vpop.xlane.xlu0 %2976
  %2978 = vadd.xlane.f32.xlu0 %v2868
  %v2979 = vpop.xlane.xlu0 %2978
  %2980 = vadd.xlane.f32.xlu0 %v2869
  %v2981 = vpop.xlane.xlu0 %2980
  %2982 = vadd.xlane.f32.xlu0 %v2870
  %v2983 = vpop.xlane.xlu0 %2982
  %2984 = vadd.xlane.f32.xlu0 %v2871
  %v2985 = vpop.xlane.xlu0 %2984
  %2986 = vadd.xlane.f32.xlu0 %v2872
  %v2987 = vpop.xlane.xlu0 %2986
  %2988 = vadd.xlane.f32.xlu0 %v2873
  %v2989 = vpop.xlane.xlu0 %2988
  %2990 = vadd.xlane.f32.xlu0 %v2874
  %v2991 = vpop.xlane.xlu0 %2990
  %2992 = vadd.xlane.f32.xlu0 %v2875
  %v2993 = vpop.xlane.xlu0 %2992
  %2994 = vadd.xlane.f32.xlu0 %v2876
  %v2995 = vpop.xlane.xlu0 %2994
  %2996 = vadd.xlane.f32.xlu0 %v2877
  %v2997 = vpop.xlane.xlu0 %2996
  %2998 = vadd.xlane.f32.xlu0 %v2878
  %v2999 = vpop.xlane.xlu0 %2998
  %3000 = vadd.xlane.f32.xlu0 %v2879
  %v3001 = vpop.xlane.xlu0 %3000
  %3002 = vadd.xlane.f32.xlu0 %v2880
  %v3003 = vpop.xlane.xlu0 %3002
  %3004 = vadd.xlane.f32.xlu0 %v2881
  %v3005 = vpop.xlane.xlu0 %3004
  %3006 = vadd.xlane.f32.xlu0 %v2882
  %v3007 = vpop.xlane.xlu0 %3006
  %3008 = vadd.xlane.f32.xlu0 %v2883
  %v3009 = vpop.xlane.xlu0 %3008
  %3010 = vadd.xlane.f32.xlu0 %v2884
  %v3011 = vpop.xlane.xlu0 %3010
  %3012 = vadd.xlane.f32.xlu0 %v2885
  %v3013 = vpop.xlane.xlu0 %3012
  %v3014 = vadd.f32 %v2887, %v2889
  %v3015 = vadd.f32 %v3014, %v2891
  %v3016 = vadd.f32 %v3015, %v2893
  %v3017 = vadd.f32 %v3016, %v2895
  %v3018 = vadd.f32 %v3017, %v2897
  %v3019 = vadd.f32 %v3018, %v2899
  %v3020 = vadd.f32 %v3019, %v2901
  %v3021 = vadd.f32 %v3020, %v2903
  %v3022 = vadd.f32 %v3021, %v2905
  %v3023 = vadd.f32 %v3022, %v2907
  %v3024 = vadd.f32 %v3023, %v2909
  %v3025 = vadd.f32 %v3024, %v2911
  %v3026 = vadd.f32 %v3025, %v2913
  %v3027 = vadd.f32 %v3026, %v2915
  %v3028 = vadd.f32 %v3027, %v2917
  %v3029 = vadd.f32 %v3028, %v2919
  %v3030 = vadd.f32 %v3029, %v2921
  %v3031 = vadd.f32 %v3030, %v2923
  %v3032 = vadd.f32 %v3031, %v2925
  %v3033 = vadd.f32 %v3032, %v2927
  %v3034 = vadd.f32 %v3033, %v2929
  %v3035 = vadd.f32 %v3034, %v2931
  %v3036 = vadd.f32 %v3035, %v2933
  %v3037 = vadd.f32 %v3036, %v2935
  %v3038 = vadd.f32 %v3037, %v2937
  %v3039 = vadd.f32 %v3038, %v2939
  %v3040 = vadd.f32 %v3039, %v2941
  %v3041 = vadd.f32 %v3040, %v2943
  %v3042 = vadd.f32 %v3041, %v2945
  %v3043 = vadd.f32 %v3042, %v2947
  %v3044 = vadd.f32 %v3043, %v2949
  %v3045 = vadd.f32 %v3044, %v2951
  %v3046 = vadd.f32 %v3045, %v2953
  %v3047 = vadd.f32 %v3046, %v2955
  %v3048 = vadd.f32 %v3047, %v2957
  %v3049 = vadd.f32 %v3048, %v2959
  %v3050 = vadd.f32 %v3049, %v2961
  %v3051 = vadd.f32 %v3050, %v2963
  %v3052 = vadd.f32 %v3051, %v2965
  %v3053 = vadd.f32 %v3052, %v2967
  %v3054 = vadd.f32 %v3053, %v2969
  %v3055 = vadd.f32 %v3054, %v2971
  %v3056 = vadd.f32 %v3055, %v2973
  %v3057 = vadd.f32 %v3056, %v2975
  %v3058 = vadd.f32 %v3057, %v2977
  %v3059 = vadd.f32 %v3058, %v2979
  %v3060 = vadd.f32 %v3059, %v2981
  %v3061 = vadd.f32 %v3060, %v2983
  %v3062 = vadd.f32 %v3061, %v2985
  %v3063 = vadd.f32 %v3062, %v2987
  %v3064 = vadd.f32 %v3063, %v2989
  %v3065 = vadd.f32 %v3064, %v2991
  %v3066 = vadd.f32 %v3065, %v2993
  %v3067 = vadd.f32 %v3066, %v2995
  %v3068 = vadd.f32 %v3067, %v2997
  %v3069 = vadd.f32 %v3068, %v2999
  %v3070 = vadd.f32 %v3069, %v3001
  %v3071 = vadd.f32 %v3070, %v3003
  %v3072 = vadd.f32 %v3071, %v3005
  %v3073 = vadd.f32 %v3072, %v3007
  %v3074 = vadd.f32 %v3073, %v3009
  %v3075 = vadd.f32 %v3074, %v3011
  %v3076 = vadd.f32 %v3075, %v3013
  %v3077 = vrot.slane %v3076, 4
  %v3078 = vadd.f32 %v3076, %v3077
  %v3079 = vrot.slane %v3078, 2
  %v3080 = vadd.f32 %v3078, %v3079
  %v3081 = vrot.slane %v3080, 1
  %v3082 = vadd.f32 %v3080, %v3081
  %v3083 = vadd.f32 %v2245, %v2246
  %v3084 = vadd.f32 %v3083, %v2247
  %v3085 = vadd.f32 %v3084, %v2248
  %v3086 = vadd.f32 %v3085, %v2249
  %v3087 = vadd.f32 %v3086, %v2250
  %v3088 = vadd.f32 %v3087, %v2251
  %v3089 = vadd.f32 %v3088, %v2252
  %v3090 = vadd.f32 %v3089, %v2253
  %v3091 = vadd.f32 %v3090, %v2254
  %v3092 = vadd.f32 %v3091, %v2255
  %v3093 = vadd.f32 %v3092, %v2256
  %v3094 = vadd.f32 %v3093, %v2257
  %v3095 = vadd.f32 %v3094, %v2258
  %v3096 = vadd.f32 %v3095, %v2259
  %v3097 = vadd.f32 %v3096, %v2260
  %v3098 = vadd.f32 %v3097, %v2261
  %v3099 = vadd.f32 %v3098, %v2262
  %v3100 = vadd.f32 %v3099, %v2263
  %v3101 = vadd.f32 %v3100, %v2264
  %v3102 = vadd.f32 %v3101, %v2265
  %v3103 = vadd.f32 %v3102, %v2266
  %v3104 = vadd.f32 %v3103, %v2267
  %v3105 = vadd.f32 %v3104, %v2268
  %v3106 = vadd.f32 %v3105, %v2269
  %v3107 = vadd.f32 %v3106, %v2270
  %v3108 = vadd.f32 %v3107, %v2271
  %v3109 = vadd.f32 %v3108, %v2272
  %v3110 = vadd.f32 %v3109, %v2273
  %v3111 = vadd.f32 %v3110, %v2274
  %v3112 = vadd.f32 %v3111, %v2275
  %v3113 = vadd.f32 %v3112, %v2276
  %v3114 = vadd.f32 %v3113, %v2277
  %v3115 = vadd.f32 %v3114, %v2278
  %v3116 = vadd.f32 %v3115, %v2279
  %v3117 = vadd.f32 %v3116, %v2280
  %v3118 = vadd.f32 %v3117, %v2281
  %v3119 = vadd.f32 %v3118, %v2282
  %v3120 = vadd.f32 %v3119, %v2283
  %v3121 = vadd.f32 %v3120, %v2284
  %v3122 = vadd.f32 %v3121, %v2285
  %v3123 = vadd.f32 %v3122, %v2286
  %v3124 = vadd.f32 %v3123, %v2287
  %v3125 = vadd.f32 %v3124, %v2288
  %v3126 = vadd.f32 %v3125, %v2289
  %v3127 = vadd.f32 %v3126, %v2290
  %v3128 = vadd.f32 %v3127, %v2291
  %v3129 = vadd.f32 %v3128, %v2292
  %v3130 = vadd.f32 %v3129, %v2293
  %v3131 = vadd.f32 %v3130, %v2294
  %v3132 = vadd.f32 %v3131, %v2295
  %v3133 = vadd.f32 %v3132, %v2296
  %v3134 = vadd.f32 %v3133, %v2297
  %v3135 = vadd.f32 %v3134, %v2298
  %v3136 = vadd.f32 %v3135, %v2299
  %v3137 = vadd.f32 %v3136, %v2300
  %v3138 = vadd.f32 %v3137, %v2301
  %v3139 = vadd.f32 %v3138, %v2302
  %v3140 = vadd.f32 %v3139, %v2303
  %v3141 = vadd.f32 %v3140, %v2304
  %v3142 = vadd.f32 %v3141, %v2305
  %v3143 = vadd.f32 %v3142, %v2306
  %v3144 = vadd.f32 %v3143, %v2307
  %v3145 = vadd.f32 %v3144, %v2308
  %v3146 = vrot.slane %v3145, 4
  %v3147 = vadd.f32 %v3145, %v3146
  %v3148 = vrot.slane %v3147, 2
  %v3149 = vadd.f32 %v3147, %v3148
  %v3150 = vrot.slane %v3149, 1
  %v3151 = vadd.f32 %v3149, %v3150
  %vm3152 = vcmp.eq.s32.totalorder %v964, 127
  %v3153 = vsel %vm3152, %v3082, %v3151
  %3154 = vst [vmem:[%s9] sm:$0x1] %v3153
  %v3155 = vld [vmem:[%s4] sm:$0xff]
  %v3156 = vld [vmem:[%s4 + $0x8] sm:$0xff]
  %v3157 = vld [vmem:[%s4 + $0x10] sm:$0xff]
  %v3158 = vld [vmem:[%s4 + $0x18] sm:$0xff]
  %v3159 = vld [vmem:[%s4 + $0x20] sm:$0xff]
  %v3160 = vld [vmem:[%s4 + $0x28] sm:$0xff]
  %v3161 = vld [vmem:[%s4 + $0x30] sm:$0xff]
  %v3162 = vld [vmem:[%s4 + $0x38] sm:$0xff]
  %v3163 = vld [vmem:[%s4 + $0x40] sm:$0xff]
  %v3164 = vld [vmem:[%s4 + $0x48] sm:$0xff]
  %v3165 = vld [vmem:[%s4 + $0x50] sm:$0xff]
  %v3166 = vld [vmem:[%s4 + $0x58] sm:$0xff]
  %v3167 = vld [vmem:[%s4 + $0x60] sm:$0xff]
  %v3168 = vld [vmem:[%s4 + $0x68] sm:$0xff]
  %v3169 = vld [vmem:[%s4 + $0x70] sm:$0xff]
  %v3170 = vld [vmem:[%s4 + $0x78] sm:$0xff]
  %v3171 = vld [vmem:[%s4 + $0x80] sm:$0xff]
  %v3172 = vld [vmem:[%s4 + $0x88] sm:$0xff]
  %v3173 = vld [vmem:[%s4 + $0x90] sm:$0xff]
  %v3174 = vld [vmem:[%s4 + $0x98] sm:$0xff]
  %v3175 = vld [vmem:[%s4 + $0xa0] sm:$0xff]
  %v3176 = vld [vmem:[%s4 + $0xa8] sm:$0xff]
  %v3177 = vld [vmem:[%s4 + $0xb0] sm:$0xff]
  %v3178 = vld [vmem:[%s4 + $0xb8] sm:$0xff]
  %v3179 = vld [vmem:[%s4 + $0xc0] sm:$0xff]
  %v3180 = vld [vmem:[%s4 + $0xc8] sm:$0xff]
  %v3181 = vld [vmem:[%s4 + $0xd0] sm:$0xff]
  %v3182 = vld [vmem:[%s4 + $0xd8] sm:$0xff]
  %v3183 = vld [vmem:[%s4 + $0xe0] sm:$0xff]
  %v3184 = vld [vmem:[%s4 + $0xe8] sm:$0xff]
  %v3185 = vld [vmem:[%s4 + $0xf0] sm:$0xff]
  %v3186 = vld [vmem:[%s4 + $0xf8] sm:$0xff]
  %v3187 = vld [vmem:[%s4 + $0x100] sm:$0xff]
  %v3188 = vld [vmem:[%s4 + $0x108] sm:$0xff]
  %v3189 = vld [vmem:[%s4 + $0x110] sm:$0xff]
  %v3190 = vld [vmem:[%s4 + $0x118] sm:$0xff]
  %v3191 = vld [vmem:[%s4 + $0x120] sm:$0xff]
  %v3192 = vld [vmem:[%s4 + $0x128] sm:$0xff]
  %v3193 = vld [vmem:[%s4 + $0x130] sm:$0xff]
  %v3194 = vld [vmem:[%s4 + $0x138] sm:$0xff]
  %v3195 = vld [vmem:[%s4 + $0x140] sm:$0xff]
  %v3196 = vld [vmem:[%s4 + $0x148] sm:$0xff]
  %v3197 = vld [vmem:[%s4 + $0x150] sm:$0xff]
  %v3198 = vld [vmem:[%s4 + $0x158] sm:$0xff]
  %v3199 = vld [vmem:[%s4 + $0x160] sm:$0xff]
  %v3200 = vld [vmem:[%s4 + $0x168] sm:$0xff]
  %v3201 = vld [vmem:[%s4 + $0x170] sm:$0xff]
  %v3202 = vld [vmem:[%s4 + $0x178] sm:$0xff]
  %v3203 = vld [vmem:[%s4 + $0x180] sm:$0xff]
  %v3204 = vld [vmem:[%s4 + $0x188] sm:$0xff]
  %v3205 = vld [vmem:[%s4 + $0x190] sm:$0xff]
  %v3206 = vld [vmem:[%s4 + $0x198] sm:$0xff]
  %v3207 = vld [vmem:[%s4 + $0x1a0] sm:$0xff]
  %v3208 = vld [vmem:[%s4 + $0x1a8] sm:$0xff]
  %v3209 = vld [vmem:[%s4 + $0x1b0] sm:$0xff]
  %v3210 = vld [vmem:[%s4 + $0x1b8] sm:$0xff]
  %v3211 = vld [vmem:[%s4 + $0x1c0] sm:$0xff]
  %v3212 = vld [vmem:[%s4 + $0x1c8] sm:$0xff]
  %v3213 = vld [vmem:[%s4 + $0x1d0] sm:$0xff]
  %v3214 = vld [vmem:[%s4 + $0x1d8] sm:$0xff]
  %v3215 = vld [vmem:[%s4 + $0x1e0] sm:$0xff]
  %v3216 = vld [vmem:[%s4 + $0x1e8] sm:$0xff]
  %v3217 = vld [vmem:[%s4 + $0x1f0] sm:$0xff]
  %v3218 = vld [vmem:[%s4 + $0x1f8] sm:$0xff]
  %v3219 = vcvt.s32.f32 %v1234
  %v3220 = vcvt.s32.f32 %v1248
  %v3221 = vcvt.s32.f32 %v1262
  %v3222 = vcvt.s32.f32 %v1276
  %v3223 = vcvt.s32.f32 %v1290
  %v3224 = vcvt.s32.f32 %v1304
  %v3225 = vcvt.s32.f32 %v1318
  %v3226 = vcvt.s32.f32 %v1332
  %v3227 = vcvt.s32.f32 %v1346
  %v3228 = vcvt.s32.f32 %v1360
  %v3229 = vcvt.s32.f32 %v1374
  %v3230 = vcvt.s32.f32 %v1388
  %v3231 = vcvt.s32.f32 %v1402
  %v3232 = vcvt.s32.f32 %v1416
  %v3233 = vcvt.s32.f32 %v1430
  %v3234 = vcvt.s32.f32 %v1444
  %v3235 = vcvt.s32.f32 %v1458
  %v3236 = vcvt.s32.f32 %v1472
  %v3237 = vcvt.s32.f32 %v1486
  %v3238 = vcvt.s32.f32 %v1500
  %v3239 = vcvt.s32.f32 %v1514
  %v3240 = vcvt.s32.f32 %v1528
  %v3241 = vcvt.s32.f32 %v1542
  %v3242 = vcvt.s32.f32 %v1556
  %v3243 = vcvt.s32.f32 %v1570
  %v3244 = vcvt.s32.f32 %v1584
  %v3245 = vcvt.s32.f32 %v1598
  %v3246 = vcvt.s32.f32 %v1612
  %v3247 = vcvt.s32.f32 %v1626
  %v3248 = vcvt.s32.f32 %v1640
  %v3249 = vcvt.s32.f32 %v1654
  %v3250 = vcvt.s32.f32 %v1668
  %v3251 = vcvt.s32.f32 %v1682
  %v3252 = vcvt.s32.f32 %v1696
  %v3253 = vcvt.s32.f32 %v1710
  %v3254 = vcvt.s32.f32 %v1724
  %v3255 = vcvt.s32.f32 %v1738
  %v3256 = vcvt.s32.f32 %v1752
  %v3257 = vcvt.s32.f32 %v1766
  %v3258 = vcvt.s32.f32 %v1780
  %v3259 = vcvt.s32.f32 %v1794
  %v3260 = vcvt.s32.f32 %v1808
  %v3261 = vcvt.s32.f32 %v1822
  %v3262 = vcvt.s32.f32 %v1836
  %v3263 = vcvt.s32.f32 %v1850
  %v3264 = vcvt.s32.f32 %v1864
  %v3265 = vcvt.s32.f32 %v1878
  %v3266 = vcvt.s32.f32 %v1892
  %v3267 = vcvt.s32.f32 %v1906
  %v3268 = vcvt.s32.f32 %v1920
  %v3269 = vcvt.s32.f32 %v1934
  %v3270 = vcvt.s32.f32 %v1948
  %v3271 = vcvt.s32.f32 %v1962
  %v3272 = vcvt.s32.f32 %v1976
  %v3273 = vcvt.s32.f32 %v1990
  %v3274 = vcvt.s32.f32 %v2004
  %v3275 = vcvt.s32.f32 %v2018
  %v3276 = vcvt.s32.f32 %v2032
  %v3277 = vcvt.s32.f32 %v2046
  %v3278 = vcvt.s32.f32 %v2060
  %v3279 = vcvt.s32.f32 %v2074
  %v3280 = vcvt.s32.f32 %v2088
  %v3281 = vcvt.s32.f32 %v2102
  %v3282 = vcvt.s32.f32 %v2116
  %v3283 = vmul.f32 %v3155, %v3219
  %v3284 = vmul.f32 %v3156, %v3220
  %v3285 = vmul.f32 %v3157, %v3221
  %v3286 = vmul.f32 %v3158, %v3222
  %v3287 = vmul.f32 %v3159, %v3223
  %v3288 = vmul.f32 %v3160, %v3224
  %v3289 = vmul.f32 %v3161, %v3225
  %v3290 = vmul.f32 %v3162, %v3226
  %v3291 = vmul.f32 %v3163, %v3227
  %v3292 = vmul.f32 %v3164, %v3228
  %v3293 = vmul.f32 %v3165, %v3229
  %v3294 = vmul.f32 %v3166, %v3230
  %v3295 = vmul.f32 %v3167, %v3231
  %v3296 = vmul.f32 %v3168, %v3232
  %v3297 = vmul.f32 %v3169, %v3233
  %v3298 = vmul.f32 %v3170, %v3234
  %v3299 = vmul.f32 %v3171, %v3235
  %v3300 = vmul.f32 %v3172, %v3236
  %v3301 = vmul.f32 %v3173, %v3237
  %v3302 = vmul.f32 %v3174, %v3238
  %v3303 = vmul.f32 %v3175, %v3239
  %v3304 = vmul.f32 %v3176, %v3240
  %v3305 = vmul.f32 %v3177, %v3241
  %v3306 = vmul.f32 %v3178, %v3242
  %v3307 = vmul.f32 %v3179, %v3243
  %v3308 = vmul.f32 %v3180, %v3244
  %v3309 = vmul.f32 %v3181, %v3245
  %v3310 = vmul.f32 %v3182, %v3246
  %v3311 = vmul.f32 %v3183, %v3247
  %v3312 = vmul.f32 %v3184, %v3248
  %v3313 = vmul.f32 %v3185, %v3249
  %v3314 = vmul.f32 %v3186, %v3250
  %v3315 = vmul.f32 %v3187, %v3251
  %v3316 = vmul.f32 %v3188, %v3252
  %v3317 = vmul.f32 %v3189, %v3253
  %v3318 = vmul.f32 %v3190, %v3254
  %v3319 = vmul.f32 %v3191, %v3255
  %v3320 = vmul.f32 %v3192, %v3256
  %v3321 = vmul.f32 %v3193, %v3257
  %v3322 = vmul.f32 %v3194, %v3258
  %v3323 = vmul.f32 %v3195, %v3259
  %v3324 = vmul.f32 %v3196, %v3260
  %v3325 = vmul.f32 %v3197, %v3261
  %v3326 = vmul.f32 %v3198, %v3262
  %v3327 = vmul.f32 %v3199, %v3263
  %v3328 = vmul.f32 %v3200, %v3264
  %v3329 = vmul.f32 %v3201, %v3265
  %v3330 = vmul.f32 %v3202, %v3266
  %v3331 = vmul.f32 %v3203, %v3267
  %v3332 = vmul.f32 %v3204, %v3268
  %v3333 = vmul.f32 %v3205, %v3269
  %v3334 = vmul.f32 %v3206, %v3270
  %v3335 = vmul.f32 %v3207, %v3271
  %v3336 = vmul.f32 %v3208, %v3272
  %v3337 = vmul.f32 %v3209, %v3273
  %v3338 = vmul.f32 %v3210, %v3274
  %v3339 = vmul.f32 %v3211, %v3275
  %v3340 = vmul.f32 %v3212, %v3276
  %v3341 = vmul.f32 %v3213, %v3277
  %v3342 = vmul.f32 %v3214, %v3278
  %v3343 = vmul.f32 %v3215, %v3279
  %v3344 = vmul.f32 %v3216, %v3280
  %v3345 = vmul.f32 %v3217, %v3281
  %v3346 = vmul.f32 %v3218, %v3282
  %v3347 = vld [vmem:[%s5] sm:$0xff]
  %v3348 = vld [vmem:[%s5 + $0x8] sm:$0xff]
  %v3351 = vcombine.high %v3347, %v3347
  %v3352 = vcombine.high %v3348, %v3348
  %3355 = vmatprep.subr.mxu0 0.0
  %3356 = vmatpush1.msra.mxu0 %v3283
  %3357 = vmatprep.subr.mxu0 0.0
  %3358 = vmatpush1.msra.mxu0 %v3284
  %3359 = vmatprep.subr.mxu0 0.0
  %3360 = vmatpush1.msra.mxu0 %v3285
  %3361 = vmatprep.subr.mxu0 0.0
  %3362 = vmatpush1.msra.mxu0 %v3286
  %3363 = vmatprep.subr.mxu0 0.0
  %3364 = vmatpush1.msra.mxu0 %v3287
  %3365 = vmatprep.subr.mxu0 0.0
  %3366 = vmatpush1.msra.mxu0 %v3288
  %3367 = vmatprep.subr.mxu0 0.0
  %3368 = vmatpush1.msra.mxu0 %v3289
  %3369 = vmatprep.subr.mxu0 0.0
  %3370 = vmatpush1.msra.mxu0 %v3290
  %3371 = vmatprep.subr.mxu0 0.0
  %3372 = vmatpush1.msra.mxu0 %v3291
  %3373 = vmatprep.subr.mxu0 0.0
  %3374 = vmatpush1.msra.mxu0 %v3292
  %3375 = vmatprep.subr.mxu0 0.0
  %3376 = vmatpush1.msra.mxu0 %v3293
  %3377 = vmatprep.subr.mxu0 0.0
  %3378 = vmatpush1.msra.mxu0 %v3294
  %3379 = vmatprep.subr.mxu0 0.0
  %3380 = vmatpush1.msra.mxu0 %v3295
  %3381 = vmatprep.subr.mxu0 0.0
  %3382 = vmatpush1.msra.mxu0 %v3296
  %3383 = vmatprep.subr.mxu0 0.0
  %3384 = vmatpush1.msra.mxu0 %v3297
  %3385 = vmatprep.subr.mxu0 0.0
  %3386 = vmatpush1.msra.mxu0 %v3298
  %3387 = vmatprep.subr.mxu0 0.0
  %3388 = vmatpush1.msra.mxu0 %v3299
  %3389 = vmatprep.subr.mxu0 0.0
  %3390 = vmatpush1.msra.mxu0 %v3300
  %3391 = vmatprep.subr.mxu0 0.0
  %3392 = vmatpush1.msra.mxu0 %v3301
  %3393 = vmatprep.subr.mxu0 0.0
  %3394 = vmatpush1.msra.mxu0 %v3302
  %3395 = vmatprep.subr.mxu0 0.0
  %3396 = vmatpush1.msra.mxu0 %v3303
  %3397 = vmatprep.subr.mxu0 0.0
  %3398 = vmatpush1.msra.mxu0 %v3304
  %3399 = vmatprep.subr.mxu0 0.0
  %3400 = vmatpush1.msra.mxu0 %v3305
  %3401 = vmatprep.subr.mxu0 0.0
  %3402 = vmatpush1.msra.mxu0 %v3306
  %3403 = vmatprep.subr.mxu0 0.0
  %3404 = vmatpush1.msra.mxu0 %v3307
  %3405 = vmatprep.subr.mxu0 0.0
  %3406 = vmatpush1.msra.mxu0 %v3308
  %3407 = vmatprep.subr.mxu0 0.0
  %3408 = vmatpush1.msra.mxu0 %v3309
  %3409 = vmatprep.subr.mxu0 0.0
  %3410 = vmatpush1.msra.mxu0 %v3310
  %3411 = vmatprep.subr.mxu0 0.0
  %3412 = vmatpush1.msra.mxu0 %v3311
  %3413 = vmatprep.subr.mxu0 0.0
  %3414 = vmatpush1.msra.mxu0 %v3312
  %3415 = vmatprep.subr.mxu0 0.0
  %3416 = vmatpush1.msra.mxu0 %v3313
  %3417 = vmatprep.subr.mxu0 0.0
  %3418 = vmatpush1.msra.mxu0 %v3314
  %3419 = vmatprep.mubr.f32.mxu0 %v3351
  %3420 = vmatmul.mubr.f32.gmra.mrb[0].mxu0 %v3347
  %v3421 = vpop.f32.mrb[0].mxu0
  %v3422 = vadd.f32 0.0, %v3421
  %v3423 = vpop.f32.mrb[0].mxu0
  %3424 = vdwg.mxu0
  %3425 = vmatprep.subr.mxu0 0.0
  %3426 = vmatpush1.msra.mxu0 %v3315
  %3427 = vmatprep.subr.mxu0 0.0
  %3428 = vmatpush1.msra.mxu0 %v3316
  %3429 = vmatprep.subr.mxu0 0.0
  %3430 = vmatpush1.msra.mxu0 %v3317
  %3431 = vmatprep.subr.mxu0 0.0
  %3432 = vmatpush1.msra.mxu0 %v3318
  %3433 = vmatprep.subr.mxu0 0.0
  %3434 = vmatpush1.msra.mxu0 %v3319
  %3435 = vmatprep.subr.mxu0 0.0
  %3436 = vmatpush1.msra.mxu0 %v3320
  %3437 = vmatprep.subr.mxu0 0.0
  %3438 = vmatpush1.msra.mxu0 %v3321
  %3439 = vmatprep.subr.mxu0 0.0
  %3440 = vmatpush1.msra.mxu0 %v3322
  %3441 = vmatprep.subr.mxu0 0.0
  %3442 = vmatpush1.msra.mxu0 %v3323
  %3443 = vmatprep.subr.mxu0 0.0
  %3444 = vmatpush1.msra.mxu0 %v3324
  %3445 = vmatprep.subr.mxu0 0.0
  %3446 = vmatpush1.msra.mxu0 %v3325
  %3447 = vmatprep.subr.mxu0 0.0
  %3448 = vmatpush1.msra.mxu0 %v3326
  %3449 = vmatprep.subr.mxu0 0.0
  %3450 = vmatpush1.msra.mxu0 %v3327
  %3451 = vmatprep.subr.mxu0 0.0
  %3452 = vmatpush1.msra.mxu0 %v3328
  %3453 = vmatprep.subr.mxu0 0.0
  %3454 = vmatpush1.msra.mxu0 %v3329
  %3455 = vmatprep.subr.mxu0 0.0
  %3456 = vmatpush1.msra.mxu0 %v3330
  %3457 = vmatprep.subr.mxu0 0.0
  %3458 = vmatpush1.msra.mxu0 %v3331
  %3459 = vmatprep.subr.mxu0 0.0
  %3460 = vmatpush1.msra.mxu0 %v3332
  %3461 = vmatprep.subr.mxu0 0.0
  %3462 = vmatpush1.msra.mxu0 %v3333
  %3463 = vmatprep.subr.mxu0 0.0
  %3464 = vmatpush1.msra.mxu0 %v3334
  %3465 = vmatprep.subr.mxu0 0.0
  %3466 = vmatpush1.msra.mxu0 %v3335
  %3467 = vmatprep.subr.mxu0 0.0
  %3468 = vmatpush1.msra.mxu0 %v3336
  %3469 = vmatprep.subr.mxu0 0.0
  %3470 = vmatpush1.msra.mxu0 %v3337
  %3471 = vmatprep.subr.mxu0 0.0
  %3472 = vmatpush1.msra.mxu0 %v3338
  %3473 = vmatprep.subr.mxu0 0.0
  %3474 = vmatpush1.msra.mxu0 %v3339
  %3475 = vmatprep.subr.mxu0 0.0
  %3476 = vmatpush1.msra.mxu0 %v3340
  %3477 = vmatprep.subr.mxu0 0.0
  %3478 = vmatpush1.msra.mxu0 %v3341
  %3479 = vmatprep.subr.mxu0 0.0
  %3480 = vmatpush1.msra.mxu0 %v3342
  %3481 = vmatprep.subr.mxu0 0.0
  %3482 = vmatpush1.msra.mxu0 %v3343
  %3483 = vmatprep.subr.mxu0 0.0
  %3484 = vmatpush1.msra.mxu0 %v3344
  %3485 = vmatprep.subr.mxu0 0.0
  %3486 = vmatpush1.msra.mxu0 %v3345
  %3487 = vmatprep.subr.mxu0 0.0
  %3488 = vmatpush1.msra.mxu0 %v3346
  %3489 = vmatprep.mubr.f32.mxu0 %v3352
  %3490 = vmatmul.mubr.f32.gmra.mrb[0].mxu0 %v3348
  %v3491 = vpop.f32.mrb[0].mxu0
  %v3492 = vadd.f32 %v3422, %v3491
  %v3493 = vpop.f32.mrb[0].mxu0
  %3494 = vdwg.mxu0
  %v3495 = vcvt.f32.s32.to.zero.pseudo %v3492
  %3496 = vst [vmem:[%s8] sm:$0xf] %v3495
  // Predicated region
  $region26: #{vq_ema_forward.1} parent=0 // pred_check
    _
  $region27: #{vq_ema_forward.1} parent=0 // pred_check_branch
    %3498 = sbr.rel (0) target = $region29
  $region28: #{vq_ema_forward.1} parent=0 // pred_region
    _
  $region29: #{vq_ema_forward.1} parent=0 // pred_fallthru
    _
  // Predicated region
  $region30: #{vq_ema_forward.1} parent=0 // pred_check
    _
  $region31: #{vq_ema_forward.1} parent=0 // pred_check_branch
    %3500 = sbr.rel (0) target = $region33
  $region32: #{vq_ema_forward.1} parent=0 // pred_region
    _
  $region33: #{vq_ema_forward.1} parent=0 // pred_fallthru
    _
  // Predicated region
  $region34: #{vq_ema_forward.1} parent=0 // pred_check
    _
  $region35: #{vq_ema_forward.1} parent=0 // pred_check_branch
    %3502 = sbr.rel (0) target = $region37
  $region36: #{vq_ema_forward.1} parent=0 // pred_region
    _
  $region37: #{vq_ema_forward.1} parent=0 // pred_fallthru
    _
  // Predicated region
  $region38: #{vq_ema_forward.1} parent=0 // pred_check
    _
  $region39: #{vq_ema_forward.1} parent=0 // pred_check_branch
    %3504 = sbr.rel (0) target = $region41
  $region40: #{vq_ema_forward.1} parent=0 // pred_region
    _
  $region41: #{vq_ema_forward.1} parent=0 // pred_fallthru
    _
  // Predicated region
  $region42: #{vq_ema_forward.1} parent=0 // pred_check
    _
  $region43: #{vq_ema_forward.1} parent=0 // pred_check_branch
    %3506 = sbr.rel (0) target = $region45
  $region44: #{vq_ema_forward.1} parent=0 // pred_region
    _
  $region45: #{vq_ema_forward.1} parent=0 // pred_fallthru
    _
  // Predicated region
  $region46: #{vq_ema_forward.1} parent=0 // pred_check
    _
  $region47: #{vq_ema_forward.1} parent=0 // pred_check_branch
    %3508 = sbr.rel (0) target = $region49
  $region48: #{vq_ema_forward.1} parent=0 // pred_region
    _
  $region49: #{vq_ema_forward.1} parent=0 // pred_fallthru
    _
  // Predicated region
  $region50: #{vq_ema_forward.1} parent=0 // pred_check
    _
  $region51: #{vq_ema_forward.1} parent=0 // pred_check_branch
    %3510 = sbr.rel (0) target = $region53
  $region52: #{vq_ema_forward.1} parent=0 // pred_region
    _
  $region53: #{vq_ema_forward.1} parent=0 // pred_fallthru
    _
  // Predicated region
  $region54: #{vq_ema_forward.1} parent=0 // pred_check
    _
  $region55: #{vq_ema_forward.1} parent=0 // pred_check_branch
    %3512 = sbr.rel (0) target = $region57
  $region56: #{vq_ema_forward.1} parent=0 // pred_region
    _
  $region57: #{vq_ema_forward.1} parent=0 // pred_fallthru
    _

</llo_original>
